<compile_context>
chip_gen: v5e
topology: v5e:2x2
jax: 0.10.0
libtpu: 0.0.40
codegen_flags: <defaults>
</compile_context>

<pallas_src>
import functools
import math

import jax
import jax.numpy as jnp
from jax.experimental import pallas as pl
from jax.experimental.pallas import tpu as pltpu


# ----------------------------------------------------------------------------
# sca_utils.get_gaussian_kernel(sd=1.5): the 2D kernel factors exactly into the
# outer product of this normalized 1D gaussian (separable blur uses only the 1D).
# ----------------------------------------------------------------------------
def get_gaussian_kernel_1d(sd=1.5):
    ksz = int(4 * sd + 1)                         # 7
    c = ksz // 2
    g = [math.exp(-((i - c) ** 2) / (2.0 * sd * sd)) for i in range(ksz)]
    s = sum(g)
    return tuple(v / s for v in g), ksz


def _tree_sum(terms):
    """Balanced pairwise sum -> independent adds instead of one serial chain."""
    terms = list(terms)
    while len(terms) > 1:
        nxt = [terms[i] + terms[i + 1] for i in range(0, len(terms) - 1, 2)]
        if len(terms) % 2:
            nxt.append(terms[-1])
        terms = nxt
    return terms[0]


# ----------------------------------------------------------------------------
# Pallas kernel 1: separable 7-tap x 7-tap gaussian blur ("valid"), crop fused,
# N images packed along the lane axis.
# ----------------------------------------------------------------------------
def _sep_gauss_blur_kernel(x_ref, o_ref, t_ref, *, w1d, hout, w_lanes):
    ksz = len(w1d)
    c = ksz // 2

    # Pass 1 (horizontal): taps loaded directly from the input ref at lane
    # offsets 0..6 (offset vector loads ride the vld slots; no in-register lane
    # rotates).  Gaussian symmetry: pair symmetric taps first -> 4 muls, not 7.
    terms = []
    for k in range(c):
        pair = (x_ref[:, pl.ds(k, w_lanes)] +
                x_ref[:, pl.ds(ksz - 1 - k, w_lanes)])
        terms.append(w1d[k] * pair)
    terms.append(w1d[c] * x_ref[:, pl.ds(c, w_lanes)])
    t_ref[...] = _tree_sum(terms)                     # (Hwin, Wp) intermediate

    # Pass 2 (vertical): taps loaded back from the VMEM intermediate at sublane
    # offsets, same symmetric pairing.  Output store is lane-dense (Wp % 128 == 0).
    terms = []
    for k in range(c):
        pair = (t_ref[pl.ds(k, hout), :] +
                t_ref[pl.ds(ksz - 1 - k, hout), :])
        terms.append(w1d[k] * pair)
    terms.append(w1d[c] * t_ref[pl.ds(c, hout), :])
    o_ref[...] = _tree_sum(terms)


def gauss_blur_cropped(x, w1d, crop):
    """Equivalent to: reflect-pad by ksz//2, 7x7 'valid' gaussian blur, then crop
    `crop` pixels from each spatial border.  Since crop >= ksz//2 the reflected
    region never contributes, so we slice the raw input and skip padding + the
    discarded border compute entirely."""
    n, h, w = x.shape
    ksz = len(w1d)
    pad = ksz // 2
    hout, wout = h - 2 * crop, w - 2 * crop
    lo = crop - pad
    if lo < 0:                                   # general fallback (unused here)
        x = jnp.pad(x, ((0, 0), (-lo, -lo), (-lo, -lo)), mode='reflect')
        lo = 0
    hwin, wwin = hout + ksz - 1, wout + ksz - 1
    x_win = x[:, lo:lo + hwin, lo:lo + wwin]     # (N, hwin, wwin)

    # Lane-dense packing: fold N onto the lane axis (images side by side, each
    # keeping its own ksz-1 guard columns), pad lanes to a 128 multiple (+128
    # extra zero guard columns so the last output column's taps stay in-bounds).
    packed = jnp.transpose(x_win, (1, 0, 2)).reshape(hwin, n * wwin)
    wp_out = ((n * wwin + 127) // 128) * 128
    wp_in = wp_out + 128
    packed = jnp.pad(packed, ((0, 0), (0, wp_in - n * wwin))).astype(jnp.float32)

    kern = functools.partial(_sep_gauss_blur_kernel, w1d=w1d, hout=hout,
                             w_lanes=wp_out)
    # TODO(synk): at production DBSR sizes, grid over haloed 128-lane column groups
    # (dimension_semantics=('parallel',)) for DMA/compute overlap + megacore; at
    # these sizes a single block is dominated by the fixed ~0.35us call overhead.
    out_packed = pl.pallas_call(
        kern,
        out_shape=jax.ShapeDtypeStruct((hout, wp_out), jnp.float32),
        scratch_shapes=[pltpu.VMEM((hwin, wp_out), jnp.float32)],
    )(packed)

    # Unpack: keep only each image's first `wout` columns.
    out = out_packed[:, :n * wwin].reshape(hout, n, wwin)[:, :, :wout]
    return jnp.transpose(out, (1, 0, 2))         # (N, hout, wout)


# ----------------------------------------------------------------------------
# Pallas kernel 2: per-batch 3x3 color-matrix application fused with the masked
# squared-error reduction, sublane-dense tiles, deferred reduction.
#   pm[o, r, l] = sum_i ct[o, i] * pred[i, r, l]   (ct = c_mat^T, scalars in SMEM)
#   num_acc[o] += (pm - gt[o])^2 * v               (pure VALU, every tile)
#   den_acc    += v
#   at last tile: fold sublanes, store lane partials (3,128)/(1,128).
# ----------------------------------------------------------------------------
def _color_mse_kernel(cmat_ref, pred_ref, gt_ref, m_ref, num_ref, den_ref,
                      num_acc, den_acc):
    b = pl.program_id(1)
    t = pl.program_id(2)

    @pl.when(t == 0)
    def _():
        num_acc[...] = jnp.zeros_like(num_acc)
        den_acc[...] = jnp.zeros_like(den_acc)

    # Sublane-dense per-channel slabs: (R, 128) each; bf16 -> f32 unpack amortized
    # over full vregs.  Mask is pre-thresholded exact {0,1}.
    x0 = pred_ref[0, 0].astype(jnp.float32)
    x1 = pred_ref[0, 1].astype(jnp.float32)
    x2 = pred_ref[0, 2].astype(jnp.float32)
    v = m_ref[0, 0].astype(jnp.float32)

    for o in range(3):                                     # 3x3 on the VPU (not MXU)
        pm = (cmat_ref[b, 3 * o + 0] * x0 +
              cmat_ref[b, 3 * o + 1] * x1 +
              cmat_ref[b, 3 * o + 2] * x2)                 # (R, 128)
        d = pm - gt_ref[0, o].astype(jnp.float32)
        num_acc[o, :, :] = num_acc[o, :, :] + d * d * v    # elementwise, no reduce
    den_acc[...] += v

    # One cross-sublane fold + lane-dense store per (core-split, batch), not per tile.
    @pl.when(t == pl.num_programs(2) - 1)
    def _():
        num_ref[0, 0, :, :] = jnp.sum(num_acc[...], axis=1)                 # (3,128)
        den_ref[0, 0, :, :] = jnp.sum(den_acc[...], axis=0, keepdims=True)  # (1,128)


def _tile_plan(rows):
    """rows = number of 128-lane rows of the flattened HW axis."""
    cs = 2 if rows >= 16 else 1                  # split row range across 2 TCs (v7x)
    per_core = (rows + cs - 1) // cs
    r_tile = max(8, min(64, ((per_core + 7) // 8) * 8))   # up to 8192 lanes / step
    nt = (per_core + r_tile - 1) // r_tile
    rows_pad = cs * nt * r_tile
    return cs, r_tile, rows_pad, nt


def color_apply_masked_mse_sums(pred_w, c_mat_t, gt, valid_up):
    """pred_w, gt: (B, 3, HW) f32; c_mat_t: (B, 3, 3) f32; valid_up: (B, 1, HW) f32.
    Returns (sum of masked squared errors, sum of valid mask)."""
    B, C, HW = pred_w.shape
    rows = (HW + 127) // 128
    cs, r_tile, rows_pad, nt = _tile_plan(rows)
    hw_pad = rows_pad * 128

    def prep(a, dtype):
        if hw_pad != HW:
            a = jnp.pad(a, ((0, 0), (0, 0), (0, hw_pad - HW)))
        return a.reshape(B, a.shape[1], rows_pad, 128).astype(dtype)

    # bf16 streaming halves HBM->VMEM traffic; accumulation stays f32 in-kernel.
    pred_b = prep(pred_w, jnp.bfloat16)
    gt_b = prep(gt, jnp.bfloat16)
    # Threshold in f32 in the XLA graph (fuses into the resize); 0/1 is exact in bf16.
    # Zero padding => padded pixels contribute nothing to num or den.
    mask_b = prep((valid_up > 0.9).astype(jnp.float32), jnp.bfloat16)
    cmat2d = c_mat_t.reshape(B, C * C).astype(jnp.float32)

    im = lambda c, b, t: (b, 0, c * nt + t, 0)

    # TODO(synk): higher-effort option — keep the low-res mask resident in VMEM and
    # do the bilinear upsample + threshold inside this kernel to avoid streaming the
    # full-res mask from HBM at all.
    num, den = pl.pallas_call(
        _color_mse_kernel,
        grid=(cs, B, nt),
        in_specs=[
            pl.BlockSpec(memory_space=pltpu.MemorySpace.SMEM),        # (B, 9) scalars
            pl.BlockSpec((1, C, r_tile, 128), im),                    # pred (bf16)
            pl.BlockSpec((1, C, r_tile, 128), im),                    # gt (bf16)
            pl.BlockSpec((1, 1, r_tile, 128), im),                    # mask (bf16 0/1)
        ],
        out_specs=[
            pl.BlockSpec((1, 1, C, 128), lambda c, b, t: (c, b, 0, 0)),
            pl.BlockSpec((1, 1, 1, 128), lambda c, b, t: (c, b, 0, 0)),
        ],
        out_shape=[
            jax.ShapeDtypeStruct((cs, B, C, 128), jnp.float32),
            jax.ShapeDtypeStruct((cs, B, 1, 128), jnp.float32),
        ],
        scratch_shapes=[
            pltpu.VMEM((C, r_tile, 128), jnp.float32),                # num_acc
            pltpu.VMEM((r_tile, 128), jnp.float32),                   # den_acc
        ],
        compiler_params=pltpu.CompilerParams(
            dimension_semantics=("parallel", "parallel", "arbitrary")),
    )(cmat2d, pred_b, gt_b, mask_b)

    # Tiny final lane reduce in XLA.
    return jnp.sum(num), jnp.sum(den)


# ----------------------------------------------------------------------------
# JAX glue: PyTorch-style bilinear resize (align_corners=False) and
# grid_sample-style bilinear warp with zeros padding.
# TODO(synk): grid_sample / interpolate use data-dependent gathers; kept in JAX.
# ----------------------------------------------------------------------------
def bilinear_resize(x, out_h, out_w):
    B, C, H, W = x.shape

    def src_idx(out_size, in_size):
        d = jnp.arange(out_size, dtype=jnp.float32)
        s = (d + 0.5) * (in_size / out_size) - 0.5
        s = jnp.maximum(s, 0.0)
        i0 = jnp.minimum(jnp.floor(s).astype(jnp.int32), in_size - 1)
        i1 = jnp.minimum(i0 + 1, in_size - 1)
        w = s - i0.astype(jnp.float32)
        return i0, i1, w

    y0, y1, wy = src_idx(out_h, H)
    x0, x1, wx = src_idx(out_w, W)
    top = x[:, :, y0, :]
    bot = x[:, :, y1, :]
    wy = wy[None, None, :, None]
    rows = top * (1.0 - wy) + bot * wy
    left = rows[:, :, :, x0]
    right = rows[:, :, :, x1]
    wx = wx[None, None, None, :]
    return left * (1.0 - wx) + right * wx


def warp_bilinear(feat, flow):
    """warp(feat, flow): sample feat at (y + flow_y, x + flow_x), zeros padding."""
    B, C, H, W = feat.shape
    xs = jnp.arange(W, dtype=jnp.float32)[None, None, :] + flow[:, 0]   # (B,H,W)
    ys = jnp.arange(H, dtype=jnp.float32)[None, :, None] + flow[:, 1]
    x0 = jnp.floor(xs)
    y0 = jnp.floor(ys)
    x1 = x0 + 1.0
    y1 = y0 + 1.0
    wx = xs - x0
    wy = ys - y0
    feat_flat = feat.reshape(B, C, H * W)

    def gather(yc, xc):
        yi = jnp.clip(yc, 0, H - 1).astype(jnp.int32)
        xi = jnp.clip(xc, 0, W - 1).astype(jnp.int32)
        idx = (yi * W + xi).reshape(B, 1, H * W)
        idx = jnp.broadcast_to(idx, (B, C, H * W))
        g = jnp.take_along_axis(feat_flat, idx, axis=2).reshape(B, C, H, W)
        inb = ((yc >= 0) & (yc <= H - 1) & (xc >= 0) & (xc <= W - 1))
        return g * inb.astype(feat.dtype)[:, None]

    return (gather(y0, x0) * ((1 - wy) * (1 - wx))[:, None]
            + gather(y0, x1) * ((1 - wy) * wx)[:, None]
            + gather(y1, x0) * (wy * (1 - wx))[:, None]
            + gather(y1, x1) * (wy * wx)[:, None])


# ----------------------------------------------------------------------------
# alignment_net is an external injected dependency (PWC-Net in DBSR).
# Substituted with a tiny deterministic 2-layer conv producing a smooth flow.
# ----------------------------------------------------------------------------
def make_alignment_net(key, hidden=8):
    k1, k2 = jax.random.split(key)
    w1 = 0.1 * jax.random.normal(k1, (hidden, 6, 3, 3), jnp.float32)
    w2 = 0.05 * jax.random.normal(k2, (2, hidden, 3, 3), jnp.float32)

    def apply(pred_n, gt_n):
        x = jnp.concatenate([pred_n, gt_n], axis=1)
        h = jax.lax.conv_general_dilated(
            x, w1, (1, 1), 'SAME', dimension_numbers=('NCHW', 'OIHW', 'NCHW'))
        h = jnp.tanh(h)
        f = jax.lax.conv_general_dilated(
            h, w2, (1, 1), 'SAME', dimension_numbers=('NCHW', 'OIHW', 'NCHW'))
        return 2.0 * jnp.tanh(f)     # (B, 2, H, W) flow

    return apply


# ----------------------------------------------------------------------------
# sca_utils.match_colors: estimate the 3x3 color transform + (float) validity mask.
# (c_mat application, >0.9 threshold and masked MSE are fused into Pallas kernel 2.)
# ----------------------------------------------------------------------------
def match_colors_stats(im_ref, im_q, out_h, out_w, gauss_w1d):
    B, C, h, w = im_ref.shape
    bi = 5

    stacked = jnp.concatenate([im_ref, im_q], axis=0).reshape(2 * B * C, h, w)
    blurred = gauss_blur_cropped(stacked, gauss_w1d, crop=bi)    # Pallas kernel 1
    hc, wc = h - 2 * bi, w - 2 * bi
    blurred = blurred.reshape(2 * B, C, hc, wc)
    im_ref_mean, im_q_mean = blurred[:B], blurred[B:]

    ir = im_ref_mean.reshape(B, C, hc * wc)
    iq = im_q_mean.reshape(B, C, hc * wc)

    # torch.lstsq(ir.T, iq.T): argmin_X || iq^T X - ir^T ||, X: (3,3)
    def solve(a, b):
        return jnp.linalg.lstsq(a, b)[0]

    c_mat = jax.vmap(solve)(jnp.transpose(iq, (0, 2, 1)),
                            jnp.transpose(ir, (0, 2, 1)))        # (B, 3, 3)

    # residual color error -> (float) validity mask; >0.9 threshold applied (in f32)
    # in the kernel-2 wrapper just before the bf16 cast.
    iq_conv = jnp.einsum('bip,bic->bcp', iq, c_mat)
    err = jnp.sqrt(jnp.sum(((iq_conv - ir) * 255.0) ** 2, axis=1))   # (B, P)
    valid_small = (err < 20.0).astype(jnp.float32).reshape(B, 1, hc, wc)
    valid_up = bilinear_resize(valid_small, out_h, out_w)        # (B, 1, H, W) float

    c_mat_t = jnp.transpose(c_mat, (0, 2, 1))                    # (B, 3, 3) = c_mat^T
    return c_mat_t, valid_up


# ----------------------------------------------------------------------------
# AlignedL2.forward
# ----------------------------------------------------------------------------
def aligned_l2_forward(pred, gt, burst_input, align_apply, gauss_w1d,
                       sr_factor=4, boundary_ignore=None):
    # flow from the (stand-in) alignment net, no-grad
    flow = align_apply(pred / (jnp.max(pred) + 1e-6), gt / (jnp.max(gt) + 1e-6))
    flow = jax.lax.stop_gradient(flow)

    pred_warped = warp_bilinear(pred, flow)

    ds_factor = 1.0 / (2.0 * sr_factor)
    B, _, H, W = pred.shape
    oh, ow = int(H * ds_factor), int(W * ds_factor)
    flow_ds = bilinear_resize(flow, oh, ow) * ds_factor

    burst_0 = jnp.take(burst_input[:, 0], jnp.array([0, 1, 3]), axis=1)  # (B,3,h,w)
    burst_0_warped = warp_bilinear(burst_0, flow_ds)
    frame_gt_ds = bilinear_resize(gt, oh, ow)

    c_mat_t, valid_up = match_colors_stats(frame_gt_ds, burst_0_warped, H, W,
                                           gauss_w1d)

    if boundary_ignore is not None:
        b = boundary_ignore
        pred_warped = pred_warped[..., b:-b, b:-b]
        gt = gt[..., b:-b, b:-b]
        valid_up = valid_up[..., b:-b, b:-b]

    Bc, Cc, Hc, Wc = pred_warped.shape
    num_sum, den_sum = color_apply_masked_mse_sums(              # Pallas kernel 2
        pred_warped.reshape(Bc, Cc, Hc * Wc),
        c_mat_t,
        gt.reshape(Bc, Cc, Hc * Wc),
        valid_up.reshape(Bc, 1, Hc * Wc),
    )

    eps = 1e-12
    elem_ratio = float(Cc)                                       # = 3.0
    mse = num_sum / (den_sum * elem_ratio + eps)
    return mse


if __name__ == "__main__":
    key = jax.random.PRNGKey(0)
    B, SR = 2, 4
    H = W = 96                         # HR size; RGGB burst spatial = H/(2*SR) = 12
    kp, kg, kb, ka = jax.random.split(key, 4)
    pred = jax.random.uniform(kp, (B, 3, H, W), jnp.float32)
    gt = jax.random.uniform(kg, (B, 3, H, W), jnp.float32)
    burst_input = jax.random.uniform(kb, (B, 2, 4, H // (2 * SR), W // (2 * SR)),
                                     jnp.float32)

    gauss_w1d, ksz = get_gaussian_kernel_1d(sd=1.5)
    align_apply = make_alignment_net(ka)

    fwd = jax.jit(functools.partial(aligned_l2_forward, align_apply=align_apply,
                                    gauss_w1d=gauss_w1d, sr_factor=SR,
                                    boundary_ignore=None))
    mse = fwd(pred, gt, burst_input)
    jax.block_until_ready(mse)
    print("KERNEL_OK")
</pallas_src>

<mosaic_0001>
module attributes {stable_mosaic.version = 11 : i64} {
  func.func @_sep_gauss_blur_kernel(%arg0: memref<8x256xf32, #tpu.memory_space<vmem>>, %arg1: memref<2x128xf32, #tpu.memory_space<vmem>>, %arg2: memref<8x128xf32, #tpu.memory_space<vmem>>) attributes {dimension_semantics = [], scalar_prefetch = 0 : i64, scratch_operands = 1 : i64, tpu.core_type = #tpu.core_type<tc>} {
    %c0 = arith.constant 0 : index
    %c0_0 = arith.constant 0 : index
    %0 = vector.load %arg0[%c0, %c0_0] : memref<8x256xf32, #tpu.memory_space<vmem>>, vector<8x128xf32>
    %c0_1 = arith.constant 0 : index
    %c6 = arith.constant 6 : index
    %1 = vector.load %arg0[%c0_1, %c6] : memref<8x256xf32, #tpu.memory_space<vmem>>, vector<8x128xf32>
    %2 = arith.addf %0, %1 : vector<8x128xf32>
    %cst = arith.constant 0.036632847 : f32
    %3 = vector.broadcast %cst : f32 to vector<8x128xf32>
    %4 = arith.mulf %3, %2 : vector<8x128xf32>
    %c0_2 = arith.constant 0 : index
    %c1 = arith.constant 1 : index
    %5 = vector.load %arg0[%c0_2, %c1] : memref<8x256xf32, #tpu.memory_space<vmem>>, vector<8x128xf32>
    %c0_3 = arith.constant 0 : index
    %c5 = arith.constant 5 : index
    %6 = vector.load %arg0[%c0_3, %c5] : memref<8x256xf32, #tpu.memory_space<vmem>>, vector<8x128xf32>
    %7 = arith.addf %5, %6 : vector<8x128xf32>
    %cst_4 = arith.constant 0.111280762 : f32
    %8 = vector.broadcast %cst_4 : f32 to vector<8x128xf32>
    %9 = arith.mulf %8, %7 : vector<8x128xf32>
    %c0_5 = arith.constant 0 : index
    %c2 = arith.constant 2 : index
    %10 = vector.load %arg0[%c0_5, %c2] : memref<8x256xf32, #tpu.memory_space<vmem>>, vector<8x128xf32>
    %c0_6 = arith.constant 0 : index
    %c4 = arith.constant 4 : index
    %11 = vector.load %arg0[%c0_6, %c4] : memref<8x256xf32, #tpu.memory_space<vmem>>, vector<8x128xf32>
    %12 = arith.addf %10, %11 : vector<8x128xf32>
    %cst_7 = arith.constant 0.216745317 : f32
    %13 = vector.broadcast %cst_7 : f32 to vector<8x128xf32>
    %14 = arith.mulf %13, %12 : vector<8x128xf32>
    %c0_8 = arith.constant 0 : index
    %c3 = arith.constant 3 : index
    %15 = vector.load %arg0[%c0_8, %c3] : memref<8x256xf32, #tpu.memory_space<vmem>>, vector<8x128xf32>
    %cst_9 = arith.constant 0.270682156 : f32
    %16 = vector.broadcast %cst_9 : f32 to vector<8x128xf32>
    %17 = arith.mulf %16, %15 : vector<8x128xf32>
    %18 = arith.addf %4, %9 : vector<8x128xf32>
    %19 = arith.addf %14, %17 : vector<8x128xf32>
    %20 = arith.addf %18, %19 : vector<8x128xf32>
    %c0_10 = arith.constant 0 : index
    %c0_11 = arith.constant 0 : index
    %21 = vector.load %arg2[%c0_10, %c0_11] : memref<8x128xf32, #tpu.memory_space<vmem>>, vector<8x128xf32>
    tpu.vector_store %arg2[%c0_10, %c0_11], %20 {strides = array<i32>} : memref<8x128xf32, #tpu.memory_space<vmem>>, vector<8x128xf32>,
    %c0_12 = arith.constant 0 : index
    %c0_13 = arith.constant 0 : index
    %22 = vector.load %arg2[%c0_12, %c0_13] : memref<8x128xf32, #tpu.memory_space<vmem>>, vector<2x128xf32>
    %c6_14 = arith.constant 6 : index
    %c0_15 = arith.constant 0 : index
    %23 = vector.load %arg2[%c6_14, %c0_15] : memref<8x128xf32, #tpu.memory_space<vmem>>, vector<2x128xf32>
    %24 = arith.addf %22, %23 : vector<2x128xf32>
    %cst_16 = arith.constant 0.036632847 : f32
    %25 = vector.broadcast %cst_16 : f32 to vector<2x128xf32>
    %26 = arith.mulf %25, %24 : vector<2x128xf32>
    %c1_17 = arith.constant 1 : index
    %c0_18 = arith.constant 0 : index
    %27 = vector.load %arg2[%c1_17, %c0_18] : memref<8x128xf32, #tpu.memory_space<vmem>>, vector<2x128xf32>
    %c5_19 = arith.constant 5 : index
    %c0_20 = arith.constant 0 : index
    %28 = vector.load %arg2[%c5_19, %c0_20] : memref<8x128xf32, #tpu.memory_space<vmem>>, vector<2x128xf32>
    %29 = arith.addf %27, %28 : vector<2x128xf32>
    %cst_21 = arith.constant 0.111280762 : f32
    %30 = vector.broadcast %cst_21 : f32 to vector<2x128xf32>
    %31 = arith.mulf %30, %29 : vector<2x128xf32>
    %c2_22 = arith.constant 2 : index
    %c0_23 = arith.constant 0 : index
    %32 = vector.load %arg2[%c2_22, %c0_23] : memref<8x128xf32, #tpu.memory_space<vmem>>, vector<2x128xf32>
    %c4_24 = arith.constant 4 : index
    %c0_25 = arith.constant 0 : index
    %33 = vector.load %arg2[%c4_24, %c0_25] : memref<8x128xf32, #tpu.memory_space<vmem>>, vector<2x128xf32>
    %34 = arith.addf %32, %33 : vector<2x128xf32>
    %cst_26 = arith.constant 0.216745317 : f32
    %35 = vector.broadcast %cst_26 : f32 to vector<2x128xf32>
    %36 = arith.mulf %35, %34 : vector<2x128xf32>
    %c3_27 = arith.constant 3 : index
    %c0_28 = arith.constant 0 : index
    %37 = vector.load %arg2[%c3_27, %c0_28] : memref<8x128xf32, #tpu.memory_space<vmem>>, vector<2x128xf32>
    %cst_29 = arith.constant 0.270682156 : f32
    %38 = vector.broadcast %cst_29 : f32 to vector<2x128xf32>
    %39 = arith.mulf %38, %37 : vector<2x128xf32>
    %40 = arith.addf %26, %31 : vector<2x128xf32>
    %41 = arith.addf %36, %39 : vector<2x128xf32>
    %42 = arith.addf %40, %41 : vector<2x128xf32>
    %c0_30 = arith.constant 0 : index
    %c0_31 = arith.constant 0 : index
    %43 = vector.load %arg1[%c0_30, %c0_31] : memref<2x128xf32, #tpu.memory_space<vmem>>, vector<2x128xf32>
    tpu.vector_store %arg1[%c0_30, %c0_31], %42 {strides = array<i32>} : memref<2x128xf32, #tpu.memory_space<vmem>>, vector<2x128xf32>,
    return
  }
}

module attributes {stable_mosaic.version = 11 : i64} {
  func.func @_color_mse_kernel(%arg0: i32, %arg1: i32, %arg2: i32, %arg3: memref<2x9xf32, #tpu.memory_space<smem>>, %arg4: memref<1x3x40x128xbf16, #tpu.memory_space<vmem>>, %arg5: memref<1x3x40x128xbf16, #tpu.memory_space<vmem>>, %arg6: memref<1x1x40x128xbf16, #tpu.memory_space<vmem>>, %arg7: memref<1x1x3x128xf32, #tpu.memory_space<vmem>>, %arg8: memref<1x1x1x128xf32, #tpu.memory_space<vmem>>, %arg9: memref<3x40x128xf32, #tpu.memory_space<vmem>>, %arg10: memref<40x128xf32, #tpu.memory_space<vmem>>) attributes {dimension_semantics = [#tpu.dimension_semantics<parallel>, #tpu.dimension_semantics<parallel>, #tpu.dimension_semantics<arbitrary>], iteration_bounds = array<i64: 2, 2, 1>, scalar_prefetch = 0 : i64, scratch_operands = 2 : i64, tpu.core_type = #tpu.core_type<tc>, window_params = [{transform_indices = @transform_0, window_bounds = array<i64: 2, 9>}, {transform_indices = @transform_1, window_bounds = array<i64: 1, 3, 40, 128>}, {transform_indices = @transform_2, window_bounds = array<i64: 1, 3, 40, 128>}, {transform_indices = @transform_3, window_bounds = array<i64: 1, 1, 40, 128>}, {transform_indices = @transform_4, window_bounds = array<i64: 1, 1, 3, 128>}, {transform_indices = @transform_5, window_bounds = array<i64: 1, 1, 1, 128>}]} {
    %c0_i32 = arith.constant 0 : i32
    %0 = arith.cmpi eq, %arg2, %c0_i32 : i32
    %1 = arith.extui %0 : i1 to i32
    %c0_i32_0 = arith.constant 0 : i32
    %2 = arith.cmpi ne, %1, %c0_i32_0 : i32
    scf.if %2 {
      %cst = arith.constant 0.000000e+00 : f32
      %99 = vector.broadcast %cst : f32 to vector<3x40x128xf32>
      %c0_53 = arith.constant 0 : index
      %c0_54 = arith.constant 0 : index
      %c0_55 = arith.constant 0 : index
      %100 = vector.load %arg9[%c0_53, %c0_54, %c0_55] : memref<3x40x128xf32, #tpu.memory_space<vmem>>, vector<3x40x128xf32>
      tpu.vector_store %arg9[%c0_53, %c0_54, %c0_55], %99 {strides = array<i32>} : memref<3x40x128xf32, #tpu.memory_space<vmem>>, vector<3x40x128xf32>,
      %cst_56 = arith.constant 0.000000e+00 : f32
      %101 = vector.broadcast %cst_56 : f32 to vector<40x128xf32>
      %c0_57 = arith.constant 0 : index
      %c0_58 = arith.constant 0 : index
      %102 = vector.load %arg10[%c0_57, %c0_58] : memref<40x128xf32, #tpu.memory_space<vmem>>, vector<40x128xf32>
      tpu.vector_store %arg10[%c0_57, %c0_58], %101 {strides = array<i32>} : memref<40x128xf32, #tpu.memory_space<vmem>>, vector<40x128xf32>,
    } else {
    }
    %c0 = arith.constant 0 : index
    %c0_1 = arith.constant 0 : index
    %c0_2 = arith.constant 0 : index
    %c0_3 = arith.constant 0 : index
    %3 = vector.load %arg4[%c0, %c0_1, %c0_2, %c0_3] : memref<1x3x40x128xbf16, #tpu.memory_space<vmem>>, vector<1x1x40x128xbf16>
    %4 = vector.shape_cast %3 : vector<1x1x40x128xbf16> to vector<40x128xbf16>
    %5 = arith.extf %4 : vector<40x128xbf16> to vector<40x128xf32>
    %c0_4 = arith.constant 0 : index
    %c1 = arith.constant 1 : index
    %c0_5 = arith.constant 0 : index
    %c0_6 = arith.constant 0 : index
    %6 = vector.load %arg4[%c0_4, %c1, %c0_5, %c0_6] : memref<1x3x40x128xbf16, #tpu.memory_space<vmem>>, vector<1x1x40x128xbf16>
    %7 = vector.shape_cast %6 : vector<1x1x40x128xbf16> to vector<40x128xbf16>
    %8 = arith.extf %7 : vector<40x128xbf16> to vector<40x128xf32>
    %c0_7 = arith.constant 0 : index
    %c2 = arith.constant 2 : index
    %c0_8 = arith.constant 0 : index
    %c0_9 = arith.constant 0 : index
    %9 = vector.load %arg4[%c0_7, %c2, %c0_8, %c0_9] : memref<1x3x40x128xbf16, #tpu.memory_space<vmem>>, vector<1x1x40x128xbf16>
    %10 = vector.shape_cast %9 : vector<1x1x40x128xbf16> to vector<40x128xbf16>
    %11 = arith.extf %10 : vector<40x128xbf16> to vector<40x128xf32>
    %c0_10 = arith.constant 0 : index
    %c0_11 = arith.constant 0 : index
    %c0_12 = arith.constant 0 : index
    %c0_13 = arith.constant 0 : index
    %12 = vector.load %arg6[%c0_10, %c0_11, %c0_12, %c0_13] : memref<1x1x40x128xbf16, #tpu.memory_space<vmem>>, vector<1x1x40x128xbf16>
    %13 = vector.shape_cast %12 : vector<1x1x40x128xbf16> to vector<40x128xbf16>
    %14 = arith.extf %13 : vector<40x128xbf16> to vector<40x128xf32>
    %15 = arith.index_cast %arg1 : i32 to index
    %c0_14 = arith.constant 0 : index
    %16 = memref.load %arg3[%15, %c0_14] : memref<2x9xf32, #tpu.memory_space<smem>>
    %17 = vector.broadcast %16 : f32 to vector<40x128xf32>
    %18 = arith.mulf %17, %5 : vector<40x128xf32>
    %19 = arith.index_cast %arg1 : i32 to index
    %c1_15 = arith.constant 1 : index
    %20 = memref.load %arg3[%19, %c1_15] : memref<2x9xf32, #tpu.memory_space<smem>>
    %21 = vector.broadcast %20 : f32 to vector<40x128xf32>
    %22 = arith.mulf %21, %8 : vector<40x128xf32>
    %23 = arith.addf %18, %22 : vector<40x128xf32>
    %24 = arith.index_cast %arg1 : i32 to index
    %c2_16 = arith.constant 2 : index
    %25 = memref.load %arg3[%24, %c2_16] : memref<2x9xf32, #tpu.memory_space<smem>>
    %26 = vector.broadcast %25 : f32 to vector<40x128xf32>
    %27 = arith.mulf %26, %11 : vector<40x128xf32>
    %28 = arith.addf %23, %27 : vector<40x128xf32>
    %c0_17 = arith.constant 0 : index
    %c0_18 = arith.constant 0 : index
    %c0_19 = arith.constant 0 : index
    %c0_20 = arith.constant 0 : index
    %29 = vector.load %arg5[%c0_17, %c0_18, %c0_19, %c0_20] : memref<1x3x40x128xbf16, #tpu.memory_space<vmem>>, vector<1x1x40x128xbf16>
    %30 = vector.shape_cast %29 : vector<1x1x40x128xbf16> to vector<40x128xbf16>
    %31 = arith.extf %30 : vector<40x128xbf16> to vector<40x128xf32>
    %32 = arith.subf %28, %31 : vector<40x128xf32>
    %c0_21 = arith.constant 0 : index
    %c0_22 = arith.constant 0 : index
    %c0_23 = arith.constant 0 : index
    %33 = vector.load %arg9[%c0_21, %c0_22, %c0_23] : memref<3x40x128xf32, #tpu.memory_space<vmem>>, vector<1x40x128xf32>
    %34 = vector.shape_cast %33 : vector<1x40x128xf32> to vector<40x128xf32>
    %35 = arith.mulf %32, %32 : vector<40x128xf32>
    %36 = arith.mulf %35, %14 : vector<40x128xf32>
    %37 = arith.addf %34, %36 : vector<40x128xf32>
    %c0_24 = arith.constant 0 : index
    %c0_25 = arith.constant 0 : index
    %c0_26 = arith.constant 0 : index
    %38 = vector.load %arg9[%c0_24, %c0_25, %c0_26] : memref<3x40x128xf32, #tpu.memory_space<vmem>>, vector<1x40x128xf32>
    %39 = vector.shape_cast %38 : vector<1x40x128xf32> to vector<40x128xf32>
    %40 = vector.shape_cast %37 : vector<40x128xf32> to vector<1x40x128xf32>
    tpu.vector_store %arg9[%c0_24, %c0_25, %c0_26], %40 {strides = array<i32>} : memref<3x40x128xf32, #tpu.memory_space<vmem>>, vector<1x40x128xf32>,
    %41 = arith.index_cast %arg1 : i32 to index
    %c3 = arith.constant 3 : index
    %42 = memref.load %arg3[%41, %c3] : memref<2x9xf32, #tpu.memory_space<smem>>
    %43 = vector.broadcast %42 : f32 to vector<40x128xf32>
    %44 = arith.mulf %43, %5 : vector<40x128xf32>
    %45 = arith.index_cast %arg1 : i32 to index
    %c4 = arith.constant 4 : index
    %46 = memref.load %arg3[%45, %c4] : memref<2x9xf32, #tpu.memory_space<smem>>
    %47 = vector.broadcast %46 : f32 to vector<40x128xf32>
    %48 = arith.mulf %47, %8 : vector<40x128xf32>
    %49 = arith.addf %44, %48 : vector<40x128xf32>
    %50 = arith.index_cast %arg1 : i32 to index
    %c5 = arith.constant 5 : index
    %51 = memref.load %arg3[%50, %c5] : memref<2x9xf32, #tpu.memory_space<smem>>
    %52 = vector.broadcast %51 : f32 to vector<40x128xf32>
    %53 = arith.mulf %52, %11 : vector<40x128xf32>
    %54 = arith.addf %49, %53 : vector<40x128xf32>
    %c0_27 = arith.constant 0 : index
    %c1_28 = arith.constant 1 : index
    %c0_29 = arith.constant 0 : index
    %c0_30 = arith.constant 0 : index
    %55 = vector.load %arg5[%c0_27, %c1_28, %c0_29, %c0_30] : memref<1x3x40x128xbf16, #tpu.memory_space<vmem>>, vector<1x1x40x128xbf16>
    %56 = vector.shape_cast %55 : vector<1x1x40x128xbf16> to vector<40x128xbf16>
    %57 = arith.extf %56 : vector<40x128xbf16> to vector<40x128xf32>
    %58 = arith.subf %54, %57 : vector<40x128xf32>
    %c1_31 = arith.constant 1 : index
    %c0_32 = arith.constant 0 : index
    %c0_33 = arith.constant 0 : index
    %59 = vector.load %arg9[%c1_31, %c0_32, %c0_33] : memref<3x40x128xf32, #tpu.memory_space<vmem>>, vector<1x40x128xf32>
    %60 = vector.shape_cast %59 : vector<1x40x128xf32> to vector<40x128xf32>
    %61 = arith.mulf %58, %58 : vector<40x128xf32>
    %62 = arith.mulf %61, %14 : vector<40x128xf32>
    %63 = arith.addf %60, %62 : vector<40x128xf32>
    %c1_34 = arith.constant 1 : index
    %c0_35 = arith.constant 0 : index
    %c0_36 = arith.constant 0 : index
    %64 = vector.load %arg9[%c1_34, %c0_35, %c0_36] : memref<3x40x128xf32, #tpu.memory_space<vmem>>, vector<1x40x128xf32>
    %65 = vector.shape_cast %64 : vector<1x40x128xf32> to vector<40x128xf32>
    %66 = vector.shape_cast %63 : vector<40x128xf32> to vector<1x40x128xf32>
    tpu.vector_store %arg9[%c1_34, %c0_35, %c0_36], %66 {strides = array<i32>} : memref<3x40x128xf32, #tpu.memory_space<vmem>>, vector<1x40x128xf32>,
    %67 = arith.index_cast %arg1 : i32 to index
    %c6 = arith.constant 6 : index
    %68 = memref.load %arg3[%67, %c6] : memref<2x9xf32, #tpu.memory_space<smem>>
    %69 = vector.broadcast %68 : f32 to vector<40x128xf32>
    %70 = arith.mulf %69, %5 : vector<40x128xf32>
    %71 = arith.index_cast %arg1 : i32 to index
    %c7 = arith.constant 7 : index
    %72 = memref.load %arg3[%71, %c7] : memref<2x9xf32, #tpu.memory_space<smem>>
    %73 = vector.broadcast %72 : f32 to vector<40x128xf32>
    %74 = arith.mulf %73, %8 : vector<40x128xf32>
    %75 = arith.addf %70, %74 : vector<40x128xf32>
    %76 = arith.index_cast %arg1 : i32 to index
    %c8 = arith.constant 8 : index
    %77 = memref.load %arg3[%76, %c8] : memref<2x9xf32, #tpu.memory_space<smem>>
    %78 = vector.broadcast %77 : f32 to vector<40x128xf32>
    %79 = arith.mulf %78, %11 : vector<40x128xf32>
    %80 = arith.addf %75, %79 : vector<40x128xf32>
    %c0_37 = arith.constant 0 : index
    %c2_38 = arith.constant 2 : index
    %c0_39 = arith.constant 0 : index
    %c0_40 = arith.constant 0 : index
    %81 = vector.load %arg5[%c0_37, %c2_38, %c0_39, %c0_40] : memref<1x3x40x128xbf16, #tpu.memory_space<vmem>>, vector<1x1x40x128xbf16>
    %82 = vector.shape_cast %81 : vector<1x1x40x128xbf16> to vector<40x128xbf16>
    %83 = arith.extf %82 : vector<40x128xbf16> to vector<40x128xf32>
    %84 = arith.subf %80, %83 : vector<40x128xf32>
    %c2_41 = arith.constant 2 : index
    %c0_42 = arith.constant 0 : index
    %c0_43 = arith.constant 0 : index
    %85 = vector.load %arg9[%c2_41, %c0_42, %c0_43] : memref<3x40x128xf32, #tpu.memory_space<vmem>>, vector<1x40x128xf32>
    %86 = vector.shape_cast %85 : vector<1x40x128xf32> to vector<40x128xf32>
    %87 = arith.mulf %84, %84 : vector<40x128xf32>
    %88 = arith.mulf %87, %14 : vector<40x128xf32>
    %89 = arith.addf %86, %88 : vector<40x128xf32>
    %c2_44 = arith.constant 2 : index
    %c0_45 = arith.constant 0 : index
    %c0_46 = arith.constant 0 : index
    %90 = vector.load %arg9[%c2_44, %c0_45, %c0_46] : memref<3x40x128xf32, #tpu.memory_space<vmem>>, vector<1x40x128xf32>
    %91 = vector.shape_cast %90 : vector<1x40x128xf32> to vector<40x128xf32>
    %92 = vector.shape_cast %89 : vector<40x128xf32> to vector<1x40x128xf32>
    tpu.vector_store %arg9[%c2_44, %c0_45, %c0_46], %92 {strides = array<i32>} : memref<3x40x128xf32, #tpu.memory_space<vmem>>, vector<1x40x128xf32>,
    %c0_47 = arith.constant 0 : index
    %c0_48 = arith.constant 0 : index
    %93 = vector.load %arg10[%c0_47, %c0_48] : memref<40x128xf32, #tpu.memory_space<vmem>>, vector<40x128xf32>
    %94 = arith.addf %93, %14 : vector<40x128xf32>
    %c0_49 = arith.constant 0 : index
    %c0_50 = arith.constant 0 : index
    %95 = vector.load %arg10[%c0_49, %c0_50] : memref<40x128xf32, #tpu.memory_space<vmem>>, vector<40x128xf32>
    tpu.vector_store %arg10[%c0_49, %c0_50], %94 {strides = array<i32>} : memref<40x128xf32, #tpu.memory_space<vmem>>, vector<40x128xf32>,
    %c0_i32_51 = arith.constant 0 : i32
    %96 = arith.cmpi eq, %arg2, %c0_i32_51 : i32
    %97 = arith.extui %96 : i1 to i32
    %c0_i32_52 = arith.constant 0 : i32
    %98 = arith.cmpi ne, %97, %c0_i32_52 : i32
    scf.if %98 {
      %c0_53 = arith.constant 0 : index
      %c0_54 = arith.constant 0 : index
      %c0_55 = arith.constant 0 : index
      %99 = vector.load %arg9[%c0_53, %c0_54, %c0_55] : memref<3x40x128xf32, #tpu.memory_space<vmem>>, vector<3x40x128xf32>
      %cst = arith.constant dense<0.000000e+00> : vector<3x128xf32>
      %100 = vector.multi_reduction <add>, %99, %cst [1] : vector<3x40x128xf32> to vector<3x128xf32>
      %c0_56 = arith.constant 0 : index
      %c0_57 = arith.constant 0 : index
      %c0_58 = arith.constant 0 : index
      %c0_59 = arith.constant 0 : index
      %101 = vector.load %arg7[%c0_56, %c0_57, %c0_58, %c0_59] : memref<1x1x3x128xf32, #tpu.memory_space<vmem>>, vector<1x1x3x128xf32>
      %102 = vector.shape_cast %101 : vector<1x1x3x128xf32> to vector<3x128xf32>
      %103 = vector.shape_cast %100 : vector<3x128xf32> to vector<1x1x3x128xf32>
      tpu.vector_store %arg7[%c0_56, %c0_57, %c0_58, %c0_59], %103 {strides = array<i32>} : memref<1x1x3x128xf32, #tpu.memory_space<vmem>>, vector<1x1x3x128xf32>,
      %c0_60 = arith.constant 0 : index
      %c0_61 = arith.constant 0 : index
      %104 = vector.load %arg10[%c0_60, %c0_61] : memref<40x128xf32, #tpu.memory_space<vmem>>, vector<40x128xf32>
      %cst_62 = arith.constant dense<0.000000e+00> : vector<128xf32>
      %105 = vector.multi_reduction <add>, %104, %cst_62 [0] : vector<40x128xf32> to vector<128xf32>
      %106 = vector.shape_cast %105 : vector<128xf32> to vector<1x128xf32>
      %c0_63 = arith.constant 0 : index
      %c0_64 = arith.constant 0 : index
      %c0_65 = arith.constant 0 : index
      %c0_66 = arith.constant 0 : index
      %107 = vector.load %arg8[%c0_63, %c0_64, %c0_65, %c0_66] : memref<1x1x1x128xf32, #tpu.memory_space<vmem>>, vector<1x1x1x128xf32>
      %108 = vector.shape_cast %107 : vector<1x1x1x128xf32> to vector<1x128xf32>
      %109 = vector.shape_cast %106 : vector<1x128xf32> to vector<1x1x1x128xf32>
      tpu.vector_store %arg8[%c0_63, %c0_64, %c0_65, %c0_66], %109 {strides = array<i32>} : memref<1x1x1x128xf32, #tpu.memory_space<vmem>>, vector<1x1x1x128xf32>,
    } else {
    }
    return
  }
  func.func @transform_0(%arg0: i32, %arg1: i32, %arg2: i32) -> (i32, i32) {
    %c0_i32 = arith.constant 0 : i32
    %c0_i32_0 = arith.constant 0 : i32
    %c0_i32_1 = arith.constant 0 : i32
    return %c0_i32, %c0_i32_0 : i32, i32
  }
  func.func @transform_1(%arg0: i32, %arg1: i32, %arg2: i32) -> (i32, i32, i32, i32) {
    %c1_i32 = arith.constant 1 : i32
    %0 = arith.muli %arg0, %c1_i32 : i32
    %1 = arith.addi %0, %arg2 : i32
    %c0_i32 = arith.constant 0 : i32
    %c0_i32_0 = arith.constant 0 : i32
    %c0_i32_1 = arith.constant 0 : i32
    return %arg1, %c0_i32, %1, %c0_i32_0 : i32, i32, i32, i32
  }
  func.func @transform_2(%arg0: i32, %arg1: i32, %arg2: i32) -> (i32, i32, i32, i32) {
    %c1_i32 = arith.constant 1 : i32
    %0 = arith.muli %arg0, %c1_i32 : i32
    %1 = arith.addi %0, %arg2 : i32
    %c0_i32 = arith.constant 0 : i32
    %c0_i32_0 = arith.constant 0 : i32
    %c0_i32_1 = arith.constant 0 : i32
    return %arg1, %c0_i32, %1, %c0_i32_0 : i32, i32, i32, i32
  }
  func.func @transform_3(%arg0: i32, %arg1: i32, %arg2: i32) -> (i32, i32, i32, i32) {
    %c1_i32 = arith.constant 1 : i32
    %0 = arith.muli %arg0, %c1_i32 : i32
    %1 = arith.addi %0, %arg2 : i32
    %c0_i32 = arith.constant 0 : i32
    %c0_i32_0 = arith.constant 0 : i32
    %c0_i32_1 = arith.constant 0 : i32
    return %arg1, %c0_i32, %1, %c0_i32_0 : i32, i32, i32, i32
  }
  func.func @transform_4(%arg0: i32, %arg1: i32, %arg2: i32) -> (i32, i32, i32, i32) {
    %c0_i32 = arith.constant 0 : i32
    %c0_i32_0 = arith.constant 0 : i32
    %c0_i32_1 = arith.constant 0 : i32
    return %arg0, %arg1, %c0_i32, %c0_i32_0 : i32, i32, i32, i32
  }
  func.func @transform_5(%arg0: i32, %arg1: i32, %arg2: i32) -> (i32, i32, i32, i32) {
    %c0_i32 = arith.constant 0 : i32
    %c0_i32_0 = arith.constant 0 : i32
    %c0_i32_1 = arith.constant 0 : i32
    return %arg0, %arg1, %c0_i32, %c0_i32_0 : i32, i32, i32, i32
  }
}

</mosaic_0001>

<llo_original>
// kernel: custom-call.35
$region0: #{custom-call.35}
  %s0 = inlined_call_operand.vmem [shape: f32[2,4,3], index: 0, kind: input, shape index: {}]
  %s1 = inlined_call_operand.vmem [shape: f32[2,4,3], index: 1, kind: output, shape index: {0}]
  %s2 = inlined_call_operand.vmem [shape: f32[2,3], index: 2, kind: output, shape index: {1}]
  %3 = xla_tuple %s1, %s2
  $region1: #{custom-call.35} parent=0
    #allocation0 [shape = 'u8[4096]{0}', space=vmem, size = 0x1000, scoped, tag = 'operand span for operand 0']
    #allocation1 [shape = 'u8[4096]{0}', space=vmem, size = 0x1000, scoped, tag = 'packed  for operand 0']
    #allocation2 [shape = 'u8[4096]{0}', space=vmem, size = 0x1000, scoped, tag = 'operand span for operand 1']
    #allocation3 [shape = 'u8[4096]{0}', space=vmem, size = 0x1000, scoped, tag = 'packed  for operand 1']
    #allocation4 [shape = 'u8[4096]{0}', space=vmem, size = 0x1000, scoped, tag = 'operand span for operand 2']
    #allocation5 [shape = 'u8[2048]{0}', space=vmem, size = 0x800, scoped, tag = 'packed  for operand 2']
    loop: start=0, step=1, limit=4
    $region2: #{custom-call.35} parent=1 // loop_pre_header
      _
    $region3: #{custom-call.35} parent=1 // loop_header
      %s5 = sphi 0, %s9
      %p6 = scmp.ge.s32.totalorder %s5, 4
      %s12 = sphi 0, %s31
      %s13 = sphi 0, %s27
      %s14 = sphi 0, %s23
      %s15 = sphi 0, %s12
      %s16 = sphi 0, %s13
      %s17 = sphi 0, %s14
      %s18 = sphi 0, %s15
      %s19 = sphi 0, %s16
      %s20 = sphi 0, %s17
      %s46 = sphi 0, %s48
      %s49 = sphi 0, %s46
      %s50 = sphi 0, %s49
      %s66 = sphi 0, %s50
    $region4: #{custom-call.35} parent=1 // loop_header_branch
      %8 = sbr.rel (%p6) target = $region8
    $region5: #{custom-call.35} parent=1 // loop_body
      %s10 = ssub.s32 %s5, 1
      %s11 = ssub.s32 %s5, 2
      %s21 = sadd.s32 1, %s14
      %p22 = scmp.ge.s32.totalorder %s21, 1
      %s23 = scalar_select %p22, 0, %s21
      %s24 = sadd.s32 1, %s13
      %s25 = scalar_select %p22, %s24, %s13
      %p26 = scmp.ge.s32.totalorder %s25, 1
      %s27 = scalar_select %p26, 0, %s25
      %s28 = sadd.s32 1, %s12
      %s29 = scalar_select %p26, %s28, %s12
      %p30 = scmp.ge.s32.totalorder %s29, 2
      %s31 = scalar_select %p30, 0, %s29
      %p32 = scmp.lt.s32.totalorder %s12, 0
      %s33 = ssub.s32 0, %s12
      %s34 = scalar_select %p32, %s33, %s12
      %s35 = sshrl.u32 %s34, 3
      %s36 = ssub.s32 0, %s35
      %s37 = scalar_select %p32, %s36, %s35
      %p38 = scmp.lt.s32.totalorder %s31, 0
      %s39 = ssub.s32 0, %s31
      %s40 = scalar_select %p38, %s39, %s31
      %s41 = sshrl.u32 %s40, 3
      %s42 = ssub.s32 0, %s41
      %s43 = scalar_select %p38, %s42, %s41
      %s44 = ssub.s32 %s37, %s43
      %p45 = scmp.eq.s32.totalorder %s44, 0
      %s47 = sadd.s32 %s46, 1
      %s48 = scalar_select %p45, %s46, %s47
      %p51 = pneg %p45
      %p52 = scmp.eq.s32.totalorder %s5, 1
      %p53 = por %p51, %p52
      %p54 = scmp.ne.s32.totalorder %s46, %s49
      %p55 = scmp.eq.s32.totalorder %s5, 0
      %p56 = por %p54, %p55
      %p57 = scmp.ne.s32.totalorder %s46, %s49
      %p58 = scmp.eq.s32.totalorder %s10, 1
      %p59 = por %p57, %p58
      %p60 = scmp.ne.s32.totalorder %s49, %s50
      %p61 = scmp.eq.s32.totalorder %s10, 0
      %p62 = por %p60, %p61
      %p63 = scmp.ne.s32.totalorder %s49, %s50
      %p64 = scmp.eq.s32.totalorder %s11, 1
      %p65 = por %p63, %p64
      %p67 = scmp.ne.s32.totalorder %s50, %s66
      %p68 = scmp.eq.s32.totalorder %s11, 0
      %p69 = por %p67, %p68
      %p70 = scmp.le.s32.totalorder 1, %s5
      %p71 = scmp.lt.s32.totalorder %s5, 3
      %p72 = pnand %p70, %p71
      %p73 = pneg %p72
      // Predicated region
      $region9: #{custom-call.35} parent=5 // pred_check
        _
      $region10: #{custom-call.35} parent=5 // pred_check_branch
        %75 = sbr.rel (%p72) target = $region12
      $region11: #{custom-call.35} parent=5 // pred_region
        %s76 = ssub.s32 %s5, 1
      $region12: #{custom-call.35} parent=5 // pred_fallthru
        _
      %p77 = scmp.lt.s32.totalorder %s5, 2
      // Predicated region
      $region13: #{custom-call.35} parent=5 // pred_check
        %p78 = pneg %p77
      $region14: #{custom-call.35} parent=5 // pred_check_branch
        %80 = sbr.rel (%p78) target = $region16
      $region15: #{custom-call.35} parent=5 // pred_region
        %s81 = sand.u32 %s5, 1
        %s82 = sand.u32 %s5, 1
        %s83 = smul.addr %s82, 4
        %s84 = scalar_lea.vmem [#allocation1], %s83
        %s85 = sadd.s32 %s14, %s13
        %s86 = sadd.s32 %s85, %s12
        %s87 = smul.addr %s86, 4
        %s88 = scalar_lea.vmem %s0, %s87
        // Predicated region
        $region17: #{custom-call.35} parent=15 // pred_check
          _
        $region18: #{custom-call.35} parent=15 // pred_check_branch
          %90 = sbr.rel (0) target = $region20
        $region19: #{custom-call.35} parent=15 // pred_region
          // Predicated region
          $region21: #{custom-call.35} parent=19 // pred_check
            _
          $region22: #{custom-call.35} parent=19 // pred_check_branch
            %92 = sbr.rel target = $region24
          $region23: #{custom-call.35} parent=19 // pred_region
            // Predicated region
            $region36: #{custom-call.35} parent=23 // pred_check
              _
            $region37: #{custom-call.35} parent=23 // pred_check_branch
              %108 = sbr.rel (0) target = $region39
            $region38: #{custom-call.35} parent=23 // pred_region
              %s110 = ssub.s32 16, 1
              loop: start=0, step=1, limit=1
              $region40: #{custom-call.35} parent=38 // loop_pre_header
                _
              $region41: #{custom-call.35} parent=38 // loop_header
                %s112 = sphi 0, %s116
                %p113 = scmp.ge.s32.totalorder %s112, 1
                %s117 = sphi %s88, %s88
                %s118 = sphi %s84, %s84
              $region42: #{custom-call.35} parent=38 // loop_header_branch
                %115 = sbr.rel (%p113) target = $region46
              $region43: #{custom-call.35} parent=38 // loop_body
                %v119 = vld [vmem:[%s117] sm:%s110]
                %120 = vst [vmem:[%s118] sm:%s110] %v119
              $region44: #{custom-call.35} parent=38 // loop_footer
                %s116 = sadd.s32 1, %s112
              $region45: #{custom-call.35} parent=38 // loop_footer_branch
                %111 = sbr.rel target = $region41
              $region46: #{custom-call.35} parent=38 // loop_exit
                _
            $region39: #{custom-call.35} parent=23 // pred_fallthru
              _
          $region24: #{custom-call.35} parent=19 // pred_fallthru
            _
          // Predicated region
          $region25: #{custom-call.35} parent=19 // pred_check
            _
          $region26: #{custom-call.35} parent=19 // pred_check_branch
            %94 = sbr.rel (0) target = $region28
          $region27: #{custom-call.35} parent=19 // pred_region
            %s96 = ssub.s32 16, 1
            loop: start=0, step=1, limit=1
            $region29: #{custom-call.35} parent=27 // loop_pre_header
              _
            $region30: #{custom-call.35} parent=27 // loop_header
              %s98 = sphi 0, %s102
              %p99 = scmp.ge.s32.totalorder %s98, 1
              %s103 = sphi %s88, %s88
              %s104 = sphi %s84, %s84
            $region31: #{custom-call.35} parent=27 // loop_header_branch
              %101 = sbr.rel (%p99) target = $region35
            $region32: #{custom-call.35} parent=27 // loop_body
              %v105 = vld [vmem:[%s103] sm:%s96]
              %106 = vst [vmem:[%s104] sm:%s96] %v105
            $region33: #{custom-call.35} parent=27 // loop_footer
              %s102 = sadd.s32 1, %s98
            $region34: #{custom-call.35} parent=27 // loop_footer_branch
              %97 = sbr.rel target = $region30
            $region35: #{custom-call.35} parent=27 // loop_exit
              _
          $region28: #{custom-call.35} parent=19 // pred_fallthru
            _
        $region20: #{custom-call.35} parent=15 // pred_fallthru
          _
        %121 = vnop
      $region16: #{custom-call.35} parent=5 // pred_fallthru
        _
      %p122 = scmp.le.s32.totalorder 1, %s5
      %p123 = scmp.lt.s32.totalorder %s5, 3
      %p124 = pnand %p122, %p123
      %p125 = pneg %p124
      // Predicated region
      $region47: #{custom-call.35} parent=5 // pred_check
        _
      $region48: #{custom-call.35} parent=5 // pred_check_branch
        %127 = sbr.rel (%p124) target = $region50
      $region49: #{custom-call.35} parent=5 // pred_region
        #allocation6 [shape = 'f32[4,128]{1,0}', space=vmem, size = 0x1000, scoped, tag = 'scratch for Householder reflectors']
        %s128 = ssub.s32 %s5, 1
        %s129 = sand.u32 %s10, 1
        %s130 = sand.u32 %s10, 1
        %s131 = smul.addr %s130, 4
        %s132 = scalar_lea.vmem [#allocation1], %s131
        %s133 = sand.u32 %s10, 1
        %s134 = sand.u32 %s10, 1
        %s135 = smul.addr %s134, 4
        %s136 = scalar_lea.vmem [#allocation1], %s135
        %s137 = sand.u32 %s10, 1
        %s138 = sand.u32 %s10, 1
        %s139 = smul.addr %s138, 4
        %s140 = scalar_lea.vmem [#allocation3], %s139
        %p141 = pneg %p62
        %p142 = pneg %p59
        %s143 = sand.u32 %s49, 1
        %s144 = sand.u32 %s49, 1
        %s145 = smul.addr %s144, 2
        %s146 = scalar_lea.vmem [#allocation5], %s145
        %s148 = ssub.s32 16, 1
        %v149 = vld [vmem:[%s136] sm:%s148]
        %150 = vst [vmem:[#allocation0] sm:%s148] %v149
        %p151 = scmp.lt.s32.totalorder %s15, 0
        %s152 = ssub.s32 0, %s15
        %s153 = scalar_select %p151, %s152, %s15
        %s154 = sshrl.u32 %s153, 3
        %s155 = ssub.s32 0, %s154
        %s156 = scalar_select %p151, %s155, %s154
        %s157 = sand.u32 %s15, 7
        %s158 = scalar_lea.vmem [#allocation4], %s157
        %v159 = vld [vmem:[#allocation0] sm:$0xff]
        %160 = vst [vmem:[#allocation2] sm:$0xff] %v159
        %161 = vst [vmem:[%s158] sm:$0x1] 0.0
        loop: start=0, step=1, limit=3
        $region51: #{custom-call.35} parent=49 // loop_pre_header
          _
        $region52: #{custom-call.35} parent=49 // loop_header
          %s163 = sphi 0, %s167
          %p164 = scmp.ge.s32.totalorder %s163, 3
        $region53: #{custom-call.35} parent=49 // loop_header_branch
          %166 = sbr.rel (%p164) target = $region57
        $region54: #{custom-call.35} parent=49 // loop_body
          %v168 = vld [vmem:[#allocation2] sm:$0xff]
          %v169 = vlaneseq
          %v170 = vshrl.u32 %v169, 7
          %v172 = vstv %s163
          %vm173 = vcmp.gt.s32.totalorder %v170, %v172
          %vm174 = vcmp.lt.s32.totalorder %v170, 4
          %vm175 = vmand %vm173, %vm174
          %v176 = vsel %vm175, %v168, 0.0
          %v177 = vmul.f32 %v176, %v176
          %v178 = vrot.slane %v177, 4
          %v179 = vadd.f32 %v177, %v178
          %v180 = vrot.slane %v179, 2
          %v181 = vadd.f32 %v179, %v180
          %v182 = vrot.slane %v181, 1
          %v183 = vadd.f32 %v181, %v182
          %v184 = vrsqrt.pop %v183
          %v185 = vmul.f32 %v184, %v183
          %v186 = vmul.f32 %v185, %v184
          %v187 = vmul.f32 0.5, %v186
          %v188 = vsub.f32 1.5, %v187
          %v189 = vmul.f32 %v184, %v188
          %v190 = vmul.f32 %v183, %v189
          %vm191 = vcmp.eq.f32.partialorder %v183, inf
          %v192 = vsel %vm191, %v183, %v190
          %vm193 = vcmp.eq.f32.partialorder %v183, 0.0
          %v194 = vand.u32 %v183, 2147483648
          %v195 = vsel %vm193, %v194, %v192
          %vm196 = vcmp.eq.f32.partialorder %v183, 0.0
          %s197 = sshrl.u32 %s163, 3
          %s198 = sand.u32 %s163, 7
          %s199 = smul.addr %s197, 8
          %s200 = sadd.s32 %s198, %s199
          %s201 = scalar_lea.vmem [#allocation2], %s200
          %v202 = vld [vmem:[%s201] ss:$0 sm:$0xff]
          %v203 = vand.u32 2147483647, %v202
          %v204 = vmax.f32 %v203, 0.0
          %v205 = vand.u32 2147483647, %v195
          %v206 = vmax.f32 %v204, %v205
          %v207 = vrcp.pop %v206
          %v208 = vmul.f32 %v206, %v207
          %v209 = vsub.f32 1.0, %v208
          %v210 = vmul.f32 %v207, %v209
          %v211 = vadd.f32 %v207, %v210
          %vm212 = vweird.f32 %v206
          %vm213 = vweird.f32 %v207
          %vm214 = vmor %vm212, %vm213
          %v215 = vsel %vm214, %v207, %v211
          %v216 = vand.u32 2147483647, %v206
          %vm217 = vcmp.eq.f32.partialorder %v216, 8.507059e+37
          %v218 = vand.u32 %v206, 2147483648
          %v219 = vor.u32 1.1754944e-38, %v218
          %v220 = vsel %vm217, %v219, %v215
          %v221 = vmul.f32 %v203, %v220
          %v222 = vmul.f32 %v221, %v221
          %v223 = vrcp.pop %v206
          %v224 = vmul.f32 %v206, %v223
          %v225 = vsub.f32 1.0, %v224
          %v226 = vmul.f32 %v223, %v225
          %v227 = vadd.f32 %v223, %v226
          %vm228 = vweird.f32 %v206
          %vm229 = vweird.f32 %v223
          %vm230 = vmor %vm228, %vm229
          %v231 = vsel %vm230, %v223, %v227
          %v232 = vand.u32 2147483647, %v206
          %vm233 = vcmp.eq.f32.partialorder %v232, 8.507059e+37
          %v234 = vand.u32 %v206, 2147483648
          %v235 = vor.u32 1.1754944e-38, %v234
          %v236 = vsel %vm233, %v235, %v231
          %v237 = vmul.f32 0.0, %v236
          %v238 = vmul.f32 %v237, %v237
          %v239 = vadd.f32 %v222, %v238
          %v240 = vrcp.pop %v206
          %v241 = vmul.f32 %v206, %v240
          %v242 = vsub.f32 1.0, %v241
          %v243 = vmul.f32 %v240, %v242
          %v244 = vadd.f32 %v240, %v243
          %vm245 = vweird.f32 %v206
          %vm246 = vweird.f32 %v240
          %vm247 = vmor %vm245, %vm246
          %v248 = vsel %vm247, %v240, %v244
          %v249 = vand.u32 2147483647, %v206
          %vm250 = vcmp.eq.f32.partialorder %v249, 8.507059e+37
          %v251 = vand.u32 %v206, 2147483648
          %v252 = vor.u32 1.1754944e-38, %v251
          %v253 = vsel %vm250, %v252, %v248
          %v254 = vmul.f32 %v205, %v253
          %v255 = vmul.f32 %v254, %v254
          %v256 = vadd.f32 %v239, %v255
          %vm257 = vcmp.eq.f32.partialorder %v206, 0.0
          %v258 = vrsqrt.pop %v256
          %v259 = vmul.f32 %v258, %v256
          %v260 = vmul.f32 %v259, %v258
          %v261 = vmul.f32 0.5, %v260
          %v262 = vsub.f32 1.5, %v261
          %v263 = vmul.f32 %v258, %v262
          %v264 = vmul.f32 %v256, %v263
          %vm265 = vcmp.eq.f32.partialorder %v256, inf
          %v266 = vsel %vm265, %v256, %v264
          %vm267 = vcmp.eq.f32.partialorder %v256, 0.0
          %v268 = vand.u32 %v256, 2147483648
          %v269 = vsel %vm267, %v268, %v266
          %v270 = vmul.f32 %v206, %v269
          %v271 = vsel %vm257, 0.0, %v270
          %vm272 = vcmp.lt.f32.partialorder %v202, 0.0
          %v273 = vxor.u32 %v271, 2147483648
          %v274 = vsel %vm272, %v271, %v273
          %v275 = vsub.f32 %v274, %v202
          %v276 = vrcp.pop %v274
          %v277 = vmul.f32 %v274, %v276
          %v278 = vsub.f32 1.0, %v277
          %v279 = vmul.f32 %v276, %v278
          %v280 = vadd.f32 %v276, %v279
          %vm281 = vweird.f32 %v274
          %vm282 = vweird.f32 %v276
          %vm283 = vmor %vm281, %vm282
          %v284 = vsel %vm283, %v276, %v280
          %v285 = vand.u32 2147483647, %v274
          %vm286 = vcmp.eq.f32.partialorder %v285, 8.507059e+37
          %v287 = vand.u32 %v274, 2147483648
          %v288 = vor.u32 1.1754944e-38, %v287
          %v289 = vsel %vm286, %v288, %v284
          %v290 = vmul.f32 %v275, %v289
          %v291 = vsel %vm196, %v202, %v274
          %v292 = vsel %vm196, 0.0, %v290
          %v293 = vsub.f32 %v202, %v291
          %s294 = smov [#allocation2]
          %v295 = vlaneseq
          %v296 = vshrl.u32 %v295, 7
          %v297 = vmov %v296
          %v298 = vld [vmem:[%s294] sm:$0xff]
          %v300 = vstv %s163
          %vm301 = vcmp.gt.s32.totalorder %v297, %v300
          %vm302 = vcmp.lt.s32.totalorder %v297, 4
          %vm303 = vmand %vm301, %vm302
          %v304 = vsel %vm303, %v298, 0.0
          %v305 = vrcp.pop %v293
          %v306 = vmul.f32 %v293, %v305
          %v307 = vsub.f32 1.0, %v306
          %v308 = vmul.f32 %v305, %v307
          %v309 = vadd.f32 %v305, %v308
          %vm310 = vweird.f32 %v293
          %vm311 = vweird.f32 %v305
          %vm312 = vmor %vm310, %vm311
          %v313 = vsel %vm312, %v305, %v309
          %v314 = vand.u32 2147483647, %v293
          %vm315 = vcmp.eq.f32.partialorder %v314, 8.507059e+37
          %v316 = vand.u32 %v293, 2147483648
          %v317 = vor.u32 1.1754944e-38, %v316
          %v318 = vsel %vm315, %v317, %v313
          %v319 = vmul.f32 %v304, %v318
          %v320 = vsel %vm196, 0.0, %v319
          %v321 = vstv %s163
          %v322 = vlaneseq
          %v323 = vand.u32 %v322, 127
          %vm324 = vcmp.eq.s32.totalorder %v323, %v321
          %v325 = vsel %vm324, %v320, 0.0
          %326 = vadd.xlane.f32.xlu0 %v325
          %v327 = vpop.xlane.xlu0 %326
          %328 = vst [vmem:[#allocation6] sm:$0xff] %v327
          %s329 = scalar_lea.vmem [#allocation6], %s163
          %330 = vst [vmem:[%s329] sm:$0x1] 1.0
          %v331 = vstv %s163
          %v332 = vlaneseq
          %v333 = vand.u32 %v332, 127
          %vm334 = vcmp.eq.s32.totalorder %v333, %v331
          %v335 = vsel %vm334, %v292, 0.0
          %336 = vadd.xlane.f32.xlu0 %v335
          %v337 = vpop.xlane.xlu0 %336
          %v338 = vstv %s163
          %v339 = vlaneseq
          %v340 = vand.u32 %v339, 127
          %vm341 = vcmp.eq.s32.totalorder %v340, %v338
          %v342 = vld [vmem:[%s158] ss:$0 sm:$0xff]
          %v343 = vsel %vm341, %v337, %v342
          %344 = vst [vmem:[%s158] sm:$0x1] %v343
          %s345 = smov [#allocation2]
          %s346 = smov [#allocation6]
          %v347 = vlaneseq
          %v348 = vshrl.u32 %v347, 7
          %v349 = vmov %v348
          %v351 = vld [vmem:[%s346] sm:$0xff]
          %v352 = vld [vmem:[%s345] sm:$0xff]
          %v353 = vmul.f32 %v351, %v352
          %vm354 = vcmp.lt.s32.totalorder %v349, 4
          %v355 = vsel %vm354, %v353, 0.0
          %v356 = vrot.slane %v355, 4
          %v357 = vadd.f32 %v355, %v356
          %v358 = vrot.slane %v357, 2
          %v359 = vadd.f32 %v357, %v358
          %v360 = vrot.slane %v359, 1
          %v361 = vadd.f32 %v359, %v360
          %s362 = smov %s345
          %s363 = smov %s346
          %v364 = vlaneseq
          %v365 = vshrl.u32 %v364, 7
          %v366 = vmov %v365
          %v367 = vmul.f32 %v361, %v337
          %v369 = vlaneseq
          %v370 = vand.u32 %v369, 127
          %v371 = vld [vmem:[%s363] sm:$0xff]
          %v372 = vmul.f32 %v371, %v367
          %v373 = vld [vmem:[%s362] sm:$0xff]
          %v374 = vstv %s163
          %vm375 = vcmp.gt.s32.totalorder %v370, %v374
          %v376 = vsub.f32 %v373, %v372
          %v377 = vsel %vm375, %v376, %v373
          %v378 = vstv %s163
          %v379 = vlaneseq
          %v380 = vand.u32 %v379, 127
          %vm381 = vcmp.eq.s32.totalorder %v380, %v378
          %v382 = vstv %s163
          %vm383 = vcmp.ge.s32.totalorder %v366, %v382
          %vm384 = vmand %vm381, %vm383
          %v385 = vsel %vm384, %v371, %v377
          %386 = vst [vmem:[%s362] sm:$0xff] %v385
          %s387 = scalar_lea.vmem %s362, %s163
          %v388 = vld [vmem:[%s387] ss:$0 sm:$0xff]
          %v389 = vstv %s163
          %v390 = vlaneseq
          %v391 = vand.u32 %v390, 127
          %vm392 = vcmp.eq.s32.totalorder %v391, %v389
          %v393 = vsel %vm392, %v291, %v388
          %394 = vst [vmem:[%s387] sm:$0x1] %v393
        $region55: #{custom-call.35} parent=49 // loop_footer
          %s167 = sadd.s32 1, %s163
        $region56: #{custom-call.35} parent=49 // loop_footer_branch
          %162 = sbr.rel target = $region52
        $region57: #{custom-call.35} parent=49 // loop_exit
          _
        %s396 = ssub.s32 16, 1
        %v397 = vld [vmem:[#allocation2] sm:%s396]
        %s399 = ssub.s32 16, 1
        %400 = vst [vmem:[%s140] sm:%s399] %v397
        %s402 = ssub.s32 4, 1
        %v403 = vld [vmem:[#allocation4] sm:%s402]
        %s405 = ssub.s32 4, 1
        %406 = vst [vmem:[%s146] sm:%s405] %v403
        %s407 = sand.u32 %s10, 1
        %s408 = sand.u32 %s10, 1
        %s409 = smul.addr %s408, 4
        %s410 = scalar_lea.vmem [#allocation3], %s409
        %s411 = sand.u32 %s49, 1
        %s412 = sand.u32 %s49, 1
        %s413 = smul.addr %s412, 2
        %s414 = scalar_lea.vmem [#allocation5], %s413
        %s415 = sadd.s32 %s17, %s16
        %s416 = sadd.s32 %s415, %s15
        %s417 = smul.addr %s416, 4
        %s418 = scalar_lea.vmem %s1, %s417
        // Predicated region
        $region58: #{custom-call.35} parent=49 // pred_check
          _
        $region59: #{custom-call.35} parent=49 // pred_check_branch
          %420 = sbr.rel (0) target = $region61
        $region60: #{custom-call.35} parent=49 // pred_region
          // Predicated region
          $region62: #{custom-call.35} parent=60 // pred_check
            _
          $region63: #{custom-call.35} parent=60 // pred_check_branch
            %422 = sbr.rel target = $region65
          $region64: #{custom-call.35} parent=60 // pred_region
            // Predicated region
            $region77: #{custom-call.35} parent=64 // pred_check
              _
            $region78: #{custom-call.35} parent=64 // pred_check_branch
              %438 = sbr.rel (0) target = $region80
            $region79: #{custom-call.35} parent=64 // pred_region
              %s440 = ssub.s32 16, 1
              loop: start=0, step=1, limit=1
              $region81: #{custom-call.35} parent=79 // loop_pre_header
                _
              $region82: #{custom-call.35} parent=79 // loop_header
                %s442 = sphi 0, %s446
                %p443 = scmp.ge.s32.totalorder %s442, 1
                %s447 = sphi %s410, %s410
                %s448 = sphi %s418, %s418
              $region83: #{custom-call.35} parent=79 // loop_header_branch
                %445 = sbr.rel (%p443) target = $region87
              $region84: #{custom-call.35} parent=79 // loop_body
                %v449 = vld [vmem:[%s447] sm:%s440]
                %450 = vst [vmem:[%s448] sm:%s440] %v449
              $region85: #{custom-call.35} parent=79 // loop_footer
                %s446 = sadd.s32 1, %s442
              $region86: #{custom-call.35} parent=79 // loop_footer_branch
                %441 = sbr.rel target = $region82
              $region87: #{custom-call.35} parent=79 // loop_exit
                _
            $region80: #{custom-call.35} parent=64 // pred_fallthru
              _
          $region65: #{custom-call.35} parent=60 // pred_fallthru
            _
          // Predicated region
          $region66: #{custom-call.35} parent=60 // pred_check
            _
          $region67: #{custom-call.35} parent=60 // pred_check_branch
            %424 = sbr.rel (0) target = $region69
          $region68: #{custom-call.35} parent=60 // pred_region
            %s426 = ssub.s32 16, 1
            loop: start=0, step=1, limit=1
            $region70: #{custom-call.35} parent=68 // loop_pre_header
              _
            $region71: #{custom-call.35} parent=68 // loop_header
              %s428 = sphi 0, %s432
              %p429 = scmp.ge.s32.totalorder %s428, 1
              %s433 = sphi %s410, %s410
              %s434 = sphi %s418, %s418
            $region72: #{custom-call.35} parent=68 // loop_header_branch
              %431 = sbr.rel (%p429) target = $region76
            $region73: #{custom-call.35} parent=68 // loop_body
              %v435 = vld [vmem:[%s433] sm:%s426]
              %436 = vst [vmem:[%s434] sm:%s426] %v435
            $region74: #{custom-call.35} parent=68 // loop_footer
              %s432 = sadd.s32 1, %s428
            $region75: #{custom-call.35} parent=68 // loop_footer_branch
              %427 = sbr.rel target = $region71
            $region76: #{custom-call.35} parent=68 // loop_exit
              _
          $region69: #{custom-call.35} parent=60 // pred_fallthru
            _
        $region61: #{custom-call.35} parent=49 // pred_fallthru
          _
        %451 = vnop
        // Predicated region
        $region88: #{custom-call.35} parent=49 // pred_check
          %p452 = pneg %p59
        $region89: #{custom-call.35} parent=49 // pred_check_branch
          %454 = sbr.rel (%p452) target = $region91
        $region90: #{custom-call.35} parent=49 // pred_region
          %p455 = scmp.lt.s32.totalorder %s15, 0
          %s456 = ssub.s32 0, %s15
          %s457 = scalar_select %p455, %s456, %s15
          %s458 = sshrl.u32 %s457, 3
          %s459 = ssub.s32 0, %s458
          %s460 = scalar_select %p455, %s459, %s458
          %s461 = smul.addr %s460, 2
          %s462 = scalar_lea.vmem %s2, %s461
          // Predicated region
          $region92: #{custom-call.35} parent=90 // pred_check
            _
          $region93: #{custom-call.35} parent=90 // pred_check_branch
            %464 = sbr.rel (0) target = $region95
          $region94: #{custom-call.35} parent=90 // pred_region
            // Predicated region
            $region96: #{custom-call.35} parent=94 // pred_check
              _
            $region97: #{custom-call.35} parent=94 // pred_check_branch
              %466 = sbr.rel target = $region99
            $region98: #{custom-call.35} parent=94 // pred_region
              // Predicated region
              $region111: #{custom-call.35} parent=98 // pred_check
                _
              $region112: #{custom-call.35} parent=98 // pred_check_branch
                %482 = sbr.rel (0) target = $region114
              $region113: #{custom-call.35} parent=98 // pred_region
                %s484 = ssub.s32 4, 1
                loop: start=0, step=1, limit=1
                $region115: #{custom-call.35} parent=113 // loop_pre_header
                  _
                $region116: #{custom-call.35} parent=113 // loop_header
                  %s486 = sphi 0, %s490
                  %p487 = scmp.ge.s32.totalorder %s486, 1
                  %s491 = sphi %s414, %s414
                  %s492 = sphi %s462, %s462
                $region117: #{custom-call.35} parent=113 // loop_header_branch
                  %489 = sbr.rel (%p487) target = $region121
                $region118: #{custom-call.35} parent=113 // loop_body
                  %v493 = vld [vmem:[%s491] sm:%s484]
                  %494 = vst [vmem:[%s492] sm:%s484] %v493
                $region119: #{custom-call.35} parent=113 // loop_footer
                  %s490 = sadd.s32 1, %s486
                $region120: #{custom-call.35} parent=113 // loop_footer_branch
                  %485 = sbr.rel target = $region116
                $region121: #{custom-call.35} parent=113 // loop_exit
                  _
              $region114: #{custom-call.35} parent=98 // pred_fallthru
                _
            $region99: #{custom-call.35} parent=94 // pred_fallthru
              _
            // Predicated region
            $region100: #{custom-call.35} parent=94 // pred_check
              _
            $region101: #{custom-call.35} parent=94 // pred_check_branch
              %468 = sbr.rel (0) target = $region103
            $region102: #{custom-call.35} parent=94 // pred_region
              %s470 = ssub.s32 4, 1
              loop: start=0, step=1, limit=1
              $region104: #{custom-call.35} parent=102 // loop_pre_header
                _
              $region105: #{custom-call.35} parent=102 // loop_header
                %s472 = sphi 0, %s476
                %p473 = scmp.ge.s32.totalorder %s472, 1
                %s477 = sphi %s414, %s414
                %s478 = sphi %s462, %s462
              $region106: #{custom-call.35} parent=102 // loop_header_branch
                %475 = sbr.rel (%p473) target = $region110
              $region107: #{custom-call.35} parent=102 // loop_body
                %v479 = vld [vmem:[%s477] sm:%s470]
                %480 = vst [vmem:[%s478] sm:%s470] %v479
              $region108: #{custom-call.35} parent=102 // loop_footer
                %s476 = sadd.s32 1, %s472
              $region109: #{custom-call.35} parent=102 // loop_footer_branch
                %471 = sbr.rel target = $region105
              $region110: #{custom-call.35} parent=102 // loop_exit
                _
            $region103: #{custom-call.35} parent=94 // pred_fallthru
              _
          $region95: #{custom-call.35} parent=90 // pred_fallthru
            _
          %495 = vnop
        $region91: #{custom-call.35} parent=49 // pred_fallthru
          _
      $region50: #{custom-call.35} parent=5 // pred_fallthru
        _
      %p496 = scmp.le.s32.totalorder 2, %s5
      // Predicated region
      $region122: #{custom-call.35} parent=5 // pred_check
        %p497 = pneg %p496
      $region123: #{custom-call.35} parent=5 // pred_check_branch
        %499 = sbr.rel (%p497) target = $region125
      $region124: #{custom-call.35} parent=5 // pred_region
        %s500 = ssub.s32 %s5, 2
        %s501 = sand.u32 %s11, 1
        %s502 = sand.u32 %s11, 1
        %s503 = smul.addr %s502, 4
        %s504 = scalar_lea.vmem [#allocation3], %s503
        // Predicated region
        $region126: #{custom-call.35} parent=124 // pred_check
          %p505 = pneg %p65
        $region127: #{custom-call.35} parent=124 // pred_check_branch
          %507 = sbr.rel (%p505) target = $region129
        $region128: #{custom-call.35} parent=124 // pred_region
          %s508 = sand.u32 %s50, 1
          %s509 = sand.u32 %s50, 1
          %s510 = smul.addr %s509, 2
          %s511 = scalar_lea.vmem [#allocation5], %s510
        $region129: #{custom-call.35} parent=124 // pred_fallthru
          _
      $region125: #{custom-call.35} parent=5 // pred_fallthru
        _
    $region6: #{custom-call.35} parent=1 // loop_footer
      %s9 = sadd.s32 1, %s5
    $region7: #{custom-call.35} parent=1 // loop_footer_branch
      %4 = sbr.rel target = $region3
    $region8: #{custom-call.35} parent=1 // loop_exit
      _

// kernel: custom-call.123
$region0: #{custom-call.123}
  %s0 = inlined_call_operand.vmem [shape: f32[2,6,3], index: 0, kind: input, shape index: {}]
  %s1 = inlined_call_operand.vmem [shape: f32[2,6,3], index: 1, kind: output, shape index: {0}]
  %s2 = inlined_call_operand.vmem [shape: f32[2,3], index: 2, kind: output, shape index: {1}]
  %3 = xla_tuple %s1, %s2
  $region1: #{custom-call.123} parent=0
    #allocation0 [shape = 'u8[8192]{0}', space=vmem, size = 0x2000, scoped, tag = 'operand span for operand 0']
    #allocation1 [shape = 'u8[8192]{0}', space=vmem, size = 0x2000, scoped, tag = 'operand span for operand 1']
    #allocation2 [shape = 'u8[4096]{0}', space=vmem, size = 0x1000, scoped, tag = 'operand span for operand 2']
    #allocation3 [shape = 'u8[2048]{0}', space=vmem, size = 0x800, scoped, tag = 'packed  for operand 2']
    loop: start=0, step=1, limit=4
    $region2: #{custom-call.123} parent=1 // loop_pre_header
      _
    $region3: #{custom-call.123} parent=1 // loop_header
      %s5 = sphi 0, %s9
      %p6 = scmp.ge.s32.totalorder %s5, 4
      %s12 = sphi 0, %s31
      %s13 = sphi 0, %s27
      %s14 = sphi 0, %s23
      %s15 = sphi 0, %s12
      %s16 = sphi 0, %s13
      %s17 = sphi 0, %s14
      %s18 = sphi 0, %s15
      %s19 = sphi 0, %s16
      %s20 = sphi 0, %s17
      %s46 = sphi 0, %s48
      %s49 = sphi 0, %s46
      %s50 = sphi 0, %s49
      %s66 = sphi 0, %s50
    $region4: #{custom-call.123} parent=1 // loop_header_branch
      %8 = sbr.rel (%p6) target = $region8
    $region5: #{custom-call.123} parent=1 // loop_body
      %s10 = ssub.s32 %s5, 1
      %s11 = ssub.s32 %s5, 2
      %s21 = sadd.s32 1, %s14
      %p22 = scmp.ge.s32.totalorder %s21, 1
      %s23 = scalar_select %p22, 0, %s21
      %s24 = sadd.s32 1, %s13
      %s25 = scalar_select %p22, %s24, %s13
      %p26 = scmp.ge.s32.totalorder %s25, 1
      %s27 = scalar_select %p26, 0, %s25
      %s28 = sadd.s32 1, %s12
      %s29 = scalar_select %p26, %s28, %s12
      %p30 = scmp.ge.s32.totalorder %s29, 2
      %s31 = scalar_select %p30, 0, %s29
      %p32 = scmp.lt.s32.totalorder %s12, 0
      %s33 = ssub.s32 0, %s12
      %s34 = scalar_select %p32, %s33, %s12
      %s35 = sshrl.u32 %s34, 3
      %s36 = ssub.s32 0, %s35
      %s37 = scalar_select %p32, %s36, %s35
      %p38 = scmp.lt.s32.totalorder %s31, 0
      %s39 = ssub.s32 0, %s31
      %s40 = scalar_select %p38, %s39, %s31
      %s41 = sshrl.u32 %s40, 3
      %s42 = ssub.s32 0, %s41
      %s43 = scalar_select %p38, %s42, %s41
      %s44 = ssub.s32 %s37, %s43
      %p45 = scmp.eq.s32.totalorder %s44, 0
      %s47 = sadd.s32 %s46, 1
      %s48 = scalar_select %p45, %s46, %s47
      %p51 = pneg %p45
      %p52 = scmp.eq.s32.totalorder %s5, 1
      %p53 = por %p51, %p52
      %p54 = scmp.ne.s32.totalorder %s46, %s49
      %p55 = scmp.eq.s32.totalorder %s5, 0
      %p56 = por %p54, %p55
      %p57 = scmp.ne.s32.totalorder %s46, %s49
      %p58 = scmp.eq.s32.totalorder %s10, 1
      %p59 = por %p57, %p58
      %p60 = scmp.ne.s32.totalorder %s49, %s50
      %p61 = scmp.eq.s32.totalorder %s10, 0
      %p62 = por %p60, %p61
      %p63 = scmp.ne.s32.totalorder %s49, %s50
      %p64 = scmp.eq.s32.totalorder %s11, 1
      %p65 = por %p63, %p64
      %p67 = scmp.ne.s32.totalorder %s50, %s66
      %p68 = scmp.eq.s32.totalorder %s11, 0
      %p69 = por %p67, %p68
      %p70 = scmp.le.s32.totalorder 1, %s5
      %p71 = scmp.lt.s32.totalorder %s5, 3
      %p72 = pnand %p70, %p71
      %p73 = pneg %p72
      // Predicated region
      $region9: #{custom-call.123} parent=5 // pred_check
        _
      $region10: #{custom-call.123} parent=5 // pred_check_branch
        %75 = sbr.rel (%p72) target = $region12
      $region11: #{custom-call.123} parent=5 // pred_region
        %s76 = ssub.s32 %s5, 1
      $region12: #{custom-call.123} parent=5 // pred_fallthru
        _
      %p77 = scmp.lt.s32.totalorder %s5, 2
      // Predicated region
      $region13: #{custom-call.123} parent=5 // pred_check
        %p78 = pneg %p77
      $region14: #{custom-call.123} parent=5 // pred_check_branch
        %80 = sbr.rel (%p78) target = $region16
      $region15: #{custom-call.123} parent=5 // pred_region
        %s81 = sand.u32 %s5, 1
        %s82 = sand.u32 %s5, 1
        %s83 = smul.addr %s82, 8
        %s84 = scalar_lea.vmem [#allocation0], %s83
        %s85 = sadd.s32 %s14, %s13
        %s86 = sadd.s32 %s85, %s12
        %s87 = smul.addr %s86, 8
        %s88 = scalar_lea.vmem %s0, %s87
        // Predicated region
        $region17: #{custom-call.123} parent=15 // pred_check
          _
        $region18: #{custom-call.123} parent=15 // pred_check_branch
          %90 = sbr.rel (0) target = $region20
        $region19: #{custom-call.123} parent=15 // pred_region
          // Predicated region
          $region21: #{custom-call.123} parent=19 // pred_check
            _
          $region22: #{custom-call.123} parent=19 // pred_check_branch
            %92 = sbr.rel (0) target = $region24
          $region23: #{custom-call.123} parent=19 // pred_region
            // Predicated region
            $region36: #{custom-call.123} parent=23 // pred_check
              _
            $region37: #{custom-call.123} parent=23 // pred_check_branch
              %108 = sbr.rel (0) target = $region39
            $region38: #{custom-call.123} parent=23 // pred_region
              loop: start=0, step=1, limit=1
              $region40: #{custom-call.123} parent=38 // loop_pre_header
                _
              $region41: #{custom-call.123} parent=38 // loop_header
                %s110 = sphi 0, %s114
                %p111 = scmp.ge.s32.totalorder %s110, 1
                %s115 = sphi %s88, %s88
                %s116 = sphi %s84, %s84
              $region42: #{custom-call.123} parent=38 // loop_header_branch
                %113 = sbr.rel (%p111) target = $region46
              $region43: #{custom-call.123} parent=38 // loop_body
                %v117 = vld [vmem:[%s115] sm:$0xff]
                %118 = vst [vmem:[%s116] sm:$0xff] %v117
              $region44: #{custom-call.123} parent=38 // loop_footer
                %s114 = sadd.s32 1, %s110
              $region45: #{custom-call.123} parent=38 // loop_footer_branch
                %109 = sbr.rel target = $region41
              $region46: #{custom-call.123} parent=38 // loop_exit
                _
            $region39: #{custom-call.123} parent=23 // pred_fallthru
              _
            // Predicated region
            $region47: #{custom-call.123} parent=23 // pred_check
              _
            $region48: #{custom-call.123} parent=23 // pred_check_branch
              %120 = sbr.rel target = $region50
            $region49: #{custom-call.123} parent=23 // pred_region
              _
            $region50: #{custom-call.123} parent=23 // pred_fallthru
              _
          $region24: #{custom-call.123} parent=19 // pred_fallthru
            _
          // Predicated region
          $region25: #{custom-call.123} parent=19 // pred_check
            _
          $region26: #{custom-call.123} parent=19 // pred_check_branch
            %94 = sbr.rel target = $region28
          $region27: #{custom-call.123} parent=19 // pred_region
            %s96 = ssub.s32 256, 1
            loop: start=0, step=1, limit=1
            $region29: #{custom-call.123} parent=27 // loop_pre_header
              _
            $region30: #{custom-call.123} parent=27 // loop_header
              %s98 = sphi 0, %s102
              %p99 = scmp.ge.s32.totalorder %s98, 1
              %s103 = sphi %s88, %s88
              %s104 = sphi %s84, %s84
            $region31: #{custom-call.123} parent=27 // loop_header_branch
              %101 = sbr.rel (%p99) target = $region35
            $region32: #{custom-call.123} parent=27 // loop_body
              %v105 = vld [vmem:[%s103] sm:%s96]
              %106 = vst [vmem:[%s104] sm:%s96] %v105
            $region33: #{custom-call.123} parent=27 // loop_footer
              %s102 = sadd.s32 1, %s98
            $region34: #{custom-call.123} parent=27 // loop_footer_branch
              %97 = sbr.rel target = $region30
            $region35: #{custom-call.123} parent=27 // loop_exit
              _
          $region28: #{custom-call.123} parent=19 // pred_fallthru
            _
        $region20: #{custom-call.123} parent=15 // pred_fallthru
          _
        %121 = vnop
      $region16: #{custom-call.123} parent=5 // pred_fallthru
        _
      %p122 = scmp.le.s32.totalorder 1, %s5
      %p123 = scmp.lt.s32.totalorder %s5, 3
      %p124 = pnand %p122, %p123
      %p125 = pneg %p124
      // Predicated region
      $region51: #{custom-call.123} parent=5 // pred_check
        _
      $region52: #{custom-call.123} parent=5 // pred_check_branch
        %127 = sbr.rel (%p124) target = $region54
      $region53: #{custom-call.123} parent=5 // pred_region
        #allocation4 [shape = 'f32[6,128]{1,0}', space=vmem, size = 0x1000, scoped, tag = 'scratch for Householder reflectors']
        %s128 = ssub.s32 %s5, 1
        %s129 = sand.u32 %s10, 1
        %s130 = sand.u32 %s10, 1
        %s131 = smul.addr %s130, 8
        %s132 = scalar_lea.vmem [#allocation0], %s131
        %s133 = sand.u32 %s10, 1
        %s134 = sand.u32 %s10, 1
        %s135 = smul.addr %s134, 8
        %s136 = scalar_lea.vmem [#allocation0], %s135
        %s137 = sand.u32 %s10, 1
        %s138 = sand.u32 %s10, 1
        %s139 = smul.addr %s138, 8
        %s140 = scalar_lea.vmem [#allocation1], %s139
        %p141 = pneg %p62
        %p142 = pneg %p59
        %s143 = sand.u32 %s49, 1
        %s144 = sand.u32 %s49, 1
        %s145 = smul.addr %s144, 2
        %s146 = scalar_lea.vmem [#allocation3], %s145
        %p147 = scmp.lt.s32.totalorder %s15, 0
        %s148 = ssub.s32 0, %s15
        %s149 = scalar_select %p147, %s148, %s15
        %s150 = sshrl.u32 %s149, 3
        %s151 = ssub.s32 0, %s150
        %s152 = scalar_select %p147, %s151, %s150
        %s153 = sand.u32 %s15, 7
        %s154 = scalar_lea.vmem [#allocation2], %s153
        %v155 = vld [vmem:[%s132] sm:$0xff]
        %156 = vst [vmem:[%s140] sm:$0xff] %v155
        %157 = vst [vmem:[%s154] sm:$0x1] 0.0
        loop: start=0, step=1, limit=3
        $region55: #{custom-call.123} parent=53 // loop_pre_header
          _
        $region56: #{custom-call.123} parent=53 // loop_header
          %s159 = sphi 0, %s163
          %p160 = scmp.ge.s32.totalorder %s159, 3
        $region57: #{custom-call.123} parent=53 // loop_header_branch
          %162 = sbr.rel (%p160) target = $region61
        $region58: #{custom-call.123} parent=53 // loop_body
          %v164 = vld [vmem:[%s140] sm:$0xff]
          %v165 = vlaneseq
          %v166 = vshrl.u32 %v165, 7
          %v168 = vstv %s159
          %vm169 = vcmp.gt.s32.totalorder %v166, %v168
          %vm170 = vcmp.lt.s32.totalorder %v166, 6
          %vm171 = vmand %vm169, %vm170
          %v172 = vsel %vm171, %v164, 0.0
          %v173 = vmul.f32 %v172, %v172
          %v174 = vrot.slane %v173, 4
          %v175 = vadd.f32 %v173, %v174
          %v176 = vrot.slane %v175, 2
          %v177 = vadd.f32 %v175, %v176
          %v178 = vrot.slane %v177, 1
          %v179 = vadd.f32 %v177, %v178
          %v180 = vrsqrt.pop %v179
          %v181 = vmul.f32 %v180, %v179
          %v182 = vmul.f32 %v181, %v180
          %v183 = vmul.f32 0.5, %v182
          %v184 = vsub.f32 1.5, %v183
          %v185 = vmul.f32 %v180, %v184
          %v186 = vmul.f32 %v179, %v185
          %vm187 = vcmp.eq.f32.partialorder %v179, inf
          %v188 = vsel %vm187, %v179, %v186
          %vm189 = vcmp.eq.f32.partialorder %v179, 0.0
          %v190 = vand.u32 %v179, 2147483648
          %v191 = vsel %vm189, %v190, %v188
          %vm192 = vcmp.eq.f32.partialorder %v179, 0.0
          %s193 = sshrl.u32 %s159, 3
          %s194 = sand.u32 %s159, 7
          %s195 = smul.addr %s193, 8
          %s196 = sadd.s32 %s194, %s195
          %s197 = scalar_lea.vmem %s140, %s196 [#allocation1]
          %v198 = vld [vmem:[%s197] ss:$0 sm:$0xff]
          %v199 = vand.u32 2147483647, %v198
          %v200 = vmax.f32 %v199, 0.0
          %v201 = vand.u32 2147483647, %v191
          %v202 = vmax.f32 %v200, %v201
          %v203 = vrcp.pop %v202
          %v204 = vmul.f32 %v202, %v203
          %v205 = vsub.f32 1.0, %v204
          %v206 = vmul.f32 %v203, %v205
          %v207 = vadd.f32 %v203, %v206
          %vm208 = vweird.f32 %v202
          %vm209 = vweird.f32 %v203
          %vm210 = vmor %vm208, %vm209
          %v211 = vsel %vm210, %v203, %v207
          %v212 = vand.u32 2147483647, %v202
          %vm213 = vcmp.eq.f32.partialorder %v212, 8.507059e+37
          %v214 = vand.u32 %v202, 2147483648
          %v215 = vor.u32 1.1754944e-38, %v214
          %v216 = vsel %vm213, %v215, %v211
          %v217 = vmul.f32 %v199, %v216
          %v218 = vmul.f32 %v217, %v217
          %v219 = vrcp.pop %v202
          %v220 = vmul.f32 %v202, %v219
          %v221 = vsub.f32 1.0, %v220
          %v222 = vmul.f32 %v219, %v221
          %v223 = vadd.f32 %v219, %v222
          %vm224 = vweird.f32 %v202
          %vm225 = vweird.f32 %v219
          %vm226 = vmor %vm224, %vm225
          %v227 = vsel %vm226, %v219, %v223
          %v228 = vand.u32 2147483647, %v202
          %vm229 = vcmp.eq.f32.partialorder %v228, 8.507059e+37
          %v230 = vand.u32 %v202, 2147483648
          %v231 = vor.u32 1.1754944e-38, %v230
          %v232 = vsel %vm229, %v231, %v227
          %v233 = vmul.f32 0.0, %v232
          %v234 = vmul.f32 %v233, %v233
          %v235 = vadd.f32 %v218, %v234
          %v236 = vrcp.pop %v202
          %v237 = vmul.f32 %v202, %v236
          %v238 = vsub.f32 1.0, %v237
          %v239 = vmul.f32 %v236, %v238
          %v240 = vadd.f32 %v236, %v239
          %vm241 = vweird.f32 %v202
          %vm242 = vweird.f32 %v236
          %vm243 = vmor %vm241, %vm242
          %v244 = vsel %vm243, %v236, %v240
          %v245 = vand.u32 2147483647, %v202
          %vm246 = vcmp.eq.f32.partialorder %v245, 8.507059e+37
          %v247 = vand.u32 %v202, 2147483648
          %v248 = vor.u32 1.1754944e-38, %v247
          %v249 = vsel %vm246, %v248, %v244
          %v250 = vmul.f32 %v201, %v249
          %v251 = vmul.f32 %v250, %v250
          %v252 = vadd.f32 %v235, %v251
          %vm253 = vcmp.eq.f32.partialorder %v202, 0.0
          %v254 = vrsqrt.pop %v252
          %v255 = vmul.f32 %v254, %v252
          %v256 = vmul.f32 %v255, %v254
          %v257 = vmul.f32 0.5, %v256
          %v258 = vsub.f32 1.5, %v257
          %v259 = vmul.f32 %v254, %v258
          %v260 = vmul.f32 %v252, %v259
          %vm261 = vcmp.eq.f32.partialorder %v252, inf
          %v262 = vsel %vm261, %v252, %v260
          %vm263 = vcmp.eq.f32.partialorder %v252, 0.0
          %v264 = vand.u32 %v252, 2147483648
          %v265 = vsel %vm263, %v264, %v262
          %v266 = vmul.f32 %v202, %v265
          %v267 = vsel %vm253, 0.0, %v266
          %vm268 = vcmp.lt.f32.partialorder %v198, 0.0
          %v269 = vxor.u32 %v267, 2147483648
          %v270 = vsel %vm268, %v267, %v269
          %v271 = vsub.f32 %v270, %v198
          %v272 = vrcp.pop %v270
          %v273 = vmul.f32 %v270, %v272
          %v274 = vsub.f32 1.0, %v273
          %v275 = vmul.f32 %v272, %v274
          %v276 = vadd.f32 %v272, %v275
          %vm277 = vweird.f32 %v270
          %vm278 = vweird.f32 %v272
          %vm279 = vmor %vm277, %vm278
          %v280 = vsel %vm279, %v272, %v276
          %v281 = vand.u32 2147483647, %v270
          %vm282 = vcmp.eq.f32.partialorder %v281, 8.507059e+37
          %v283 = vand.u32 %v270, 2147483648
          %v284 = vor.u32 1.1754944e-38, %v283
          %v285 = vsel %vm282, %v284, %v280
          %v286 = vmul.f32 %v271, %v285
          %v287 = vsel %vm192, %v198, %v270
          %v288 = vsel %vm192, 0.0, %v286
          %v289 = vsub.f32 %v198, %v287
          %s290 = smov %s140
          %v291 = vlaneseq
          %v292 = vshrl.u32 %v291, 7
          %v293 = vmov %v292
          %v294 = vld [vmem:[%s290] sm:$0xff]
          %v296 = vstv %s159
          %vm297 = vcmp.gt.s32.totalorder %v293, %v296
          %vm298 = vcmp.lt.s32.totalorder %v293, 6
          %vm299 = vmand %vm297, %vm298
          %v300 = vsel %vm299, %v294, 0.0
          %v301 = vrcp.pop %v289
          %v302 = vmul.f32 %v289, %v301
          %v303 = vsub.f32 1.0, %v302
          %v304 = vmul.f32 %v301, %v303
          %v305 = vadd.f32 %v301, %v304
          %vm306 = vweird.f32 %v289
          %vm307 = vweird.f32 %v301
          %vm308 = vmor %vm306, %vm307
          %v309 = vsel %vm308, %v301, %v305
          %v310 = vand.u32 2147483647, %v289
          %vm311 = vcmp.eq.f32.partialorder %v310, 8.507059e+37
          %v312 = vand.u32 %v289, 2147483648
          %v313 = vor.u32 1.1754944e-38, %v312
          %v314 = vsel %vm311, %v313, %v309
          %v315 = vmul.f32 %v300, %v314
          %v316 = vsel %vm192, 0.0, %v315
          %v317 = vstv %s159
          %v318 = vlaneseq
          %v319 = vand.u32 %v318, 127
          %vm320 = vcmp.eq.s32.totalorder %v319, %v317
          %v321 = vsel %vm320, %v316, 0.0
          %322 = vadd.xlane.f32.xlu0 %v321
          %v323 = vpop.xlane.xlu0 %322
          %324 = vst [vmem:[#allocation4] sm:$0xff] %v323
          %s325 = scalar_lea.vmem [#allocation4], %s159
          %326 = vst [vmem:[%s325] sm:$0x1] 1.0
          %v327 = vstv %s159
          %v328 = vlaneseq
          %v329 = vand.u32 %v328, 127
          %vm330 = vcmp.eq.s32.totalorder %v329, %v327
          %v331 = vsel %vm330, %v288, 0.0
          %332 = vadd.xlane.f32.xlu0 %v331
          %v333 = vpop.xlane.xlu0 %332
          %v334 = vstv %s159
          %v335 = vlaneseq
          %v336 = vand.u32 %v335, 127
          %vm337 = vcmp.eq.s32.totalorder %v336, %v334
          %v338 = vld [vmem:[%s154] ss:$0 sm:$0xff]
          %v339 = vsel %vm337, %v333, %v338
          %340 = vst [vmem:[%s154] sm:$0x1] %v339
          %s341 = smov %s140
          %s342 = smov [#allocation4]
          %v343 = vlaneseq
          %v344 = vshrl.u32 %v343, 7
          %v345 = vmov %v344
          %v347 = vld [vmem:[%s342] sm:$0xff]
          %v348 = vld [vmem:[%s341] sm:$0xff]
          %v349 = vmul.f32 %v347, %v348
          %vm350 = vcmp.lt.s32.totalorder %v345, 6
          %v351 = vsel %vm350, %v349, 0.0
          %v352 = vrot.slane %v351, 4
          %v353 = vadd.f32 %v351, %v352
          %v354 = vrot.slane %v353, 2
          %v355 = vadd.f32 %v353, %v354
          %v356 = vrot.slane %v355, 1
          %v357 = vadd.f32 %v355, %v356
          %s358 = smov %s341
          %s359 = smov %s342
          %v360 = vlaneseq
          %v361 = vshrl.u32 %v360, 7
          %v362 = vmov %v361
          %v363 = vmul.f32 %v357, %v333
          %v365 = vlaneseq
          %v366 = vand.u32 %v365, 127
          %v367 = vld [vmem:[%s359] sm:$0xff]
          %v368 = vmul.f32 %v367, %v363
          %v369 = vld [vmem:[%s358] sm:$0xff]
          %v370 = vstv %s159
          %vm371 = vcmp.gt.s32.totalorder %v366, %v370
          %v372 = vsub.f32 %v369, %v368
          %v373 = vsel %vm371, %v372, %v369
          %v374 = vstv %s159
          %v375 = vlaneseq
          %v376 = vand.u32 %v375, 127
          %vm377 = vcmp.eq.s32.totalorder %v376, %v374
          %v378 = vstv %s159
          %vm379 = vcmp.ge.s32.totalorder %v362, %v378
          %vm380 = vmand %vm377, %vm379
          %v381 = vsel %vm380, %v367, %v373
          %382 = vst [vmem:[%s358] sm:$0xff] %v381
          %s383 = scalar_lea.vmem %s358, %s159
          %v384 = vld [vmem:[%s383] ss:$0 sm:$0xff]
          %v385 = vstv %s159
          %v386 = vlaneseq
          %v387 = vand.u32 %v386, 127
          %vm388 = vcmp.eq.s32.totalorder %v387, %v385
          %v389 = vsel %vm388, %v287, %v384
          %390 = vst [vmem:[%s383] sm:$0x1] %v389
        $region59: #{custom-call.123} parent=53 // loop_footer
          %s163 = sadd.s32 1, %s159
        $region60: #{custom-call.123} parent=53 // loop_footer_branch
          %158 = sbr.rel target = $region56
        $region61: #{custom-call.123} parent=53 // loop_exit
          _
        %s392 = ssub.s32 4, 1
        %v393 = vld [vmem:[#allocation2] sm:%s392]
        %s395 = ssub.s32 4, 1
        %396 = vst [vmem:[%s146] sm:%s395] %v393
        %s397 = sand.u32 %s10, 1
        %s398 = sand.u32 %s10, 1
        %s399 = smul.addr %s398, 8
        %s400 = scalar_lea.vmem [#allocation1], %s399
        %s401 = sand.u32 %s49, 1
        %s402 = sand.u32 %s49, 1
        %s403 = smul.addr %s402, 2
        %s404 = scalar_lea.vmem [#allocation3], %s403
        %s405 = sadd.s32 %s17, %s16
        %s406 = sadd.s32 %s405, %s15
        %s407 = smul.addr %s406, 8
        %s408 = scalar_lea.vmem %s1, %s407
        // Predicated region
        $region62: #{custom-call.123} parent=53 // pred_check
          _
        $region63: #{custom-call.123} parent=53 // pred_check_branch
          %410 = sbr.rel (0) target = $region65
        $region64: #{custom-call.123} parent=53 // pred_region
          // Predicated region
          $region66: #{custom-call.123} parent=64 // pred_check
            _
          $region67: #{custom-call.123} parent=64 // pred_check_branch
            %412 = sbr.rel (0) target = $region69
          $region68: #{custom-call.123} parent=64 // pred_region
            // Predicated region
            $region81: #{custom-call.123} parent=68 // pred_check
              _
            $region82: #{custom-call.123} parent=68 // pred_check_branch
              %428 = sbr.rel (0) target = $region84
            $region83: #{custom-call.123} parent=68 // pred_region
              loop: start=0, step=1, limit=1
              $region85: #{custom-call.123} parent=83 // loop_pre_header
                _
              $region86: #{custom-call.123} parent=83 // loop_header
                %s430 = sphi 0, %s434
                %p431 = scmp.ge.s32.totalorder %s430, 1
                %s435 = sphi %s400, %s400
                %s436 = sphi %s408, %s408
              $region87: #{custom-call.123} parent=83 // loop_header_branch
                %433 = sbr.rel (%p431) target = $region91
              $region88: #{custom-call.123} parent=83 // loop_body
                %v437 = vld [vmem:[%s435] sm:$0xff]
                %438 = vst [vmem:[%s436] sm:$0xff] %v437
              $region89: #{custom-call.123} parent=83 // loop_footer
                %s434 = sadd.s32 1, %s430
              $region90: #{custom-call.123} parent=83 // loop_footer_branch
                %429 = sbr.rel target = $region86
              $region91: #{custom-call.123} parent=83 // loop_exit
                _
            $region84: #{custom-call.123} parent=68 // pred_fallthru
              _
            // Predicated region
            $region92: #{custom-call.123} parent=68 // pred_check
              _
            $region93: #{custom-call.123} parent=68 // pred_check_branch
              %440 = sbr.rel target = $region95
            $region94: #{custom-call.123} parent=68 // pred_region
              _
            $region95: #{custom-call.123} parent=68 // pred_fallthru
              _
          $region69: #{custom-call.123} parent=64 // pred_fallthru
            _
          // Predicated region
          $region70: #{custom-call.123} parent=64 // pred_check
            _
          $region71: #{custom-call.123} parent=64 // pred_check_branch
            %414 = sbr.rel target = $region73
          $region72: #{custom-call.123} parent=64 // pred_region
            %s416 = ssub.s32 256, 1
            loop: start=0, step=1, limit=1
            $region74: #{custom-call.123} parent=72 // loop_pre_header
              _
            $region75: #{custom-call.123} parent=72 // loop_header
              %s418 = sphi 0, %s422
              %p419 = scmp.ge.s32.totalorder %s418, 1
              %s423 = sphi %s400, %s400
              %s424 = sphi %s408, %s408
            $region76: #{custom-call.123} parent=72 // loop_header_branch
              %421 = sbr.rel (%p419) target = $region80
            $region77: #{custom-call.123} parent=72 // loop_body
              %v425 = vld [vmem:[%s423] sm:%s416]
              %426 = vst [vmem:[%s424] sm:%s416] %v425
            $region78: #{custom-call.123} parent=72 // loop_footer
              %s422 = sadd.s32 1, %s418
            $region79: #{custom-call.123} parent=72 // loop_footer_branch
              %417 = sbr.rel target = $region75
            $region80: #{custom-call.123} parent=72 // loop_exit
              _
          $region73: #{custom-call.123} parent=64 // pred_fallthru
            _
        $region65: #{custom-call.123} parent=53 // pred_fallthru
          _
        %441 = vnop
        // Predicated region
        $region96: #{custom-call.123} parent=53 // pred_check
          %p442 = pneg %p59
        $region97: #{custom-call.123} parent=53 // pred_check_branch
          %444 = sbr.rel (%p442) target = $region99
        $region98: #{custom-call.123} parent=53 // pred_region
          %p445 = scmp.lt.s32.totalorder %s15, 0
          %s446 = ssub.s32 0, %s15
          %s447 = scalar_select %p445, %s446, %s15
          %s448 = sshrl.u32 %s447, 3
          %s449 = ssub.s32 0, %s448
          %s450 = scalar_select %p445, %s449, %s448
          %s451 = smul.addr %s450, 2
          %s452 = scalar_lea.vmem %s2, %s451
          // Predicated region
          $region100: #{custom-call.123} parent=98 // pred_check
            _
          $region101: #{custom-call.123} parent=98 // pred_check_branch
            %454 = sbr.rel (0) target = $region103
          $region102: #{custom-call.123} parent=98 // pred_region
            // Predicated region
            $region104: #{custom-call.123} parent=102 // pred_check
              _
            $region105: #{custom-call.123} parent=102 // pred_check_branch
              %456 = sbr.rel target = $region107
            $region106: #{custom-call.123} parent=102 // pred_region
              // Predicated region
              $region119: #{custom-call.123} parent=106 // pred_check
                _
              $region120: #{custom-call.123} parent=106 // pred_check_branch
                %472 = sbr.rel (0) target = $region122
              $region121: #{custom-call.123} parent=106 // pred_region
                %s474 = ssub.s32 4, 1
                loop: start=0, step=1, limit=1
                $region123: #{custom-call.123} parent=121 // loop_pre_header
                  _
                $region124: #{custom-call.123} parent=121 // loop_header
                  %s476 = sphi 0, %s480
                  %p477 = scmp.ge.s32.totalorder %s476, 1
                  %s481 = sphi %s404, %s404
                  %s482 = sphi %s452, %s452
                $region125: #{custom-call.123} parent=121 // loop_header_branch
                  %479 = sbr.rel (%p477) target = $region129
                $region126: #{custom-call.123} parent=121 // loop_body
                  %v483 = vld [vmem:[%s481] sm:%s474]
                  %484 = vst [vmem:[%s482] sm:%s474] %v483
                $region127: #{custom-call.123} parent=121 // loop_footer
                  %s480 = sadd.s32 1, %s476
                $region128: #{custom-call.123} parent=121 // loop_footer_branch
                  %475 = sbr.rel target = $region124
                $region129: #{custom-call.123} parent=121 // loop_exit
                  _
              $region122: #{custom-call.123} parent=106 // pred_fallthru
                _
            $region107: #{custom-call.123} parent=102 // pred_fallthru
              _
            // Predicated region
            $region108: #{custom-call.123} parent=102 // pred_check
              _
            $region109: #{custom-call.123} parent=102 // pred_check_branch
              %458 = sbr.rel (0) target = $region111
            $region110: #{custom-call.123} parent=102 // pred_region
              %s460 = ssub.s32 4, 1
              loop: start=0, step=1, limit=1
              $region112: #{custom-call.123} parent=110 // loop_pre_header
                _
              $region113: #{custom-call.123} parent=110 // loop_header
                %s462 = sphi 0, %s466
                %p463 = scmp.ge.s32.totalorder %s462, 1
                %s467 = sphi %s404, %s404
                %s468 = sphi %s452, %s452
              $region114: #{custom-call.123} parent=110 // loop_header_branch
                %465 = sbr.rel (%p463) target = $region118
              $region115: #{custom-call.123} parent=110 // loop_body
                %v469 = vld [vmem:[%s467] sm:%s460]
                %470 = vst [vmem:[%s468] sm:%s460] %v469
              $region116: #{custom-call.123} parent=110 // loop_footer
                %s466 = sadd.s32 1, %s462
              $region117: #{custom-call.123} parent=110 // loop_footer_branch
                %461 = sbr.rel target = $region113
              $region118: #{custom-call.123} parent=110 // loop_exit
                _
            $region111: #{custom-call.123} parent=102 // pred_fallthru
              _
          $region103: #{custom-call.123} parent=98 // pred_fallthru
            _
          %485 = vnop
        $region99: #{custom-call.123} parent=53 // pred_fallthru
          _
      $region54: #{custom-call.123} parent=5 // pred_fallthru
        _
      %p486 = scmp.le.s32.totalorder 2, %s5
      // Predicated region
      $region130: #{custom-call.123} parent=5 // pred_check
        %p487 = pneg %p486
      $region131: #{custom-call.123} parent=5 // pred_check_branch
        %489 = sbr.rel (%p487) target = $region133
      $region132: #{custom-call.123} parent=5 // pred_region
        %s490 = ssub.s32 %s5, 2
        %s491 = sand.u32 %s11, 1
        %s492 = sand.u32 %s11, 1
        %s493 = smul.addr %s492, 8
        %s494 = scalar_lea.vmem [#allocation1], %s493
        // Predicated region
        $region134: #{custom-call.123} parent=132 // pred_check
          %p495 = pneg %p65
        $region135: #{custom-call.123} parent=132 // pred_check_branch
          %497 = sbr.rel (%p495) target = $region137
        $region136: #{custom-call.123} parent=132 // pred_region
          %s498 = sand.u32 %s50, 1
          %s499 = sand.u32 %s50, 1
          %s500 = smul.addr %s499, 2
          %s501 = scalar_lea.vmem [#allocation3], %s500
        $region137: #{custom-call.123} parent=132 // pred_fallthru
          _
      $region133: #{custom-call.123} parent=5 // pred_fallthru
        _
    $region6: #{custom-call.123} parent=1 // loop_footer
      %s9 = sadd.s32 1, %s5
    $region7: #{custom-call.123} parent=1 // loop_footer_branch
      %4 = sbr.rel target = $region3
    $region8: #{custom-call.123} parent=1 // loop_exit
      _

// kernel: custom-call.124
$region0: #{custom-call.124}
  %s0 = inlined_call_operand.vmem [shape: f32[2,3,3], index: 0, kind: input, shape index: {}]
  %s1 = inlined_call_operand.vmem [shape: f32[2,3,3], index: 1, kind: output, shape index: {}]
  $region1: #{custom-call.124} parent=0
    #allocation0 [shape = 'u8[4096]{0}', space=vmem, size = 0x1000, scoped, tag = 'operand span for operand 0']
    #allocation1 [shape = 'u8[4096]{0}', space=vmem, size = 0x1000, scoped, tag = 'packed  for operand 0']
    #allocation2 [shape = 'u8[4096]{0}', space=vmem, size = 0x1000, scoped, tag = 'operand span for operand 1']
    #allocation3 [shape = 'u8[4096]{0}', space=vmem, size = 0x1000, scoped, tag = 'packed  for operand 1']
    loop: start=0, step=1, limit=4
    $region2: #{custom-call.124} parent=1 // loop_pre_header
      _
    $region3: #{custom-call.124} parent=1 // loop_header
      %s3 = sphi 0, %s7
      %p4 = scmp.ge.s32.totalorder %s3, 4
    $region4: #{custom-call.124} parent=1 // loop_header_branch
      %6 = sbr.rel (%p4) target = $region8
    $region5: #{custom-call.124} parent=1 // loop_body
      %s8 = ssub.s32 %s3, 1
      %s9 = ssub.s32 %s3, 2
      %s10 = sadd.s32 %s3, 1
      %p11 = scmp.le.s32.totalorder 1, %s3
      %p12 = scmp.lt.s32.totalorder %s3, 3
      %p13 = pnand %p11, %p12
      %p14 = pneg %p13
      // Predicated region
      $region9: #{custom-call.124} parent=5 // pred_check
        _
      $region10: #{custom-call.124} parent=5 // pred_check_branch
        %16 = sbr.rel (%p13) target = $region12
      $region11: #{custom-call.124} parent=5 // pred_region
        %s17 = ssub.s32 %s3, 1
      $region12: #{custom-call.124} parent=5 // pred_fallthru
        _
      %p18 = scmp.lt.s32.totalorder %s3, 2
      // Predicated region
      $region13: #{custom-call.124} parent=5 // pred_check
        %p19 = pneg %p18
      $region14: #{custom-call.124} parent=5 // pred_check_branch
        %21 = sbr.rel (%p19) target = $region16
      $region15: #{custom-call.124} parent=5 // pred_region
        %s22 = sand.u32 %s3, 1
        %s23 = sand.u32 %s3, 1
        %s24 = smul.addr %s23, 4
        %s25 = scalar_lea.vmem [#allocation1], %s24
        %s26 = smul.addr %s3, 4
        %s27 = scalar_lea.vmem %s0, %s26
        // Predicated region
        $region17: #{custom-call.124} parent=15 // pred_check
          _
        $region18: #{custom-call.124} parent=15 // pred_check_branch
          %29 = sbr.rel (0) target = $region20
        $region19: #{custom-call.124} parent=15 // pred_region
          // Predicated region
          $region21: #{custom-call.124} parent=19 // pred_check
            _
          $region22: #{custom-call.124} parent=19 // pred_check_branch
            %31 = sbr.rel target = $region24
          $region23: #{custom-call.124} parent=19 // pred_region
            // Predicated region
            $region36: #{custom-call.124} parent=23 // pred_check
              _
            $region37: #{custom-call.124} parent=23 // pred_check_branch
              %47 = sbr.rel (0) target = $region39
            $region38: #{custom-call.124} parent=23 // pred_region
              %s49 = ssub.s32 16, 1
              loop: start=0, step=1, limit=1
              $region40: #{custom-call.124} parent=38 // loop_pre_header
                _
              $region41: #{custom-call.124} parent=38 // loop_header
                %s51 = sphi 0, %s55
                %p52 = scmp.ge.s32.totalorder %s51, 1
                %s56 = sphi %s27, %s27
                %s57 = sphi %s25, %s25
              $region42: #{custom-call.124} parent=38 // loop_header_branch
                %54 = sbr.rel (%p52) target = $region46
              $region43: #{custom-call.124} parent=38 // loop_body
                %v58 = vld [vmem:[%s56] sm:%s49]
                %59 = vst [vmem:[%s57] sm:%s49] %v58
              $region44: #{custom-call.124} parent=38 // loop_footer
                %s55 = sadd.s32 1, %s51
              $region45: #{custom-call.124} parent=38 // loop_footer_branch
                %50 = sbr.rel target = $region41
              $region46: #{custom-call.124} parent=38 // loop_exit
                _
            $region39: #{custom-call.124} parent=23 // pred_fallthru
              _
          $region24: #{custom-call.124} parent=19 // pred_fallthru
            _
          // Predicated region
          $region25: #{custom-call.124} parent=19 // pred_check
            _
          $region26: #{custom-call.124} parent=19 // pred_check_branch
            %33 = sbr.rel (0) target = $region28
          $region27: #{custom-call.124} parent=19 // pred_region
            %s35 = ssub.s32 16, 1
            loop: start=0, step=1, limit=1
            $region29: #{custom-call.124} parent=27 // loop_pre_header
              _
            $region30: #{custom-call.124} parent=27 // loop_header
              %s37 = sphi 0, %s41
              %p38 = scmp.ge.s32.totalorder %s37, 1
              %s42 = sphi %s27, %s27
              %s43 = sphi %s25, %s25
            $region31: #{custom-call.124} parent=27 // loop_header_branch
              %40 = sbr.rel (%p38) target = $region35
            $region32: #{custom-call.124} parent=27 // loop_body
              %v44 = vld [vmem:[%s42] sm:%s35]
              %45 = vst [vmem:[%s43] sm:%s35] %v44
            $region33: #{custom-call.124} parent=27 // loop_footer
              %s41 = sadd.s32 1, %s37
            $region34: #{custom-call.124} parent=27 // loop_footer_branch
              %36 = sbr.rel target = $region30
            $region35: #{custom-call.124} parent=27 // loop_exit
              _
          $region28: #{custom-call.124} parent=19 // pred_fallthru
            _
        $region20: #{custom-call.124} parent=15 // pred_fallthru
          _
        %60 = vnop
      $region16: #{custom-call.124} parent=5 // pred_fallthru
        _
      %p61 = scmp.le.s32.totalorder 1, %s3
      %p62 = scmp.lt.s32.totalorder %s3, 3
      %p63 = pnand %p61, %p62
      %p64 = pneg %p63
      // Predicated region
      $region47: #{custom-call.124} parent=5 // pred_check
        _
      $region48: #{custom-call.124} parent=5 // pred_check_branch
        %66 = sbr.rel (%p63) target = $region50
      $region49: #{custom-call.124} parent=5 // pred_region
        %s67 = ssub.s32 %s3, 1
        %s68 = sand.u32 %s8, 1
        %s69 = sand.u32 %s8, 1
        %s70 = smul.addr %s69, 4
        %s71 = scalar_lea.vmem [#allocation1], %s70
        %s72 = sand.u32 %s8, 1
        %s73 = sand.u32 %s8, 1
        %s74 = smul.addr %s73, 4
        %s75 = scalar_lea.vmem [#allocation1], %s74
        %s76 = sand.u32 %s8, 1
        %s77 = sand.u32 %s8, 1
        %s78 = smul.addr %s77, 4
        %s79 = scalar_lea.vmem [#allocation3], %s78
        %s81 = ssub.s32 16, 1
        %v82 = vld [vmem:[%s75] sm:%s81]
        %83 = vst [vmem:[#allocation0] sm:%s81] %v82
        %v84 = vlaneseq
        %v85 = vand.u32 %v84, 127
        %v86 = vlaneseq
        %v87 = vshrl.u32 %v86, 7
        %vm89 = vcmp.eq.s32.totalorder %v85, %v87
        %v90 = vld [vmem:[#allocation0] sm:$0xff]
        %v91 = vlaneseq
        %v92 = vand.u32 %v91, 127
        %vm93 = vcmp.eq.s32.totalorder %v92, 0
        %v94 = vsel %vm93, %v90, 1.0
        %v95 = vsel %vm89, %v94, 0.0
        %s96 = scalar_lea.vmem [#allocation0], 1
        %v97 = vld [vmem:[%s96] ss:$0 sm:$0xff]
        %vm98 = vcmask 23552
        %v99 = vsel %vm98, %v97, 0.0
        %v100 = vlaneseq
        %v101 = vand.u32 %v100, 127
        %vm102 = vcmp.eq.s32.totalorder %v101, 1
        %v103 = vmul.f32 %v99, %v95
        %104 = vadd.xlane.f32.xlu0 %v103
        %v105 = vpop.xlane.xlu0 %104
        %v106 = vsel %vm102, %v105, %v95
        %s107 = scalar_lea.vmem [#allocation0], 2
        %v108 = vld [vmem:[%s107] ss:$0 sm:$0xff]
        %vm109 = vcmask 23552
        %v110 = vsel %vm109, %v108, 0.0
        %v111 = vlaneseq
        %v112 = vand.u32 %v111, 127
        %vm113 = vcmp.eq.s32.totalorder %v112, 2
        %v114 = vmul.f32 %v110, %v106
        %115 = vadd.xlane.f32.xlu0 %v114
        %v116 = vpop.xlane.xlu0 %115
        %v117 = vsel %vm113, %v116, %v106
        %118 = vst [vmem:[#allocation2] sm:$0xff] %v117
        %s120 = ssub.s32 16, 1
        %v121 = vld [vmem:[#allocation2] sm:%s120]
        %s123 = ssub.s32 16, 1
        %124 = vst [vmem:[%s79] sm:%s123] %v121
        %s125 = sand.u32 %s8, 1
        %s126 = sand.u32 %s8, 1
        %s127 = smul.addr %s126, 4
        %s128 = scalar_lea.vmem [#allocation3], %s127
        %s129 = smul.addr %s8, 4
        %s130 = scalar_lea.vmem %s1, %s129
        // Predicated region
        $region51: #{custom-call.124} parent=49 // pred_check
          _
        $region52: #{custom-call.124} parent=49 // pred_check_branch
          %132 = sbr.rel (0) target = $region54
        $region53: #{custom-call.124} parent=49 // pred_region
          // Predicated region
          $region55: #{custom-call.124} parent=53 // pred_check
            _
          $region56: #{custom-call.124} parent=53 // pred_check_branch
            %134 = sbr.rel target = $region58
          $region57: #{custom-call.124} parent=53 // pred_region
            // Predicated region
            $region70: #{custom-call.124} parent=57 // pred_check
              _
            $region71: #{custom-call.124} parent=57 // pred_check_branch
              %150 = sbr.rel (0) target = $region73
            $region72: #{custom-call.124} parent=57 // pred_region
              %s152 = ssub.s32 16, 1
              loop: start=0, step=1, limit=1
              $region74: #{custom-call.124} parent=72 // loop_pre_header
                _
              $region75: #{custom-call.124} parent=72 // loop_header
                %s154 = sphi 0, %s158
                %p155 = scmp.ge.s32.totalorder %s154, 1
                %s159 = sphi %s128, %s128
                %s160 = sphi %s130, %s130
              $region76: #{custom-call.124} parent=72 // loop_header_branch
                %157 = sbr.rel (%p155) target = $region80
              $region77: #{custom-call.124} parent=72 // loop_body
                %v161 = vld [vmem:[%s159] sm:%s152]
                %162 = vst [vmem:[%s160] sm:%s152] %v161
              $region78: #{custom-call.124} parent=72 // loop_footer
                %s158 = sadd.s32 1, %s154
              $region79: #{custom-call.124} parent=72 // loop_footer_branch
                %153 = sbr.rel target = $region75
              $region80: #{custom-call.124} parent=72 // loop_exit
                _
            $region73: #{custom-call.124} parent=57 // pred_fallthru
              _
          $region58: #{custom-call.124} parent=53 // pred_fallthru
            _
          // Predicated region
          $region59: #{custom-call.124} parent=53 // pred_check
            _
          $region60: #{custom-call.124} parent=53 // pred_check_branch
            %136 = sbr.rel (0) target = $region62
          $region61: #{custom-call.124} parent=53 // pred_region
            %s138 = ssub.s32 16, 1
            loop: start=0, step=1, limit=1
            $region63: #{custom-call.124} parent=61 // loop_pre_header
              _
            $region64: #{custom-call.124} parent=61 // loop_header
              %s140 = sphi 0, %s144
              %p141 = scmp.ge.s32.totalorder %s140, 1
              %s145 = sphi %s128, %s128
              %s146 = sphi %s130, %s130
            $region65: #{custom-call.124} parent=61 // loop_header_branch
              %143 = sbr.rel (%p141) target = $region69
            $region66: #{custom-call.124} parent=61 // loop_body
              %v147 = vld [vmem:[%s145] sm:%s138]
              %148 = vst [vmem:[%s146] sm:%s138] %v147
            $region67: #{custom-call.124} parent=61 // loop_footer
              %s144 = sadd.s32 1, %s140
            $region68: #{custom-call.124} parent=61 // loop_footer_branch
              %139 = sbr.rel target = $region64
            $region69: #{custom-call.124} parent=61 // loop_exit
              _
          $region62: #{custom-call.124} parent=53 // pred_fallthru
            _
        $region54: #{custom-call.124} parent=49 // pred_fallthru
          _
        %163 = vnop
      $region50: #{custom-call.124} parent=5 // pred_fallthru
        _
      %p164 = scmp.le.s32.totalorder 2, %s3
      // Predicated region
      $region81: #{custom-call.124} parent=5 // pred_check
        %p165 = pneg %p164
      $region82: #{custom-call.124} parent=5 // pred_check_branch
        %167 = sbr.rel (%p165) target = $region84
      $region83: #{custom-call.124} parent=5 // pred_region
        %s168 = ssub.s32 %s3, 2
        %s169 = sand.u32 %s9, 1
        %s170 = sand.u32 %s9, 1
        %s171 = smul.addr %s170, 4
        %s172 = scalar_lea.vmem [#allocation3], %s171
      $region84: #{custom-call.124} parent=5 // pred_fallthru
        _
    $region6: #{custom-call.124} parent=1 // loop_footer
      %s7 = sadd.s32 1, %s3
    $region7: #{custom-call.124} parent=1 // loop_footer_branch
      %2 = sbr.rel target = $region3
    $region8: #{custom-call.124} parent=1 // loop_exit
      _

// kernel: aligned_l2_forward.2
$region0: #{aligned_l2_forward.2}
  #allocation0 [shape = 'u32[]', space=smem, size = 0x4, offset = 0x4, fixed_abs, tag = 'smem constant byte address 0x4 - core index']
  #allocation1 [shape = 'u32[72,128]{1,0:T(1,128)}', space=vmem, size = 0x9000, scoped, tag = 'internal scratch']
  #allocation2 [shape = 'f32[8,128]{1,0:T(8,128)}', space=vmem, size = 0x1000, scoped, tag = 'scratch operand']
  %s0 = inlined_call_operand.vmem [shape: f32[8,256], index: 0, kind: input, shape index: {}]
  %s1 = inlined_call_operand.vmem [shape: f32[2,128], index: 1, kind: output, shape index: {}]
  %s2 = sld [smem:[#allocation0]]
  $region14: #{aligned_l2_forward.2} parent=0
    _
  %s4 = ssub.s32 1, %s2
  %s5 = scalar_select 0, %s4, %s2
  // Predicated region
  $region2: #{aligned_l2_forward.2} parent=0 // pred_check
    _
  $region3: #{aligned_l2_forward.2} parent=0 // pred_check_branch
    %7 = sbr.rel (0) target = $region5
  $region4: #{aligned_l2_forward.2} parent=0 // pred_region
    _
  $region5: #{aligned_l2_forward.2} parent=0 // pred_fallthru
    _
  %v8 = vld [vmem:[%s0] sm:$0xff]
  %v9 = vld [vmem:[%s0] sm:$0xff]
  %v10 = vld [vmem:[%s0 + $0x8] sm:$0xff]
  %13 = vrot.lane.b32.xlu0 %v9, 122
  %v14 = vpop.permute.xlu0 %13
  %15 = vrot.lane.b32.xlu0 %v10, 122
  %v16 = vpop.permute.xlu0 %15
  %vm17 = vcmask 998400
  %v18 = vsel %vm17, %v14, %v16
  %v20 = vadd.f32 %v8, %v18
  %v21 = vmul.f32 %v20, 0.036632847
  %22 = vrot.lane.b32.xlu0 %v9, 124
  %v23 = vpop.permute.xlu0 %22
  %24 = vrot.lane.b32.xlu0 %v10, 124
  %v25 = vpop.permute.xlu0 %24
  %vm26 = vcmask 1014784
  %v27 = vsel %vm26, %v23, %v25
  %v30 = vadd.f32 %v9, %v27
  %v31 = vadd.f32 %v10, %v25
  %v32 = vmul.f32 %v30, 0.11128076
  %v33 = vmul.f32 %v31, 0.11128076
  %34 = vrot.lane.b32.xlu0 %v9, 126
  %v35 = vpop.permute.xlu0 %34
  %36 = vrot.lane.b32.xlu0 %v10, 126
  %v37 = vpop.permute.xlu0 %36
  %vm38 = vcmask 1031168
  %v39 = vsel %vm38, %v35, %v37
  %v42 = vadd.f32 %v9, %v39
  %v43 = vadd.f32 %v10, %v37
  %v44 = vmul.f32 %v42, 0.21674532
  %v45 = vmul.f32 %v43, 0.21674532
  %v46 = vmul.f32 %v9, 0.27068216
  %v47 = vmul.f32 %v10, 0.27068216
  %50 = vrot.lane.b32.xlu0 %v32, 127
  %v51 = vpop.permute.xlu0 %50
  %52 = vrot.lane.b32.xlu0 %v33, 127
  %v53 = vpop.permute.xlu0 %52
  %vm54 = vcmask 1039360
  %v55 = vsel %vm54, %v51, %v53
  %v57 = vadd.f32 %v21, %v55
  %60 = vrot.lane.b32.xlu0 %v46, 127
  %v61 = vpop.permute.xlu0 %60
  %62 = vrot.lane.b32.xlu0 %v47, 127
  %v63 = vpop.permute.xlu0 %62
  %v64 = vsel %vm54, %v61, %v63
  %v67 = vadd.f32 %v44, %v64
  %v68 = vadd.f32 %v45, %v63
  %71 = vrot.lane.b32.xlu0 %v67, 126
  %v72 = vpop.permute.xlu0 %71
  %73 = vrot.lane.b32.xlu0 %v68, 126
  %v74 = vpop.permute.xlu0 %73
  %v75 = vsel %vm38, %v72, %v74
  %v77 = vadd.f32 %v57, %v75
  %78 = vst [vmem:[#allocation2] sm:$0xff] %v77
  %v79 = vld [vmem:[#allocation2] sm:$0x3]
  %v80 = vld [vmem:[#allocation2 + $0x6] sm:$0x3]
  %v81 = vadd.f32 %v79, %v80
  %v82 = vmul.f32 %v81, 0.036632847
  %v83 = vld [vmem:[#allocation2 + $0x1] sm:$0x3]
  %v84 = vld [vmem:[#allocation2 + $0x5] sm:$0x3]
  %v85 = vadd.f32 %v83, %v84
  %v86 = vmul.f32 %v85, 0.11128076
  %v87 = vld [vmem:[#allocation2 + $0x2] sm:$0x3]
  %v88 = vld [vmem:[#allocation2 + $0x4] sm:$0x3]
  %v89 = vadd.f32 %v87, %v88
  %v90 = vmul.f32 %v89, 0.21674532
  %v91 = vld [vmem:[#allocation2 + $0x3] sm:$0x3]
  %v92 = vmul.f32 %v91, 0.27068216
  %v93 = vadd.f32 %v82, %v86
  %v94 = vadd.f32 %v90, %v92
  %v95 = vadd.f32 %v93, %v94
  %96 = vst [vmem:[%s1] sm:$0x3] %v95
  // Predicated region
  $region6: #{aligned_l2_forward.2} parent=0 // pred_check
    _
  $region7: #{aligned_l2_forward.2} parent=0 // pred_check_branch
    %98 = sbr.rel (0) target = $region9
  $region8: #{aligned_l2_forward.2} parent=0 // pred_region
    _
  $region9: #{aligned_l2_forward.2} parent=0 // pred_fallthru
    _
  // Predicated region
  $region10: #{aligned_l2_forward.2} parent=0 // pred_check
    _
  $region11: #{aligned_l2_forward.2} parent=0 // pred_check_branch
    %100 = sbr.rel (0) target = $region13
  $region12: #{aligned_l2_forward.2} parent=0 // pred_region
    _
  $region13: #{aligned_l2_forward.2} parent=0 // pred_fallthru
    _

// kernel: custom-call.116
$region0: #{custom-call.116}
  %s0 = inlined_call_operand.hbm [shape: pred[2], index: 0, kind: output, shape index: {}]

// kernel: custom-call.121
$region0: #{custom-call.121}
  %s0 = inlined_call_operand.vmem [shape: f32[2,3,3], index: 0, kind: input, shape index: {}]
  %s1 = inlined_call_operand.vmem [shape: f32[2,3,3], index: 1, kind: output, shape index: {}]
  $region1: #{custom-call.121} parent=0
    #allocation0 [shape = 'u8[4096]{0}', space=vmem, size = 0x1000, scoped, tag = 'operand span for operand 0']
    #allocation1 [shape = 'u8[4096]{0}', space=vmem, size = 0x1000, scoped, tag = 'packed  for operand 0']
    #allocation2 [shape = 'u8[4096]{0}', space=vmem, size = 0x1000, scoped, tag = 'operand span for operand 1']
    #allocation3 [shape = 'u8[4096]{0}', space=vmem, size = 0x1000, scoped, tag = 'packed  for operand 1']
    loop: start=0, step=1, limit=4
    $region2: #{custom-call.121} parent=1 // loop_pre_header
      _
    $region3: #{custom-call.121} parent=1 // loop_header
      %s3 = sphi 0, %s7
      %p4 = scmp.ge.s32.totalorder %s3, 4
      %s10 = sphi 0, %s29
      %s11 = sphi 0, %s25
      %s12 = sphi 0, %s21
      %s13 = sphi 0, %s10
      %s14 = sphi 0, %s11
      %s15 = sphi 0, %s12
      %s16 = sphi 0, %s13
      %s17 = sphi 0, %s14
      %s18 = sphi 0, %s15
    $region4: #{custom-call.121} parent=1 // loop_header_branch
      %6 = sbr.rel (%p4) target = $region8
    $region5: #{custom-call.121} parent=1 // loop_body
      %s8 = ssub.s32 %s3, 1
      %s9 = ssub.s32 %s3, 2
      %s19 = sadd.s32 1, %s12
      %p20 = scmp.ge.s32.totalorder %s19, 1
      %s21 = scalar_select %p20, 0, %s19
      %s22 = sadd.s32 1, %s11
      %s23 = scalar_select %p20, %s22, %s11
      %p24 = scmp.ge.s32.totalorder %s23, 1
      %s25 = scalar_select %p24, 0, %s23
      %s26 = sadd.s32 1, %s10
      %s27 = scalar_select %p24, %s26, %s10
      %p28 = scmp.ge.s32.totalorder %s27, 2
      %s29 = scalar_select %p28, 0, %s27
      %p30 = scmp.le.s32.totalorder 1, %s3
      %p31 = scmp.lt.s32.totalorder %s3, 3
      %p32 = pnand %p30, %p31
      %p33 = pneg %p32
      // Predicated region
      $region9: #{custom-call.121} parent=5 // pred_check
        _
      $region10: #{custom-call.121} parent=5 // pred_check_branch
        %35 = sbr.rel (%p32) target = $region12
      $region11: #{custom-call.121} parent=5 // pred_region
        %s36 = ssub.s32 %s3, 1
      $region12: #{custom-call.121} parent=5 // pred_fallthru
        _
      %p37 = scmp.lt.s32.totalorder %s3, 2
      // Predicated region
      $region13: #{custom-call.121} parent=5 // pred_check
        %p38 = pneg %p37
      $region14: #{custom-call.121} parent=5 // pred_check_branch
        %40 = sbr.rel (%p38) target = $region16
      $region15: #{custom-call.121} parent=5 // pred_region
        %s41 = sand.u32 %s3, 1
        %s42 = sand.u32 %s3, 1
        %s43 = smul.addr %s42, 4
        %s44 = scalar_lea.vmem [#allocation1], %s43
        %s45 = sadd.s32 %s12, %s11
        %s46 = sadd.s32 %s45, %s10
        %s47 = smul.addr %s46, 4
        %s48 = scalar_lea.vmem %s0, %s47
        // Predicated region
        $region17: #{custom-call.121} parent=15 // pred_check
          _
        $region18: #{custom-call.121} parent=15 // pred_check_branch
          %50 = sbr.rel (0) target = $region20
        $region19: #{custom-call.121} parent=15 // pred_region
          // Predicated region
          $region21: #{custom-call.121} parent=19 // pred_check
            _
          $region22: #{custom-call.121} parent=19 // pred_check_branch
            %52 = sbr.rel target = $region24
          $region23: #{custom-call.121} parent=19 // pred_region
            // Predicated region
            $region36: #{custom-call.121} parent=23 // pred_check
              _
            $region37: #{custom-call.121} parent=23 // pred_check_branch
              %68 = sbr.rel (0) target = $region39
            $region38: #{custom-call.121} parent=23 // pred_region
              %s70 = ssub.s32 16, 1
              loop: start=0, step=1, limit=1
              $region40: #{custom-call.121} parent=38 // loop_pre_header
                _
              $region41: #{custom-call.121} parent=38 // loop_header
                %s72 = sphi 0, %s76
                %p73 = scmp.ge.s32.totalorder %s72, 1
                %s77 = sphi %s48, %s48
                %s78 = sphi %s44, %s44
              $region42: #{custom-call.121} parent=38 // loop_header_branch
                %75 = sbr.rel (%p73) target = $region46
              $region43: #{custom-call.121} parent=38 // loop_body
                %v79 = vld [vmem:[%s77] sm:%s70]
                %80 = vst [vmem:[%s78] sm:%s70] %v79
              $region44: #{custom-call.121} parent=38 // loop_footer
                %s76 = sadd.s32 1, %s72
              $region45: #{custom-call.121} parent=38 // loop_footer_branch
                %71 = sbr.rel target = $region41
              $region46: #{custom-call.121} parent=38 // loop_exit
                _
            $region39: #{custom-call.121} parent=23 // pred_fallthru
              _
          $region24: #{custom-call.121} parent=19 // pred_fallthru
            _
          // Predicated region
          $region25: #{custom-call.121} parent=19 // pred_check
            _
          $region26: #{custom-call.121} parent=19 // pred_check_branch
            %54 = sbr.rel (0) target = $region28
          $region27: #{custom-call.121} parent=19 // pred_region
            %s56 = ssub.s32 16, 1
            loop: start=0, step=1, limit=1
            $region29: #{custom-call.121} parent=27 // loop_pre_header
              _
            $region30: #{custom-call.121} parent=27 // loop_header
              %s58 = sphi 0, %s62
              %p59 = scmp.ge.s32.totalorder %s58, 1
              %s63 = sphi %s48, %s48
              %s64 = sphi %s44, %s44
            $region31: #{custom-call.121} parent=27 // loop_header_branch
              %61 = sbr.rel (%p59) target = $region35
            $region32: #{custom-call.121} parent=27 // loop_body
              %v65 = vld [vmem:[%s63] sm:%s56]
              %66 = vst [vmem:[%s64] sm:%s56] %v65
            $region33: #{custom-call.121} parent=27 // loop_footer
              %s62 = sadd.s32 1, %s58
            $region34: #{custom-call.121} parent=27 // loop_footer_branch
              %57 = sbr.rel target = $region30
            $region35: #{custom-call.121} parent=27 // loop_exit
              _
          $region28: #{custom-call.121} parent=19 // pred_fallthru
            _
        $region20: #{custom-call.121} parent=15 // pred_fallthru
          _
        %81 = vnop
      $region16: #{custom-call.121} parent=5 // pred_fallthru
        _
      %p82 = scmp.le.s32.totalorder 1, %s3
      %p83 = scmp.lt.s32.totalorder %s3, 3
      %p84 = pnand %p82, %p83
      %p85 = pneg %p84
      // Predicated region
      $region47: #{custom-call.121} parent=5 // pred_check
        _
      $region48: #{custom-call.121} parent=5 // pred_check_branch
        %87 = sbr.rel (%p84) target = $region50
      $region49: #{custom-call.121} parent=5 // pred_region
        %s88 = ssub.s32 %s3, 1
        %s89 = sand.u32 %s8, 1
        %s90 = sand.u32 %s8, 1
        %s91 = smul.addr %s90, 4
        %s92 = scalar_lea.vmem [#allocation1], %s91
        %s93 = sand.u32 %s8, 1
        %s94 = sand.u32 %s8, 1
        %s95 = smul.addr %s94, 4
        %s96 = scalar_lea.vmem [#allocation1], %s95
        %s97 = sand.u32 %s8, 1
        %s98 = sand.u32 %s8, 1
        %s99 = smul.addr %s98, 4
        %s100 = scalar_lea.vmem [#allocation3], %s99
        %s102 = ssub.s32 16, 1
        %v103 = vld [vmem:[%s96] sm:%s102]
        %104 = vst [vmem:[#allocation0] sm:%s102] %v103
        %105 = vst [vmem:[#allocation2] sm:$0xff] 0.0
        %vm106 = vcmask 7168
        %v107 = vld [vmem:[#allocation2] ss:$0 sm:$0xff]
        %v108 = vld [vmem:[#allocation0] ss:$0 sm:$0xff]
        %v109 = vmul.f32 %v107, %v107
        %110 = vadd.xlane.f32.xlu0 %v109
        %v111 = vpop.xlane.xlu0 %110
        %v112 = vsub.f32 %v108, %v111
        %v113 = vrsqrt.pop %v112
        %v114 = vmul.f32 %v113, %v112
        %v115 = vmul.f32 %v114, %v113
        %v116 = vmul.f32 0.5, %v115
        %v117 = vsub.f32 1.5, %v116
        %v118 = vmul.f32 %v113, %v117
        %vm119 = vweird.f32 %v112
        %vm120 = vweird.f32 %v113
        %vm121 = vmor %vm119, %vm120
        %v122 = vsel %vm121, %v113, %v118
        %v123 = vld [vmem:[#allocation0] sm:$0xff]
        %v124 = vld [vmem:[#allocation2] sm:$0xff]
        %v125 = vmul.f32 %v124, %v107
        %126 = vadd.xlane.f32.xlu0 %v125
        %v127 = vpop.xlane.xlu0 %126
        %v128 = vsub.f32 %v123, %v127
        %v129 = vmul.f32 %v128, %v122
        %v130 = vsel %vm106, %v129, 0.0
        %v131 = vadd.f32 %v124, %v130
        %132 = vst [vmem:[#allocation2] sm:$0xff] %v131
        %vm133 = vcmask 15368
        %s134 = scalar_lea.vmem [#allocation2], 1
        %v135 = vld [vmem:[%s134] ss:$0 sm:$0xff]
        %s136 = scalar_lea.vmem [#allocation0], 1
        %v137 = vld [vmem:[%s136] ss:$0 sm:$0xff]
        %v138 = vmul.f32 %v135, %v135
        %139 = vadd.xlane.f32.xlu0 %v138
        %v140 = vpop.xlane.xlu0 %139
        %v141 = vsub.f32 %v137, %v140
        %v142 = vrsqrt.pop %v141
        %v143 = vmul.f32 %v142, %v141
        %v144 = vmul.f32 %v143, %v142
        %v145 = vmul.f32 0.5, %v144
        %v146 = vsub.f32 1.5, %v145
        %v147 = vmul.f32 %v142, %v146
        %vm148 = vweird.f32 %v141
        %vm149 = vweird.f32 %v142
        %vm150 = vmor %vm148, %vm149
        %v151 = vsel %vm150, %v142, %v147
        %v152 = vld [vmem:[#allocation0] sm:$0xff]
        %v153 = vld [vmem:[#allocation2] sm:$0xff]
        %v154 = vmul.f32 %v153, %v135
        %155 = vadd.xlane.f32.xlu0 %v154
        %v156 = vpop.xlane.xlu0 %155
        %v157 = vsub.f32 %v152, %v156
        %v158 = vmul.f32 %v157, %v151
        %vm159 = vcmask 1047553
        %vm160 = vmand %vm133, %vm159
        %v161 = vsel %vm160, %v158, 0.0
        %v162 = vadd.f32 %v153, %v161
        %163 = vst [vmem:[#allocation2] sm:$0xff] %v162
        %vm164 = vcmask 23568
        %s165 = scalar_lea.vmem [#allocation2], 2
        %v166 = vld [vmem:[%s165] ss:$0 sm:$0xff]
        %s167 = scalar_lea.vmem [#allocation0], 2
        %v168 = vld [vmem:[%s167] ss:$0 sm:$0xff]
        %v169 = vmul.f32 %v166, %v166
        %170 = vadd.xlane.f32.xlu0 %v169
        %v171 = vpop.xlane.xlu0 %170
        %v172 = vsub.f32 %v168, %v171
        %v173 = vrsqrt.pop %v172
        %v174 = vmul.f32 %v173, %v172
        %v175 = vmul.f32 %v174, %v173
        %v176 = vmul.f32 0.5, %v175
        %v177 = vsub.f32 1.5, %v176
        %v178 = vmul.f32 %v173, %v177
        %vm179 = vweird.f32 %v172
        %vm180 = vweird.f32 %v173
        %vm181 = vmor %vm179, %vm180
        %v182 = vsel %vm181, %v173, %v178
        %v183 = vld [vmem:[#allocation0] sm:$0xff]
        %v184 = vld [vmem:[#allocation2] sm:$0xff]
        %v185 = vmul.f32 %v184, %v166
        %186 = vadd.xlane.f32.xlu0 %v185
        %v187 = vpop.xlane.xlu0 %186
        %v188 = vsub.f32 %v183, %v187
        %v189 = vmul.f32 %v188, %v182
        %vm190 = vcmask 1047554
        %vm191 = vmand %vm164, %vm190
        %v192 = vsel %vm191, %v189, 0.0
        %v193 = vadd.f32 %v184, %v192
        %194 = vst [vmem:[#allocation2] sm:$0xff] %v193
        %s196 = ssub.s32 16, 1
        %v197 = vld [vmem:[#allocation2] sm:%s196]
        %s199 = ssub.s32 16, 1
        %200 = vst [vmem:[%s100] sm:%s199] %v197
        %s201 = sand.u32 %s8, 1
        %s202 = sand.u32 %s8, 1
        %s203 = smul.addr %s202, 4
        %s204 = scalar_lea.vmem [#allocation3], %s203
        %s205 = sadd.s32 %s15, %s14
        %s206 = sadd.s32 %s205, %s13
        %s207 = smul.addr %s206, 4
        %s208 = scalar_lea.vmem %s1, %s207
        // Predicated region
        $region51: #{custom-call.121} parent=49 // pred_check
          _
        $region52: #{custom-call.121} parent=49 // pred_check_branch
          %210 = sbr.rel (0) target = $region54
        $region53: #{custom-call.121} parent=49 // pred_region
          // Predicated region
          $region55: #{custom-call.121} parent=53 // pred_check
            _
          $region56: #{custom-call.121} parent=53 // pred_check_branch
            %212 = sbr.rel target = $region58
          $region57: #{custom-call.121} parent=53 // pred_region
            // Predicated region
            $region70: #{custom-call.121} parent=57 // pred_check
              _
            $region71: #{custom-call.121} parent=57 // pred_check_branch
              %228 = sbr.rel (0) target = $region73
            $region72: #{custom-call.121} parent=57 // pred_region
              %s230 = ssub.s32 16, 1
              loop: start=0, step=1, limit=1
              $region74: #{custom-call.121} parent=72 // loop_pre_header
                _
              $region75: #{custom-call.121} parent=72 // loop_header
                %s232 = sphi 0, %s236
                %p233 = scmp.ge.s32.totalorder %s232, 1
                %s237 = sphi %s204, %s204
                %s238 = sphi %s208, %s208
              $region76: #{custom-call.121} parent=72 // loop_header_branch
                %235 = sbr.rel (%p233) target = $region80
              $region77: #{custom-call.121} parent=72 // loop_body
                %v239 = vld [vmem:[%s237] sm:%s230]
                %240 = vst [vmem:[%s238] sm:%s230] %v239
              $region78: #{custom-call.121} parent=72 // loop_footer
                %s236 = sadd.s32 1, %s232
              $region79: #{custom-call.121} parent=72 // loop_footer_branch
                %231 = sbr.rel target = $region75
              $region80: #{custom-call.121} parent=72 // loop_exit
                _
            $region73: #{custom-call.121} parent=57 // pred_fallthru
              _
          $region58: #{custom-call.121} parent=53 // pred_fallthru
            _
          // Predicated region
          $region59: #{custom-call.121} parent=53 // pred_check
            _
          $region60: #{custom-call.121} parent=53 // pred_check_branch
            %214 = sbr.rel (0) target = $region62
          $region61: #{custom-call.121} parent=53 // pred_region
            %s216 = ssub.s32 16, 1
            loop: start=0, step=1, limit=1
            $region63: #{custom-call.121} parent=61 // loop_pre_header
              _
            $region64: #{custom-call.121} parent=61 // loop_header
              %s218 = sphi 0, %s222
              %p219 = scmp.ge.s32.totalorder %s218, 1
              %s223 = sphi %s204, %s204
              %s224 = sphi %s208, %s208
            $region65: #{custom-call.121} parent=61 // loop_header_branch
              %221 = sbr.rel (%p219) target = $region69
            $region66: #{custom-call.121} parent=61 // loop_body
              %v225 = vld [vmem:[%s223] sm:%s216]
              %226 = vst [vmem:[%s224] sm:%s216] %v225
            $region67: #{custom-call.121} parent=61 // loop_footer
              %s222 = sadd.s32 1, %s218
            $region68: #{custom-call.121} parent=61 // loop_footer_branch
              %217 = sbr.rel target = $region64
            $region69: #{custom-call.121} parent=61 // loop_exit
              _
          $region62: #{custom-call.121} parent=53 // pred_fallthru
            _
        $region54: #{custom-call.121} parent=49 // pred_fallthru
          _
        %241 = vnop
      $region50: #{custom-call.121} parent=5 // pred_fallthru
        _
      %p242 = scmp.le.s32.totalorder 2, %s3
      // Predicated region
      $region81: #{custom-call.121} parent=5 // pred_check
        %p243 = pneg %p242
      $region82: #{custom-call.121} parent=5 // pred_check_branch
        %245 = sbr.rel (%p243) target = $region84
      $region83: #{custom-call.121} parent=5 // pred_region
        %s246 = ssub.s32 %s3, 2
        %s247 = sand.u32 %s9, 1
        %s248 = sand.u32 %s9, 1
        %s249 = smul.addr %s248, 4
        %s250 = scalar_lea.vmem [#allocation3], %s249
      $region84: #{custom-call.121} parent=5 // pred_fallthru
        _
    $region6: #{custom-call.121} parent=1 // loop_footer
      %s7 = sadd.s32 1, %s3
    $region7: #{custom-call.121} parent=1 // loop_footer_branch
      %2 = sbr.rel target = $region3
    $region8: #{custom-call.121} parent=1 // loop_exit
      _

// kernel: custom-call.122
$region0: #{custom-call.122}
  %s0 = inlined_call_operand.vmem [shape: f32[2,1,3,3], index: 0, kind: input, shape index: {}]
  %s1 = inlined_call_operand.vmem [shape: f32[2,1,3,3], index: 1, kind: output, shape index: {}]
  $region1: #{custom-call.122} parent=0
    #allocation0 [shape = 'u8[4096]{0}', space=vmem, size = 0x1000, scoped, tag = 'operand span for operand 0']
    #allocation1 [shape = 'u8[4096]{0}', space=vmem, size = 0x1000, scoped, tag = 'packed  for operand 0']
    #allocation2 [shape = 'u8[4096]{0}', space=vmem, size = 0x1000, scoped, tag = 'operand span for operand 1']
    #allocation3 [shape = 'u8[4096]{0}', space=vmem, size = 0x1000, scoped, tag = 'packed  for operand 1']
    loop: start=0, step=1, limit=4
    $region2: #{custom-call.122} parent=1 // loop_pre_header
      _
    $region3: #{custom-call.122} parent=1 // loop_header
      %s3 = sphi 0, %s7
      %p4 = scmp.ge.s32.totalorder %s3, 4
      %s10 = sphi 0, %s36
      %s11 = sphi 0, %s32
      %s12 = sphi 0, %s28
      %s13 = sphi 0, %s24
      %s14 = sphi 0, %s10
      %s15 = sphi 0, %s11
      %s16 = sphi 0, %s12
      %s17 = sphi 0, %s13
      %s18 = sphi 0, %s14
      %s19 = sphi 0, %s15
      %s20 = sphi 0, %s16
      %s21 = sphi 0, %s17
    $region4: #{custom-call.122} parent=1 // loop_header_branch
      %6 = sbr.rel (%p4) target = $region8
    $region5: #{custom-call.122} parent=1 // loop_body
      %s8 = ssub.s32 %s3, 1
      %s9 = ssub.s32 %s3, 2
      %s22 = sadd.s32 1, %s13
      %p23 = scmp.ge.s32.totalorder %s22, 1
      %s24 = scalar_select %p23, 0, %s22
      %s25 = sadd.s32 1, %s12
      %s26 = scalar_select %p23, %s25, %s12
      %p27 = scmp.ge.s32.totalorder %s26, 1
      %s28 = scalar_select %p27, 0, %s26
      %s29 = sadd.s32 1, %s11
      %s30 = scalar_select %p27, %s29, %s11
      %p31 = scmp.ge.s32.totalorder %s30, 1
      %s32 = scalar_select %p31, 0, %s30
      %s33 = sadd.s32 1, %s10
      %s34 = scalar_select %p31, %s33, %s10
      %p35 = scmp.ge.s32.totalorder %s34, 2
      %s36 = scalar_select %p35, 0, %s34
      %p37 = scmp.le.s32.totalorder 1, %s3
      %p38 = scmp.lt.s32.totalorder %s3, 3
      %p39 = pnand %p37, %p38
      %p40 = pneg %p39
      // Predicated region
      $region9: #{custom-call.122} parent=5 // pred_check
        _
      $region10: #{custom-call.122} parent=5 // pred_check_branch
        %42 = sbr.rel (%p39) target = $region12
      $region11: #{custom-call.122} parent=5 // pred_region
        %s43 = ssub.s32 %s3, 1
      $region12: #{custom-call.122} parent=5 // pred_fallthru
        _
      %p44 = scmp.lt.s32.totalorder %s3, 2
      // Predicated region
      $region13: #{custom-call.122} parent=5 // pred_check
        %p45 = pneg %p44
      $region14: #{custom-call.122} parent=5 // pred_check_branch
        %47 = sbr.rel (%p45) target = $region16
      $region15: #{custom-call.122} parent=5 // pred_region
        %s48 = sand.u32 %s3, 1
        %s49 = sand.u32 %s3, 1
        %s50 = smul.addr %s49, 4
        %s51 = scalar_lea.vmem [#allocation1], %s50
        %s52 = sadd.s32 %s13, %s12
        %s53 = sadd.s32 %s52, %s11
        %s54 = sadd.s32 %s53, %s10
        %s55 = smul.addr %s54, 4
        %s56 = scalar_lea.vmem %s0, %s55
        // Predicated region
        $region17: #{custom-call.122} parent=15 // pred_check
          _
        $region18: #{custom-call.122} parent=15 // pred_check_branch
          %58 = sbr.rel (0) target = $region20
        $region19: #{custom-call.122} parent=15 // pred_region
          // Predicated region
          $region21: #{custom-call.122} parent=19 // pred_check
            _
          $region22: #{custom-call.122} parent=19 // pred_check_branch
            %60 = sbr.rel target = $region24
          $region23: #{custom-call.122} parent=19 // pred_region
            // Predicated region
            $region36: #{custom-call.122} parent=23 // pred_check
              _
            $region37: #{custom-call.122} parent=23 // pred_check_branch
              %76 = sbr.rel (0) target = $region39
            $region38: #{custom-call.122} parent=23 // pred_region
              %s78 = ssub.s32 16, 1
              loop: start=0, step=1, limit=1
              $region40: #{custom-call.122} parent=38 // loop_pre_header
                _
              $region41: #{custom-call.122} parent=38 // loop_header
                %s80 = sphi 0, %s84
                %p81 = scmp.ge.s32.totalorder %s80, 1
                %s85 = sphi %s56, %s56
                %s86 = sphi %s51, %s51
              $region42: #{custom-call.122} parent=38 // loop_header_branch
                %83 = sbr.rel (%p81) target = $region46
              $region43: #{custom-call.122} parent=38 // loop_body
                %v87 = vld [vmem:[%s85] sm:%s78]
                %88 = vst [vmem:[%s86] sm:%s78] %v87
              $region44: #{custom-call.122} parent=38 // loop_footer
                %s84 = sadd.s32 1, %s80
              $region45: #{custom-call.122} parent=38 // loop_footer_branch
                %79 = sbr.rel target = $region41
              $region46: #{custom-call.122} parent=38 // loop_exit
                _
            $region39: #{custom-call.122} parent=23 // pred_fallthru
              _
          $region24: #{custom-call.122} parent=19 // pred_fallthru
            _
          // Predicated region
          $region25: #{custom-call.122} parent=19 // pred_check
            _
          $region26: #{custom-call.122} parent=19 // pred_check_branch
            %62 = sbr.rel (0) target = $region28
          $region27: #{custom-call.122} parent=19 // pred_region
            %s64 = ssub.s32 16, 1
            loop: start=0, step=1, limit=1
            $region29: #{custom-call.122} parent=27 // loop_pre_header
              _
            $region30: #{custom-call.122} parent=27 // loop_header
              %s66 = sphi 0, %s70
              %p67 = scmp.ge.s32.totalorder %s66, 1
              %s71 = sphi %s56, %s56
              %s72 = sphi %s51, %s51
            $region31: #{custom-call.122} parent=27 // loop_header_branch
              %69 = sbr.rel (%p67) target = $region35
            $region32: #{custom-call.122} parent=27 // loop_body
              %v73 = vld [vmem:[%s71] sm:%s64]
              %74 = vst [vmem:[%s72] sm:%s64] %v73
            $region33: #{custom-call.122} parent=27 // loop_footer
              %s70 = sadd.s32 1, %s66
            $region34: #{custom-call.122} parent=27 // loop_footer_branch
              %65 = sbr.rel target = $region30
            $region35: #{custom-call.122} parent=27 // loop_exit
              _
          $region28: #{custom-call.122} parent=19 // pred_fallthru
            _
        $region20: #{custom-call.122} parent=15 // pred_fallthru
          _
        %89 = vnop
      $region16: #{custom-call.122} parent=5 // pred_fallthru
        _
      %p90 = scmp.le.s32.totalorder 1, %s3
      %p91 = scmp.lt.s32.totalorder %s3, 3
      %p92 = pnand %p90, %p91
      %p93 = pneg %p92
      // Predicated region
      $region47: #{custom-call.122} parent=5 // pred_check
        _
      $region48: #{custom-call.122} parent=5 // pred_check_branch
        %95 = sbr.rel (%p92) target = $region50
      $region49: #{custom-call.122} parent=5 // pred_region
        #allocation4 [shape = 'f32[3,3]{1,0}', space=vmem, size = 0x1000, scoped, tag = 'rescaled input a']
        %s96 = ssub.s32 %s3, 1
        %s97 = sand.u32 %s8, 1
        %s98 = sand.u32 %s8, 1
        %s99 = smul.addr %s98, 4
        %s100 = scalar_lea.vmem [#allocation1], %s99
        %s101 = sand.u32 %s8, 1
        %s102 = sand.u32 %s8, 1
        %s103 = smul.addr %s102, 4
        %s104 = scalar_lea.vmem [#allocation1], %s103
        %s105 = sand.u32 %s8, 1
        %s106 = sand.u32 %s8, 1
        %s107 = smul.addr %s106, 4
        %s108 = scalar_lea.vmem [#allocation3], %s107
        %s110 = ssub.s32 16, 1
        %v111 = vld [vmem:[%s104] sm:%s110]
        %112 = vst [vmem:[#allocation0] sm:%s110] %v111
        %v113 = vlaneseq
        %v114 = vand.u32 %v113, 127
        %vm115 = vcmp.lt.s32.totalorder %v114, 3
        %v116 = vlaneseq
        %v117 = vshrl.u32 %v116, 7
        %vm119 = vcmp.eq.s32.totalorder %v117, %v114
        %v120 = vld [vmem:[#allocation0] sm:$0xff]
        %v121 = vsel %vm119, %v120, 0.0
        %122 = vadd.xlane.f32.xlu0 %v121
        %v123 = vpop.xlane.xlu0 %122
        %vm124 = vcmp.ge.s32.totalorder %v117, %v114
        %vm125 = vmand %vm124, %vm115
        %v126 = vsel %vm125, %v120, 0.0
        %v127 = vrcp.pop %v123
        %v128 = vmul.f32 %v123, %v127
        %v129 = vsub.f32 1.0, %v128
        %v130 = vmul.f32 %v127, %v129
        %v131 = vadd.f32 %v127, %v130
        %vm132 = vweird.f32 %v123
        %vm133 = vweird.f32 %v127
        %vm134 = vmor %vm132, %vm133
        %v135 = vsel %vm134, %v127, %v131
        %v136 = vand.u32 2147483647, %v123
        %vm137 = vcmp.eq.f32.partialorder %v136, 8.507059e+37
        %v138 = vand.u32 %v123, 2147483648
        %v139 = vor.u32 1.1754944e-38, %v138
        %v140 = vsel %vm137, %v139, %v135
        %v141 = vmul.f32 %v126, %v140
        %142 = vst [vmem:[#allocation4] sm:$0xff] %v141
        %v143 = vlaneseq
        %v144 = vand.u32 %v143, 127
        %v145 = vlaneseq
        %v146 = vshrl.u32 %v145, 7
        %vm148 = vcmp.eq.s32.totalorder %v144, %v146
        %v149 = vlaneseq
        %v150 = vand.u32 %v149, 127
        %vm151 = vcmp.eq.s32.totalorder %v150, 0
        %v152 = vsel %vm151, 1.0, -1.0
        %v153 = vsel %vm148, %v152, 0.0
        %s154 = scalar_lea.vmem [#allocation4], 1
        %v155 = vld [vmem:[%s154] ss:$0 sm:$0xff]
        %v156 = vxor.u32 %v155, 2147483648
        %v157 = vlaneseq
        %v158 = vand.u32 %v157, 127
        %vm159 = vcmp.eq.s32.totalorder %v158, 1
        %v160 = vmul.f32 %v156, %v153
        %161 = vadd.xlane.f32.xlu0 %v160
        %v162 = vpop.xlane.xlu0 %161
        %v163 = vsel %vm159, %v162, %v153
        %s164 = scalar_lea.vmem [#allocation4], 2
        %v165 = vld [vmem:[%s164] ss:$0 sm:$0xff]
        %v166 = vxor.u32 %v165, 2147483648
        %v167 = vlaneseq
        %v168 = vand.u32 %v167, 127
        %vm169 = vcmp.eq.s32.totalorder %v168, 2
        %v170 = vmul.f32 %v166, %v163
        %171 = vadd.xlane.f32.xlu0 %v170
        %v172 = vpop.xlane.xlu0 %171
        %v173 = vsel %vm169, %v172, %v163
        %v174 = vrcp.pop %v123
        %v175 = vmul.f32 %v123, %v174
        %v176 = vsub.f32 1.0, %v175
        %v177 = vmul.f32 %v174, %v176
        %v178 = vadd.f32 %v174, %v177
        %vm179 = vweird.f32 %v123
        %vm180 = vweird.f32 %v174
        %vm181 = vmor %vm179, %vm180
        %v182 = vsel %vm181, %v174, %v178
        %v183 = vand.u32 2147483647, %v123
        %vm184 = vcmp.eq.f32.partialorder %v183, 8.507059e+37
        %v185 = vand.u32 %v123, 2147483648
        %v186 = vor.u32 1.1754944e-38, %v185
        %v187 = vsel %vm184, %v186, %v182
        %v188 = vmul.f32 %v173, %v187
        %vm189 = vweird.f32 %v123
        %v190 = vsel %vm189, %v173, %v188
        %191 = vst [vmem:[#allocation2] sm:$0xff] %v190
        %s193 = ssub.s32 16, 1
        %v194 = vld [vmem:[#allocation2] sm:%s193]
        %s196 = ssub.s32 16, 1
        %197 = vst [vmem:[%s108] sm:%s196] %v194
        %s198 = sand.u32 %s8, 1
        %s199 = sand.u32 %s8, 1
        %s200 = smul.addr %s199, 4
        %s201 = scalar_lea.vmem [#allocation3], %s200
        %s202 = sadd.s32 %s17, %s16
        %s203 = sadd.s32 %s202, %s15
        %s204 = sadd.s32 %s203, %s14
        %s205 = smul.addr %s204, 4
        %s206 = scalar_lea.vmem %s1, %s205
        // Predicated region
        $region51: #{custom-call.122} parent=49 // pred_check
          _
        $region52: #{custom-call.122} parent=49 // pred_check_branch
          %208 = sbr.rel (0) target = $region54
        $region53: #{custom-call.122} parent=49 // pred_region
          // Predicated region
          $region55: #{custom-call.122} parent=53 // pred_check
            _
          $region56: #{custom-call.122} parent=53 // pred_check_branch
            %210 = sbr.rel target = $region58
          $region57: #{custom-call.122} parent=53 // pred_region
            // Predicated region
            $region70: #{custom-call.122} parent=57 // pred_check
              _
            $region71: #{custom-call.122} parent=57 // pred_check_branch
              %226 = sbr.rel (0) target = $region73
            $region72: #{custom-call.122} parent=57 // pred_region
              %s228 = ssub.s32 16, 1
              loop: start=0, step=1, limit=1
              $region74: #{custom-call.122} parent=72 // loop_pre_header
                _
              $region75: #{custom-call.122} parent=72 // loop_header
                %s230 = sphi 0, %s234
                %p231 = scmp.ge.s32.totalorder %s230, 1
                %s235 = sphi %s201, %s201
                %s236 = sphi %s206, %s206
              $region76: #{custom-call.122} parent=72 // loop_header_branch
                %233 = sbr.rel (%p231) target = $region80
              $region77: #{custom-call.122} parent=72 // loop_body
                %v237 = vld [vmem:[%s235] sm:%s228]
                %238 = vst [vmem:[%s236] sm:%s228] %v237
              $region78: #{custom-call.122} parent=72 // loop_footer
                %s234 = sadd.s32 1, %s230
              $region79: #{custom-call.122} parent=72 // loop_footer_branch
                %229 = sbr.rel target = $region75
              $region80: #{custom-call.122} parent=72 // loop_exit
                _
            $region73: #{custom-call.122} parent=57 // pred_fallthru
              _
          $region58: #{custom-call.122} parent=53 // pred_fallthru
            _
          // Predicated region
          $region59: #{custom-call.122} parent=53 // pred_check
            _
          $region60: #{custom-call.122} parent=53 // pred_check_branch
            %212 = sbr.rel (0) target = $region62
          $region61: #{custom-call.122} parent=53 // pred_region
            %s214 = ssub.s32 16, 1
            loop: start=0, step=1, limit=1
            $region63: #{custom-call.122} parent=61 // loop_pre_header
              _
            $region64: #{custom-call.122} parent=61 // loop_header
              %s216 = sphi 0, %s220
              %p217 = scmp.ge.s32.totalorder %s216, 1
              %s221 = sphi %s201, %s201
              %s222 = sphi %s206, %s206
            $region65: #{custom-call.122} parent=61 // loop_header_branch
              %219 = sbr.rel (%p217) target = $region69
            $region66: #{custom-call.122} parent=61 // loop_body
              %v223 = vld [vmem:[%s221] sm:%s214]
              %224 = vst [vmem:[%s222] sm:%s214] %v223
            $region67: #{custom-call.122} parent=61 // loop_footer
              %s220 = sadd.s32 1, %s216
            $region68: #{custom-call.122} parent=61 // loop_footer_branch
              %215 = sbr.rel target = $region64
            $region69: #{custom-call.122} parent=61 // loop_exit
              _
          $region62: #{custom-call.122} parent=53 // pred_fallthru
            _
        $region54: #{custom-call.122} parent=49 // pred_fallthru
          _
        %239 = vnop
      $region50: #{custom-call.122} parent=5 // pred_fallthru
        _
      %p240 = scmp.le.s32.totalorder 2, %s3
      // Predicated region
      $region81: #{custom-call.122} parent=5 // pred_check
        %p241 = pneg %p240
      $region82: #{custom-call.122} parent=5 // pred_check_branch
        %243 = sbr.rel (%p241) target = $region84
      $region83: #{custom-call.122} parent=5 // pred_region
        %s244 = ssub.s32 %s3, 2
        %s245 = sand.u32 %s9, 1
        %s246 = sand.u32 %s9, 1
        %s247 = smul.addr %s246, 4
        %s248 = scalar_lea.vmem [#allocation3], %s247
      $region84: #{custom-call.122} parent=5 // pred_fallthru
        _
    $region6: #{custom-call.122} parent=1 // loop_footer
      %s7 = sadd.s32 1, %s3
    $region7: #{custom-call.122} parent=1 // loop_footer_branch
      %2 = sbr.rel target = $region3
    $region8: #{custom-call.122} parent=1 // loop_exit
      _

// kernel: custom-call.38
$region0: #{custom-call.38}
  %s0 = inlined_call_operand.vmem [shape: f32[2,2,2], index: 0, kind: input, shape index: {}]
  %s1 = inlined_call_operand.vmem [shape: f32[2,2,2], index: 1, kind: input, shape index: {}]
  %s2 = inlined_call_operand.vmem [shape: f32[2,2,2], index: 2, kind: input, shape index: {}]
  %s3 = inlined_call_operand.vmem [shape: f32[2,2,2], index: 3, kind: input, shape index: {}]
  %s4 = inlined_call_operand.vmem [shape: f32[2,2], index: 4, kind: output, shape index: {0}]
  %s5 = inlined_call_operand.vmem [shape: f32[2,2], index: 5, kind: output, shape index: {1}]
  %s6 = inlined_call_operand.vmem [shape: f32[2,2,2], index: 6, kind: output, shape index: {2}]
  %s7 = inlined_call_operand.vmem [shape: f32[2,2,2], index: 7, kind: output, shape index: {3}]
  %s8 = inlined_call_operand.vmem [shape: f32[2,2,2], index: 8, kind: output, shape index: {4}]
  %s9 = inlined_call_operand.vmem [shape: f32[2,2,2], index: 9, kind: output, shape index: {5}]
  %10 = xla_tuple %s4, %s5, %s6, %s7, %s8, %s9
  $region1: #{custom-call.38} parent=0
    #allocation0 [shape = 'u8[4096]{0}', space=vmem, size = 0x1000, scoped, tag = 'operand span for operand 0']
    #allocation1 [shape = 'u8[2048]{0}', space=vmem, size = 0x800, scoped, tag = 'packed  for operand 0']
    #allocation2 [shape = 'u8[4096]{0}', space=vmem, size = 0x1000, scoped, tag = 'operand span for operand 1']
    #allocation3 [shape = 'u8[2048]{0}', space=vmem, size = 0x800, scoped, tag = 'packed  for operand 1']
    #allocation4 [shape = 'u8[4096]{0}', space=vmem, size = 0x1000, scoped, tag = 'operand span for operand 2']
    #allocation5 [shape = 'u8[2048]{0}', space=vmem, size = 0x800, scoped, tag = 'packed  for operand 2']
    #allocation6 [shape = 'u8[4096]{0}', space=vmem, size = 0x1000, scoped, tag = 'operand span for operand 3']
    #allocation7 [shape = 'u8[2048]{0}', space=vmem, size = 0x800, scoped, tag = 'packed  for operand 3']
    #allocation8 [shape = 'u8[4096]{0}', space=vmem, size = 0x1000, scoped, tag = 'operand span for operand 4']
    #allocation9 [shape = 'u8[2048]{0}', space=vmem, size = 0x800, scoped, tag = 'packed  for operand 4']
    #allocation10 [shape = 'u8[4096]{0}', space=vmem, size = 0x1000, scoped, tag = 'operand span for operand 5']
    #allocation11 [shape = 'u8[2048]{0}', space=vmem, size = 0x800, scoped, tag = 'packed  for operand 5']
    #allocation12 [shape = 'u8[4096]{0}', space=vmem, size = 0x1000, scoped, tag = 'operand span for operand 6']
    #allocation13 [shape = 'u8[2048]{0}', space=vmem, size = 0x800, scoped, tag = 'packed  for operand 6']
    #allocation14 [shape = 'u8[4096]{0}', space=vmem, size = 0x1000, scoped, tag = 'operand span for operand 7']
    #allocation15 [shape = 'u8[2048]{0}', space=vmem, size = 0x800, scoped, tag = 'packed  for operand 7']
    #allocation16 [shape = 'u8[4096]{0}', space=vmem, size = 0x1000, scoped, tag = 'operand span for operand 8']
    #allocation17 [shape = 'u8[2048]{0}', space=vmem, size = 0x800, scoped, tag = 'packed  for operand 8']
    #allocation18 [shape = 'u8[4096]{0}', space=vmem, size = 0x1000, scoped, tag = 'operand span for operand 9']
    #allocation19 [shape = 'u8[2048]{0}', space=vmem, size = 0x800, scoped, tag = 'packed  for operand 9']
    loop: start=0, step=1, limit=4
    $region2: #{custom-call.38} parent=1 // loop_pre_header
      _
    $region3: #{custom-call.38} parent=1 // loop_header
      %s12 = sphi 0, %s16
      %p13 = scmp.ge.s32.totalorder %s12, 4
      %s24 = sphi 0, %s26
      %s27 = sphi 0, %s24
      %s28 = sphi 0, %s27
      %s44 = sphi 0, %s28
      %s52 = sphi 0, %s54
      %s55 = sphi 0, %s52
      %s56 = sphi 0, %s55
      %s72 = sphi 0, %s56
    $region4: #{custom-call.38} parent=1 // loop_header_branch
      %15 = sbr.rel (%p13) target = $region8
    $region5: #{custom-call.38} parent=1 // loop_body
      %s17 = ssub.s32 %s12, 1
      %s18 = ssub.s32 %s12, 2
      %s19 = sadd.s32 %s12, 1
      %s20 = sshrl.u32 %s12, 3
      %s21 = sshrl.u32 %s19, 3
      %s22 = ssub.s32 %s20, %s21
      %p23 = scmp.eq.s32.totalorder %s22, 0
      %s25 = sadd.s32 %s24, 1
      %s26 = scalar_select %p23, %s24, %s25
      %p29 = pneg %p23
      %p30 = scmp.eq.s32.totalorder %s12, 1
      %p31 = por %p29, %p30
      %p32 = scmp.ne.s32.totalorder %s24, %s27
      %p33 = scmp.eq.s32.totalorder %s12, 0
      %p34 = por %p32, %p33
      %p35 = scmp.ne.s32.totalorder %s24, %s27
      %p36 = scmp.eq.s32.totalorder %s17, 1
      %p37 = por %p35, %p36
      %p38 = scmp.ne.s32.totalorder %s27, %s28
      %p39 = scmp.eq.s32.totalorder %s17, 0
      %p40 = por %p38, %p39
      %p41 = scmp.ne.s32.totalorder %s27, %s28
      %p42 = scmp.eq.s32.totalorder %s18, 1
      %p43 = por %p41, %p42
      %p45 = scmp.ne.s32.totalorder %s28, %s44
      %p46 = scmp.eq.s32.totalorder %s18, 0
      %p47 = por %p45, %p46
      %s48 = sshrl.u32 %s12, 3
      %s49 = sshrl.u32 %s19, 3
      %s50 = ssub.s32 %s48, %s49
      %p51 = scmp.eq.s32.totalorder %s50, 0
      %s53 = sadd.s32 %s52, 1
      %s54 = scalar_select %p51, %s52, %s53
      %p57 = pneg %p51
      %p58 = scmp.eq.s32.totalorder %s12, 1
      %p59 = por %p57, %p58
      %p60 = scmp.ne.s32.totalorder %s52, %s55
      %p61 = scmp.eq.s32.totalorder %s12, 0
      %p62 = por %p60, %p61
      %p63 = scmp.ne.s32.totalorder %s52, %s55
      %p64 = scmp.eq.s32.totalorder %s17, 1
      %p65 = por %p63, %p64
      %p66 = scmp.ne.s32.totalorder %s55, %s56
      %p67 = scmp.eq.s32.totalorder %s17, 0
      %p68 = por %p66, %p67
      %p69 = scmp.ne.s32.totalorder %s55, %s56
      %p70 = scmp.eq.s32.totalorder %s18, 1
      %p71 = por %p69, %p70
      %p73 = scmp.ne.s32.totalorder %s56, %s72
      %p74 = scmp.eq.s32.totalorder %s18, 0
      %p75 = por %p73, %p74
      %p76 = scmp.le.s32.totalorder 1, %s12
      %p77 = scmp.lt.s32.totalorder %s12, 3
      %p78 = pnand %p76, %p77
      %p79 = pneg %p78
      // Predicated region
      $region9: #{custom-call.38} parent=5 // pred_check
        _
      $region10: #{custom-call.38} parent=5 // pred_check_branch
        %81 = sbr.rel (%p78) target = $region12
      $region11: #{custom-call.38} parent=5 // pred_region
        %s82 = ssub.s32 %s12, 1
      $region12: #{custom-call.38} parent=5 // pred_fallthru
        _
      %p83 = scmp.lt.s32.totalorder %s12, 2
      // Predicated region
      $region13: #{custom-call.38} parent=5 // pred_check
        %p84 = pneg %p83
      $region14: #{custom-call.38} parent=5 // pred_check_branch
        %86 = sbr.rel (%p84) target = $region16
      $region15: #{custom-call.38} parent=5 // pred_region
        %s87 = sand.u32 %s12, 1
        %s88 = sand.u32 %s12, 1
        %s89 = smul.addr %s88, 2
        %s90 = scalar_lea.vmem [#allocation1], %s89
        %s91 = smul.addr %s12, 2
        %s92 = scalar_lea.vmem %s0, %s91
        // Predicated region
        $region17: #{custom-call.38} parent=15 // pred_check
          _
        $region18: #{custom-call.38} parent=15 // pred_check_branch
          %94 = sbr.rel (0) target = $region20
        $region19: #{custom-call.38} parent=15 // pred_region
          // Predicated region
          $region21: #{custom-call.38} parent=19 // pred_check
            _
          $region22: #{custom-call.38} parent=19 // pred_check_branch
            %96 = sbr.rel target = $region24
          $region23: #{custom-call.38} parent=19 // pred_region
            // Predicated region
            $region36: #{custom-call.38} parent=23 // pred_check
              _
            $region37: #{custom-call.38} parent=23 // pred_check_branch
              %112 = sbr.rel (0) target = $region39
            $region38: #{custom-call.38} parent=23 // pred_region
              %s114 = ssub.s32 4, 1
              loop: start=0, step=1, limit=1
              $region40: #{custom-call.38} parent=38 // loop_pre_header
                _
              $region41: #{custom-call.38} parent=38 // loop_header
                %s116 = sphi 0, %s120
                %p117 = scmp.ge.s32.totalorder %s116, 1
                %s121 = sphi %s92, %s92
                %s122 = sphi %s90, %s90
              $region42: #{custom-call.38} parent=38 // loop_header_branch
                %119 = sbr.rel (%p117) target = $region46
              $region43: #{custom-call.38} parent=38 // loop_body
                %v123 = vld [vmem:[%s121] sm:%s114]
                %124 = vst [vmem:[%s122] sm:%s114] %v123
              $region44: #{custom-call.38} parent=38 // loop_footer
                %s120 = sadd.s32 1, %s116
              $region45: #{custom-call.38} parent=38 // loop_footer_branch
                %115 = sbr.rel target = $region41
              $region46: #{custom-call.38} parent=38 // loop_exit
                _
            $region39: #{custom-call.38} parent=23 // pred_fallthru
              _
          $region24: #{custom-call.38} parent=19 // pred_fallthru
            _
          // Predicated region
          $region25: #{custom-call.38} parent=19 // pred_check
            _
          $region26: #{custom-call.38} parent=19 // pred_check_branch
            %98 = sbr.rel (0) target = $region28
          $region27: #{custom-call.38} parent=19 // pred_region
            %s100 = ssub.s32 4, 1
            loop: start=0, step=1, limit=1
            $region29: #{custom-call.38} parent=27 // loop_pre_header
              _
            $region30: #{custom-call.38} parent=27 // loop_header
              %s102 = sphi 0, %s106
              %p103 = scmp.ge.s32.totalorder %s102, 1
              %s107 = sphi %s92, %s92
              %s108 = sphi %s90, %s90
            $region31: #{custom-call.38} parent=27 // loop_header_branch
              %105 = sbr.rel (%p103) target = $region35
            $region32: #{custom-call.38} parent=27 // loop_body
              %v109 = vld [vmem:[%s107] sm:%s100]
              %110 = vst [vmem:[%s108] sm:%s100] %v109
            $region33: #{custom-call.38} parent=27 // loop_footer
              %s106 = sadd.s32 1, %s102
            $region34: #{custom-call.38} parent=27 // loop_footer_branch
              %101 = sbr.rel target = $region30
            $region35: #{custom-call.38} parent=27 // loop_exit
              _
          $region28: #{custom-call.38} parent=19 // pred_fallthru
            _
        $region20: #{custom-call.38} parent=15 // pred_fallthru
          _
        %125 = vnop
        %s126 = sand.u32 %s12, 1
        %s127 = sand.u32 %s12, 1
        %s128 = smul.addr %s127, 2
        %s129 = scalar_lea.vmem [#allocation3], %s128
        %s130 = smul.addr %s12, 2
        %s131 = scalar_lea.vmem %s1, %s130
        // Predicated region
        $region47: #{custom-call.38} parent=15 // pred_check
          _
        $region48: #{custom-call.38} parent=15 // pred_check_branch
          %133 = sbr.rel (0) target = $region50
        $region49: #{custom-call.38} parent=15 // pred_region
          // Predicated region
          $region51: #{custom-call.38} parent=49 // pred_check
            _
          $region52: #{custom-call.38} parent=49 // pred_check_branch
            %135 = sbr.rel target = $region54
          $region53: #{custom-call.38} parent=49 // pred_region
            // Predicated region
            $region66: #{custom-call.38} parent=53 // pred_check
              _
            $region67: #{custom-call.38} parent=53 // pred_check_branch
              %151 = sbr.rel (0) target = $region69
            $region68: #{custom-call.38} parent=53 // pred_region
              %s153 = ssub.s32 4, 1
              loop: start=0, step=1, limit=1
              $region70: #{custom-call.38} parent=68 // loop_pre_header
                _
              $region71: #{custom-call.38} parent=68 // loop_header
                %s155 = sphi 0, %s159
                %p156 = scmp.ge.s32.totalorder %s155, 1
                %s160 = sphi %s131, %s131
                %s161 = sphi %s129, %s129
              $region72: #{custom-call.38} parent=68 // loop_header_branch
                %158 = sbr.rel (%p156) target = $region76
              $region73: #{custom-call.38} parent=68 // loop_body
                %v162 = vld [vmem:[%s160] sm:%s153]
                %163 = vst [vmem:[%s161] sm:%s153] %v162
              $region74: #{custom-call.38} parent=68 // loop_footer
                %s159 = sadd.s32 1, %s155
              $region75: #{custom-call.38} parent=68 // loop_footer_branch
                %154 = sbr.rel target = $region71
              $region76: #{custom-call.38} parent=68 // loop_exit
                _
            $region69: #{custom-call.38} parent=53 // pred_fallthru
              _
          $region54: #{custom-call.38} parent=49 // pred_fallthru
            _
          // Predicated region
          $region55: #{custom-call.38} parent=49 // pred_check
            _
          $region56: #{custom-call.38} parent=49 // pred_check_branch
            %137 = sbr.rel (0) target = $region58
          $region57: #{custom-call.38} parent=49 // pred_region
            %s139 = ssub.s32 4, 1
            loop: start=0, step=1, limit=1
            $region59: #{custom-call.38} parent=57 // loop_pre_header
              _
            $region60: #{custom-call.38} parent=57 // loop_header
              %s141 = sphi 0, %s145
              %p142 = scmp.ge.s32.totalorder %s141, 1
              %s146 = sphi %s131, %s131
              %s147 = sphi %s129, %s129
            $region61: #{custom-call.38} parent=57 // loop_header_branch
              %144 = sbr.rel (%p142) target = $region65
            $region62: #{custom-call.38} parent=57 // loop_body
              %v148 = vld [vmem:[%s146] sm:%s139]
              %149 = vst [vmem:[%s147] sm:%s139] %v148
            $region63: #{custom-call.38} parent=57 // loop_footer
              %s145 = sadd.s32 1, %s141
            $region64: #{custom-call.38} parent=57 // loop_footer_branch
              %140 = sbr.rel target = $region60
            $region65: #{custom-call.38} parent=57 // loop_exit
              _
          $region58: #{custom-call.38} parent=49 // pred_fallthru
            _
        $region50: #{custom-call.38} parent=15 // pred_fallthru
          _
        %164 = vnop
        %s165 = sand.u32 %s12, 1
        %s166 = sand.u32 %s12, 1
        %s167 = smul.addr %s166, 2
        %s168 = scalar_lea.vmem [#allocation5], %s167
        %s169 = smul.addr %s12, 2
        %s170 = scalar_lea.vmem %s2, %s169
        // Predicated region
        $region77: #{custom-call.38} parent=15 // pred_check
          _
        $region78: #{custom-call.38} parent=15 // pred_check_branch
          %172 = sbr.rel (0) target = $region80
        $region79: #{custom-call.38} parent=15 // pred_region
          // Predicated region
          $region81: #{custom-call.38} parent=79 // pred_check
            _
          $region82: #{custom-call.38} parent=79 // pred_check_branch
            %174 = sbr.rel target = $region84
          $region83: #{custom-call.38} parent=79 // pred_region
            // Predicated region
            $region96: #{custom-call.38} parent=83 // pred_check
              _
            $region97: #{custom-call.38} parent=83 // pred_check_branch
              %190 = sbr.rel (0) target = $region99
            $region98: #{custom-call.38} parent=83 // pred_region
              %s192 = ssub.s32 4, 1
              loop: start=0, step=1, limit=1
              $region100: #{custom-call.38} parent=98 // loop_pre_header
                _
              $region101: #{custom-call.38} parent=98 // loop_header
                %s194 = sphi 0, %s198
                %p195 = scmp.ge.s32.totalorder %s194, 1
                %s199 = sphi %s170, %s170
                %s200 = sphi %s168, %s168
              $region102: #{custom-call.38} parent=98 // loop_header_branch
                %197 = sbr.rel (%p195) target = $region106
              $region103: #{custom-call.38} parent=98 // loop_body
                %v201 = vld [vmem:[%s199] sm:%s192]
                %202 = vst [vmem:[%s200] sm:%s192] %v201
              $region104: #{custom-call.38} parent=98 // loop_footer
                %s198 = sadd.s32 1, %s194
              $region105: #{custom-call.38} parent=98 // loop_footer_branch
                %193 = sbr.rel target = $region101
              $region106: #{custom-call.38} parent=98 // loop_exit
                _
            $region99: #{custom-call.38} parent=83 // pred_fallthru
              _
          $region84: #{custom-call.38} parent=79 // pred_fallthru
            _
          // Predicated region
          $region85: #{custom-call.38} parent=79 // pred_check
            _
          $region86: #{custom-call.38} parent=79 // pred_check_branch
            %176 = sbr.rel (0) target = $region88
          $region87: #{custom-call.38} parent=79 // pred_region
            %s178 = ssub.s32 4, 1
            loop: start=0, step=1, limit=1
            $region89: #{custom-call.38} parent=87 // loop_pre_header
              _
            $region90: #{custom-call.38} parent=87 // loop_header
              %s180 = sphi 0, %s184
              %p181 = scmp.ge.s32.totalorder %s180, 1
              %s185 = sphi %s170, %s170
              %s186 = sphi %s168, %s168
            $region91: #{custom-call.38} parent=87 // loop_header_branch
              %183 = sbr.rel (%p181) target = $region95
            $region92: #{custom-call.38} parent=87 // loop_body
              %v187 = vld [vmem:[%s185] sm:%s178]
              %188 = vst [vmem:[%s186] sm:%s178] %v187
            $region93: #{custom-call.38} parent=87 // loop_footer
              %s184 = sadd.s32 1, %s180
            $region94: #{custom-call.38} parent=87 // loop_footer_branch
              %179 = sbr.rel target = $region90
            $region95: #{custom-call.38} parent=87 // loop_exit
              _
          $region88: #{custom-call.38} parent=79 // pred_fallthru
            _
        $region80: #{custom-call.38} parent=15 // pred_fallthru
          _
        %203 = vnop
        %s204 = sand.u32 %s12, 1
        %s205 = sand.u32 %s12, 1
        %s206 = smul.addr %s205, 2
        %s207 = scalar_lea.vmem [#allocation7], %s206
        %s208 = smul.addr %s12, 2
        %s209 = scalar_lea.vmem %s3, %s208
        // Predicated region
        $region107: #{custom-call.38} parent=15 // pred_check
          _
        $region108: #{custom-call.38} parent=15 // pred_check_branch
          %211 = sbr.rel (0) target = $region110
        $region109: #{custom-call.38} parent=15 // pred_region
          // Predicated region
          $region111: #{custom-call.38} parent=109 // pred_check
            _
          $region112: #{custom-call.38} parent=109 // pred_check_branch
            %213 = sbr.rel target = $region114
          $region113: #{custom-call.38} parent=109 // pred_region
            // Predicated region
            $region126: #{custom-call.38} parent=113 // pred_check
              _
            $region127: #{custom-call.38} parent=113 // pred_check_branch
              %229 = sbr.rel (0) target = $region129
            $region128: #{custom-call.38} parent=113 // pred_region
              %s231 = ssub.s32 4, 1
              loop: start=0, step=1, limit=1
              $region130: #{custom-call.38} parent=128 // loop_pre_header
                _
              $region131: #{custom-call.38} parent=128 // loop_header
                %s233 = sphi 0, %s237
                %p234 = scmp.ge.s32.totalorder %s233, 1
                %s238 = sphi %s209, %s209
                %s239 = sphi %s207, %s207
              $region132: #{custom-call.38} parent=128 // loop_header_branch
                %236 = sbr.rel (%p234) target = $region136
              $region133: #{custom-call.38} parent=128 // loop_body
                %v240 = vld [vmem:[%s238] sm:%s231]
                %241 = vst [vmem:[%s239] sm:%s231] %v240
              $region134: #{custom-call.38} parent=128 // loop_footer
                %s237 = sadd.s32 1, %s233
              $region135: #{custom-call.38} parent=128 // loop_footer_branch
                %232 = sbr.rel target = $region131
              $region136: #{custom-call.38} parent=128 // loop_exit
                _
            $region129: #{custom-call.38} parent=113 // pred_fallthru
              _
          $region114: #{custom-call.38} parent=109 // pred_fallthru
            _
          // Predicated region
          $region115: #{custom-call.38} parent=109 // pred_check
            _
          $region116: #{custom-call.38} parent=109 // pred_check_branch
            %215 = sbr.rel (0) target = $region118
          $region117: #{custom-call.38} parent=109 // pred_region
            %s217 = ssub.s32 4, 1
            loop: start=0, step=1, limit=1
            $region119: #{custom-call.38} parent=117 // loop_pre_header
              _
            $region120: #{custom-call.38} parent=117 // loop_header
              %s219 = sphi 0, %s223
              %p220 = scmp.ge.s32.totalorder %s219, 1
              %s224 = sphi %s209, %s209
              %s225 = sphi %s207, %s207
            $region121: #{custom-call.38} parent=117 // loop_header_branch
              %222 = sbr.rel (%p220) target = $region125
            $region122: #{custom-call.38} parent=117 // loop_body
              %v226 = vld [vmem:[%s224] sm:%s217]
              %227 = vst [vmem:[%s225] sm:%s217] %v226
            $region123: #{custom-call.38} parent=117 // loop_footer
              %s223 = sadd.s32 1, %s219
            $region124: #{custom-call.38} parent=117 // loop_footer_branch
              %218 = sbr.rel target = $region120
            $region125: #{custom-call.38} parent=117 // loop_exit
              _
          $region118: #{custom-call.38} parent=109 // pred_fallthru
            _
        $region110: #{custom-call.38} parent=15 // pred_fallthru
          _
        %242 = vnop
      $region16: #{custom-call.38} parent=5 // pred_fallthru
        _
      %p243 = scmp.le.s32.totalorder 1, %s12
      %p244 = scmp.lt.s32.totalorder %s12, 3
      %p245 = pnand %p243, %p244
      %p246 = pneg %p245
      // Predicated region
      $region137: #{custom-call.38} parent=5 // pred_check
        _
      $region138: #{custom-call.38} parent=5 // pred_check_branch
        %248 = sbr.rel (%p245) target = $region140
      $region139: #{custom-call.38} parent=5 // pred_region
        #allocation20 [shape = 'f32[2,2]{1,0}', space=vmem, size = 0x1000, scoped, tag = 'a top-left matrix']
        #allocation21 [shape = 'f32[2,2]{1,0}', space=vmem, size = 0x1000, scoped, tag = 'a top-right matrix']
        #allocation22 [shape = 'f32[2,2]{1,0}', space=vmem, size = 0x1000, scoped, tag = 'a bottom-left matrix']
        #allocation23 [shape = 'f32[2,2]{1,0}', space=vmem, size = 0x1000, scoped, tag = 'a bottom-right matrix']
        %s249 = ssub.s32 %s12, 1
        %s250 = sand.u32 %s17, 1
        %s251 = sand.u32 %s17, 1
        %s252 = smul.addr %s251, 2
        %s253 = scalar_lea.vmem [#allocation1], %s252
        %s254 = sand.u32 %s17, 1
        %s255 = sand.u32 %s17, 1
        %s256 = smul.addr %s255, 2
        %s257 = scalar_lea.vmem [#allocation3], %s256
        %s258 = sand.u32 %s17, 1
        %s259 = sand.u32 %s17, 1
        %s260 = smul.addr %s259, 2
        %s261 = scalar_lea.vmem [#allocation5], %s260
        %s262 = sand.u32 %s17, 1
        %s263 = sand.u32 %s17, 1
        %s264 = smul.addr %s263, 2
        %s265 = scalar_lea.vmem [#allocation7], %s264
        %s266 = sand.u32 %s17, 1
        %s267 = sand.u32 %s17, 1
        %s268 = smul.addr %s267, 2
        %s269 = scalar_lea.vmem [#allocation1], %s268
        %s270 = sand.u32 %s17, 1
        %s271 = sand.u32 %s17, 1
        %s272 = smul.addr %s271, 2
        %s273 = scalar_lea.vmem [#allocation3], %s272
        %s274 = sand.u32 %s17, 1
        %s275 = sand.u32 %s17, 1
        %s276 = smul.addr %s275, 2
        %s277 = scalar_lea.vmem [#allocation5], %s276
        %s278 = sand.u32 %s17, 1
        %s279 = sand.u32 %s17, 1
        %s280 = smul.addr %s279, 2
        %s281 = scalar_lea.vmem [#allocation7], %s280
        %p282 = pneg %p40
        %p283 = pneg %p37
        %s284 = sand.u32 %s27, 1
        %s285 = sand.u32 %s27, 1
        %s286 = smul.addr %s285, 2
        %s287 = scalar_lea.vmem [#allocation9], %s286
        %p288 = pneg %p68
        %p289 = pneg %p65
        %s290 = sand.u32 %s55, 1
        %s291 = sand.u32 %s55, 1
        %s292 = smul.addr %s291, 2
        %s293 = scalar_lea.vmem [#allocation11], %s292
        %s294 = sand.u32 %s17, 1
        %s295 = sand.u32 %s17, 1
        %s296 = smul.addr %s295, 2
        %s297 = scalar_lea.vmem [#allocation13], %s296
        %s298 = sand.u32 %s17, 1
        %s299 = sand.u32 %s17, 1
        %s300 = smul.addr %s299, 2
        %s301 = scalar_lea.vmem [#allocation15], %s300
        %s302 = sand.u32 %s17, 1
        %s303 = sand.u32 %s17, 1
        %s304 = smul.addr %s303, 2
        %s305 = scalar_lea.vmem [#allocation17], %s304
        %s306 = sand.u32 %s17, 1
        %s307 = sand.u32 %s17, 1
        %s308 = smul.addr %s307, 2
        %s309 = scalar_lea.vmem [#allocation19], %s308
        %s311 = ssub.s32 4, 1
        %v312 = vld [vmem:[%s269] sm:%s311]
        %313 = vst [vmem:[#allocation0] sm:%s311] %v312
        %s315 = ssub.s32 4, 1
        %v316 = vld [vmem:[%s273] sm:%s315]
        %317 = vst [vmem:[#allocation2] sm:%s315] %v316
        %s319 = ssub.s32 4, 1
        %v320 = vld [vmem:[%s277] sm:%s319]
        %321 = vst [vmem:[#allocation4] sm:%s319] %v320
        %s323 = ssub.s32 4, 1
        %v324 = vld [vmem:[%s281] sm:%s323]
        %325 = vst [vmem:[#allocation6] sm:%s323] %v324
        %s326 = sshrl.u32 %s17, 3
        %s327 = sshrl.u32 %s17, 3
        %s328 = smov [#allocation20]
        %v329 = vld [vmem:[#allocation0] sm:$0xff]
        %330 = vst [vmem:[%s328] sm:$0xff] %v329
        %s331 = smov [#allocation21]
        %v332 = vld [vmem:[#allocation2] sm:$0xff]
        %333 = vst [vmem:[%s331] sm:$0xff] %v332
        %s334 = smov [#allocation22]
        %v335 = vld [vmem:[#allocation4] sm:$0xff]
        %336 = vst [vmem:[%s334] sm:$0xff] %v335
        %s337 = smov [#allocation23]
        %v338 = vld [vmem:[#allocation6] sm:$0xff]
        %339 = vst [vmem:[%s337] sm:$0xff] %v338
        %340 = vst [vmem:[#allocation12] sm:$0xff] 0.0
        %341 = vst [vmem:[#allocation14] sm:$0xff] 0.0
        %342 = vst [vmem:[#allocation16] sm:$0xff] 0.0
        %343 = vst [vmem:[#allocation18] sm:$0xff] 0.0
        %s344 = smov [#allocation12]
        %v345 = vlaneseq
        %v346 = vand.u32 %v345, 127
        %v347 = vmov %v346
        %v348 = vlaneseq
        %v349 = vshrl.u32 %v348, 7
        %v350 = vmov %v349
        %v351 = vld [vmem:[%s344] sm:$0x3]
        %vm354 = vcmp.eq.s32.totalorder %v350, %v347
        %v355 = vsel %vm354, 1.0, %v351
        %356 = vst [vmem:[%s344] sm:$0x3] %v355
        %s357 = smov [#allocation18]
        %v358 = vlaneseq
        %v359 = vand.u32 %v358, 127
        %v360 = vmov %v359
        %v361 = vlaneseq
        %v362 = vshrl.u32 %v361, 7
        %v363 = vmov %v362
        %v364 = vld [vmem:[%s357] sm:$0x3]
        %vm367 = vcmp.eq.s32.totalorder %v363, %v360
        %v368 = vsel %vm367, 1.0, %v364
        %369 = vst [vmem:[%s357] sm:$0x3] %v368
        // While loop
        $region141: #{custom-call.38} parent=139 // loop_pre_header
          _
        $region142: #{custom-call.38} parent=139 // loop_header
          %s371 = sphi 0, %s953
          %v372 = vlaneseq
          %v373 = vand.u32 %v372, 127
          %v374 = vmov %v373
          %v375 = vlaneseq
          %v376 = vshrl.u32 %v375, 7
          %v377 = vmov %v376
          %s378 = smov [#allocation20]
          %v379 = vlaneseq
          %v380 = vand.u32 %v379, 127
          %vm381 = vcmp.ge.s32.totalorder %v380, 0
          %vm382 = vcmp.lt.s32.totalorder %v380, 2
          %vm383 = vmand %vm381, %vm382
          %v384 = vld [vmem:[%s378] sm:$0x3]
          %v385 = vsel %vm383, %v384, 0.0
          %v386 = vmul.f32 %v385, %v385
          %vm389 = vcmp.eq.s32.totalorder %v377, %v374
          %v390 = vsel %vm389, 0.0, %v386
          %v391 = vlaneseq
          %v392 = vand.u32 %v391, 127
          %v393 = vmov %v392
          %v394 = vlaneseq
          %v395 = vshrl.u32 %v394, 7
          %v396 = vmov %v395
          %s397 = smov [#allocation21]
          %v398 = vlaneseq
          %v399 = vand.u32 %v398, 127
          %vm400 = vcmp.ge.s32.totalorder %v399, 0
          %vm401 = vcmp.lt.s32.totalorder %v399, 2
          %vm402 = vmand %vm400, %vm401
          %v403 = vld [vmem:[%s397] sm:$0x3]
          %v404 = vsel %vm402, %v403, 0.0
          %v405 = vmul.f32 %v404, %v404
          %v406 = vadd.f32 %v390, %v405
          %v407 = vadd.f32 %v386, %v405
          %v408 = vlaneseq
          %v409 = vand.u32 %v408, 127
          %v410 = vmov %v409
          %v411 = vlaneseq
          %v412 = vshrl.u32 %v411, 7
          %v413 = vmov %v412
          %s414 = smov [#allocation22]
          %v415 = vlaneseq
          %v416 = vand.u32 %v415, 127
          %vm417 = vcmp.ge.s32.totalorder %v416, 0
          %vm418 = vcmp.lt.s32.totalorder %v416, 2
          %vm419 = vmand %vm417, %vm418
          %v420 = vld [vmem:[%s414] sm:$0x3]
          %v421 = vsel %vm419, %v420, 0.0
          %v422 = vmul.f32 %v421, %v421
          %v423 = vadd.f32 %v406, %v422
          %v424 = vadd.f32 %v407, %v422
          %v425 = vlaneseq
          %v426 = vand.u32 %v425, 127
          %v427 = vmov %v426
          %v428 = vlaneseq
          %v429 = vshrl.u32 %v428, 7
          %v430 = vmov %v429
          %s431 = smov [#allocation23]
          %v432 = vlaneseq
          %v433 = vand.u32 %v432, 127
          %vm434 = vcmp.ge.s32.totalorder %v433, 0
          %vm435 = vcmp.lt.s32.totalorder %v433, 2
          %vm436 = vmand %vm434, %vm435
          %v437 = vld [vmem:[%s431] sm:$0x3]
          %v438 = vsel %vm436, %v437, 0.0
          %v439 = vmul.f32 %v438, %v438
          %vm442 = vcmp.eq.s32.totalorder %v430, %v427
          %v443 = vsel %vm442, 0.0, %v439
          %v444 = vadd.f32 %v423, %v443
          %v445 = vadd.f32 %v424, %v439
          %446 = vadd.xlane.f32.xlu0 %v445
          %v447 = vpop.xlane.xlu0 %446
          %v448 = vrot.slane %v447, 4
          %v449 = vadd.f32 %v447, %v448
          %v450 = vrot.slane %v449, 2
          %v451 = vadd.f32 %v449, %v450
          %v452 = vrot.slane %v451, 1
          %v453 = vadd.f32 %v451, %v452
          %454 = vadd.xlane.f32.xlu0 %v444
          %v455 = vpop.xlane.xlu0 %454
          %v456 = vrot.slane %v455, 4
          %v457 = vadd.f32 %v455, %v456
          %v458 = vrot.slane %v457, 2
          %v459 = vadd.f32 %v457, %v458
          %v460 = vrot.slane %v459, 1
          %v461 = vadd.f32 %v459, %v460
          %s462 = vtos %v461
          %s463 = vtos %v453
          %s464 = smul.f32 1e-10, %s463
          %p465 = scmp.le.f32.partialorder %s462, %s464
          %p466 = scmp.ge.s32.totalorder %s371, 15
          %p467 = por %p465, %p466
        $region143: #{custom-call.38} parent=139 // loop_header_branch
          %955 = sbr.rel (%p467) target = $region147
        $region144: #{custom-call.38} parent=139 // loop_body
          loop: start=0, step=1, limit=3
          $region148: #{custom-call.38} parent=144 // loop_pre_header
            _
          $region149: #{custom-call.38} parent=144 // loop_header
            %s469 = sphi 0, %s473
            %p470 = scmp.ge.s32.totalorder %s469, 3
          $region150: #{custom-call.38} parent=144 // loop_header_branch
            %472 = sbr.rel (%p470) target = $region154
          $region151: #{custom-call.38} parent=144 // loop_body
            #allocation24 [shape = 'f32[1024]{0}', space=vmem, size = 0x1000, scoped, tag = 'a_tl_diag vmem']
            #allocation25 [shape = 'f32[1024]{0}', space=vmem, size = 0x1000, scoped, tag = 'a_tr_diag vmem']
            #allocation26 [shape = 'f32[1024]{0}', space=vmem, size = 0x1000, scoped, tag = 'a_br_diag vmem']
            #allocation27 [shape = 'f32[1024]{0}', space=vmem, size = 0x1000, scoped, tag = 'rt1 vmem']
            #allocation28 [shape = 'f32[1024]{0}', space=vmem, size = 0x1000, scoped, tag = 'rt2 vmem']
            #allocation29 [shape = 'f32[1024]{0}', space=vmem, size = 0x1000, scoped, tag = 'c vmem']
            #allocation30 [shape = 'f32[1024]{0}', space=vmem, size = 0x1000, scoped, tag = 's vmem']
            #allocation31 [shape = 'f32[4096]{0}', space=vmem, size = 0x4000, scoped, tag = 'c broadcast']
            #allocation32 [shape = 'f32[4096]{0}', space=vmem, size = 0x4000, scoped, tag = 's broadcast']
            %s474 = smov [#allocation20]
            %s475 = smov [#allocation24]
            %v476 = vlaneseq
            %v477 = vand.u32 %v476, 127
            %v478 = vmov %v477
            %v479 = vlaneseq
            %v480 = vshrl.u32 %v479, 7
            %v481 = vmov %v480
            %v482 = vld [vmem:[%s474] sm:$0x3]
            %vm485 = vcmp.eq.s32.totalorder %v481, %v478
            %v486 = vsel %vm485, %v482, 0.0
            %v487 = vrot.slane %v486, 4
            %v488 = vadd.f32 %v486, %v487
            %v489 = vrot.slane %v488, 2
            %v490 = vadd.f32 %v488, %v489
            %v491 = vrot.slane %v490, 1
            %v492 = vadd.f32 %v490, %v491
            %493 = vst [vmem:[%s475] sm:$0x1] %v492
            %s494 = smov [#allocation21]
            %s495 = smov [#allocation25]
            %v496 = vlaneseq
            %v497 = vand.u32 %v496, 127
            %v498 = vmov %v497
            %v499 = vlaneseq
            %v500 = vshrl.u32 %v499, 7
            %v501 = vmov %v500
            %v502 = vld [vmem:[%s494] sm:$0x3]
            %vm505 = vcmp.eq.s32.totalorder %v501, %v498
            %v506 = vsel %vm505, %v502, 0.0
            %v507 = vrot.slane %v506, 4
            %v508 = vadd.f32 %v506, %v507
            %v509 = vrot.slane %v508, 2
            %v510 = vadd.f32 %v508, %v509
            %v511 = vrot.slane %v510, 1
            %v512 = vadd.f32 %v510, %v511
            %513 = vst [vmem:[%s495] sm:$0x1] %v512
            %s514 = smov [#allocation23]
            %s515 = smov [#allocation26]
            %v516 = vlaneseq
            %v517 = vand.u32 %v516, 127
            %v518 = vmov %v517
            %v519 = vlaneseq
            %v520 = vshrl.u32 %v519, 7
            %v521 = vmov %v520
            %v522 = vld [vmem:[%s514] sm:$0x3]
            %vm525 = vcmp.eq.s32.totalorder %v521, %v518
            %v526 = vsel %vm525, %v522, 0.0
            %v527 = vrot.slane %v526, 4
            %v528 = vadd.f32 %v526, %v527
            %v529 = vrot.slane %v528, 2
            %v530 = vadd.f32 %v528, %v529
            %v531 = vrot.slane %v530, 1
            %v532 = vadd.f32 %v530, %v531
            %533 = vst [vmem:[%s515] sm:$0x1] %v532
            %s534 = smov [#allocation29]
            %s535 = smov [#allocation30]
            %s536 = smov [#allocation24]
            %v537 = vld [vmem:[%s536] sm:$0xff]
            %s538 = smov [#allocation25]
            %v539 = vld [vmem:[%s538] sm:$0xff]
            %s540 = smov [#allocation26]
            %v541 = vld [vmem:[%s540] sm:$0xff]
            %v542 = vsub.f32 %v541, %v537
            %v543 = vmul.f32 2.0, %v539
            %v544 = vrcp.pop %v543
            %v545 = vmul.f32 %v543, %v544
            %v546 = vsub.f32 1.0, %v545
            %v547 = vmul.f32 %v544, %v546
            %v548 = vadd.f32 %v544, %v547
            %vm549 = vweird.f32 %v543
            %vm550 = vweird.f32 %v544
            %vm551 = vmor %vm549, %vm550
            %v552 = vsel %vm551, %v544, %v548
            %v553 = vand.u32 2147483647, %v543
            %vm554 = vcmp.eq.f32.partialorder %v553, 8.507059e+37
            %v555 = vand.u32 %v543, 2147483648
            %v556 = vor.u32 1.1754944e-38, %v555
            %v557 = vsel %vm554, %v556, %v552
            %v558 = vmul.f32 %v542, %v557
            %vm559 = vcmp.ge.f32.partialorder %v558, 0.0
            %v560 = vmul.f32 %v558, %v558
            %v561 = vadd.f32 1.0, %v560
            %v562 = vrsqrt.pop %v561
            %v563 = vmul.f32 %v562, %v561
            %v564 = vmul.f32 %v563, %v562
            %v565 = vmul.f32 0.5, %v564
            %v566 = vsub.f32 1.5, %v565
            %v567 = vmul.f32 %v562, %v566
            %v568 = vmul.f32 %v561, %v567
            %vm569 = vcmp.eq.f32.partialorder %v561, inf
            %v570 = vsel %vm569, %v561, %v568
            %vm571 = vcmp.eq.f32.partialorder %v561, 0.0
            %v572 = vand.u32 %v561, 2147483648
            %v573 = vsel %vm571, %v572, %v570
            %v574 = vxor.u32 %v573, 2147483648
            %v575 = vsel %vm559, %v573, %v574
            %v576 = vadd.f32 %v558, %v575
            %v577 = vrcp.pop %v576
            %v578 = vmul.f32 %v576, %v577
            %v579 = vsub.f32 1.0, %v578
            %v580 = vmul.f32 %v577, %v579
            %v581 = vadd.f32 %v577, %v580
            %vm582 = vweird.f32 %v576
            %vm583 = vweird.f32 %v577
            %vm584 = vmor %vm582, %vm583
            %v585 = vsel %vm584, %v577, %v581
            %v586 = vand.u32 2147483647, %v576
            %vm587 = vcmp.eq.f32.partialorder %v586, 8.507059e+37
            %v588 = vand.u32 %v576, 2147483648
            %v589 = vor.u32 1.1754944e-38, %v588
            %v590 = vsel %vm587, %v589, %v585
            %v591 = vand.u32 2147483647, %v537
            %v592 = vand.u32 2147483647, %v539
            %v593 = vand.u32 2147483647, %v541
            %v594 = vmin.f32 %v591, %v593
            %v595 = vmul.f32 1.1920929e-08, %v594
            %vm596 = vcmp.le.f32.partialorder %v592, %v595
            %v597 = vsel %vm596, 0.0, %v590
            %v598 = vmul.f32 %v597, %v597
            %v599 = vadd.f32 1.0, %v598
            %v600 = vrsqrt.pop %v599
            %v601 = vmul.f32 %v600, %v599
            %v602 = vmul.f32 %v601, %v600
            %v603 = vmul.f32 0.5, %v602
            %v604 = vsub.f32 1.5, %v603
            %v605 = vmul.f32 %v600, %v604
            %vm606 = vweird.f32 %v599
            %vm607 = vweird.f32 %v600
            %vm608 = vmor %vm606, %vm607
            %v609 = vsel %vm608, %v600, %v605
            %v610 = vmul.f32 %v597, %v609
            %v611 = vmul.f32 %v597, %v539
            %v612 = vsub.f32 %v537, %v611
            %v613 = vmul.f32 %v597, %v539
            %v614 = vadd.f32 %v541, %v613
            %s615 = smov [#allocation27]
            %616 = vst [vmem:[%s615] sm:$0xff] %v612
            %s617 = smov [#allocation28]
            %618 = vst [vmem:[%s617] sm:$0xff] %v614
            %s619 = smov %s534
            %620 = vst [vmem:[%s619] sm:$0xff] %v609
            %s621 = smov %s535
            %622 = vst [vmem:[%s621] sm:$0xff] %v610
            %s623 = smov [#allocation29]
            %v624 = vld [vmem:[%s623] ss:$0 sm:$0xff]
            %v625 = vlaneseq
            %v626 = vand.u32 %v625, 127
            %v627 = vmov %v626
            %v628 = vlaneseq
            %v629 = vshrl.u32 %v628, 7
            %v630 = vmov %v629
            %vm632 = vcmp.eq.s32.totalorder %v630, %v627
            %v633 = vsel %vm632, %v624, 0.0
            %634 = vadd.xlane.f32.xlu0 %v633
            %v635 = vpop.xlane.xlu0 %634
            %s636 = smov [#allocation31]
            %637 = vst [vmem:[%s636] sm:$0xff] %v635
            %s638 = smov [#allocation30]
            %v639 = vld [vmem:[%s638] ss:$0 sm:$0xff]
            %v640 = vlaneseq
            %v641 = vand.u32 %v640, 127
            %v642 = vmov %v641
            %v643 = vlaneseq
            %v644 = vshrl.u32 %v643, 7
            %v645 = vmov %v644
            %vm647 = vcmp.eq.s32.totalorder %v645, %v642
            %v648 = vsel %vm647, %v639, 0.0
            %649 = vadd.xlane.f32.xlu0 %v648
            %v650 = vpop.xlane.xlu0 %649
            %s651 = smov [#allocation32]
            %652 = vst [vmem:[%s651] sm:$0xff] %v650
            %s653 = smov [#allocation31]
            %v654 = vld [vmem:[%s653] sm:$0xff]
            %s655 = smov [#allocation32]
            %v656 = vld [vmem:[%s655] sm:$0xff]
            %s657 = smov [#allocation20]
            %s658 = smov [#allocation21]
            %s659 = smov [#allocation22]
            %s660 = smov [#allocation23]
            %v661 = vld [vmem:[%s657] sm:$0x3]
            %v662 = vld [vmem:[%s658] sm:$0x3]
            %v663 = vld [vmem:[%s659] sm:$0x3]
            %v664 = vld [vmem:[%s660] sm:$0x3]
            %v665 = vmul.f32 %v654, %v661
            %v666 = vmul.f32 %v656, %v663
            %v667 = vsub.f32 %v665, %v666
            %v668 = vmul.f32 %v654, %v662
            %v669 = vmul.f32 %v656, %v664
            %v670 = vsub.f32 %v668, %v669
            %v671 = vmul.f32 %v656, %v661
            %v672 = vmul.f32 %v654, %v663
            %v673 = vadd.f32 %v671, %v672
            %v674 = vmul.f32 %v656, %v662
            %v675 = vmul.f32 %v654, %v664
            %v676 = vadd.f32 %v674, %v675
            %677 = vst [vmem:[%s657] sm:$0x3] %v667
            %678 = vst [vmem:[%s658] sm:$0x3] %v670
            %679 = vst [vmem:[%s659] sm:$0x3] %v673
            %680 = vst [vmem:[%s660] sm:$0x3] %v676
            %s681 = smov [#allocation29]
            %v682 = vld [vmem:[%s681] ss:$0 sm:$0xff]
            %s683 = smov [#allocation30]
            %v684 = vld [vmem:[%s683] ss:$0 sm:$0xff]
            %s685 = smov [#allocation20]
            %s686 = smov [#allocation21]
            %s687 = smov [#allocation22]
            %s688 = smov [#allocation23]
            %v689 = vld [vmem:[%s685] sm:$0x3]
            %v690 = vld [vmem:[%s686] sm:$0x3]
            %v691 = vld [vmem:[%s687] sm:$0x3]
            %v692 = vld [vmem:[%s688] sm:$0x3]
            %v693 = vmul.f32 %v682, %v689
            %v694 = vmul.f32 %v684, %v690
            %v695 = vsub.f32 %v693, %v694
            %v696 = vmul.f32 %v684, %v689
            %v697 = vmul.f32 %v682, %v690
            %v698 = vadd.f32 %v696, %v697
            %v699 = vmul.f32 %v682, %v691
            %v700 = vmul.f32 %v684, %v692
            %v701 = vsub.f32 %v699, %v700
            %v702 = vmul.f32 %v684, %v691
            %v703 = vmul.f32 %v682, %v692
            %v704 = vadd.f32 %v702, %v703
            %705 = vst [vmem:[%s685] sm:$0x3] %v695
            %706 = vst [vmem:[%s686] sm:$0x3] %v698
            %707 = vst [vmem:[%s687] sm:$0x3] %v701
            %708 = vst [vmem:[%s688] sm:$0x3] %v704
            %s709 = smov [#allocation20]
            %s710 = smov [#allocation27]
            %v711 = vlaneseq
            %v712 = vand.u32 %v711, 127
            %v713 = vmov %v712
            %v714 = vlaneseq
            %v715 = vshrl.u32 %v714, 7
            %v716 = vmov %v715
            %v717 = vld [vmem:[%s710] ss:$0 sm:$0xff]
            %v718 = vld [vmem:[%s709] sm:$0x3]
            %vm721 = vcmp.eq.s32.totalorder %v716, %v713
            %v722 = vsel %vm721, %v717, %v718
            %723 = vst [vmem:[%s709] sm:$0x3] %v722
            %s724 = smov [#allocation21]
            %v725 = vlaneseq
            %v726 = vand.u32 %v725, 127
            %v727 = vmov %v726
            %v728 = vlaneseq
            %v729 = vshrl.u32 %v728, 7
            %v730 = vmov %v729
            %v731 = vld [vmem:[%s724] sm:$0x3]
            %vm734 = vcmp.eq.s32.totalorder %v730, %v727
            %v735 = vsel %vm734, 0.0, %v731
            %736 = vst [vmem:[%s724] sm:$0x3] %v735
            %s737 = smov [#allocation22]
            %v738 = vlaneseq
            %v739 = vand.u32 %v738, 127
            %v740 = vmov %v739
            %v741 = vlaneseq
            %v742 = vshrl.u32 %v741, 7
            %v743 = vmov %v742
            %v744 = vld [vmem:[%s737] sm:$0x3]
            %vm747 = vcmp.eq.s32.totalorder %v743, %v740
            %v748 = vsel %vm747, 0.0, %v744
            %749 = vst [vmem:[%s737] sm:$0x3] %v748
            %s750 = smov [#allocation23]
            %s751 = smov [#allocation28]
            %v752 = vlaneseq
            %v753 = vand.u32 %v752, 127
            %v754 = vmov %v753
            %v755 = vlaneseq
            %v756 = vshrl.u32 %v755, 7
            %v757 = vmov %v756
            %v758 = vld [vmem:[%s751] ss:$0 sm:$0xff]
            %v759 = vld [vmem:[%s750] sm:$0x3]
            %vm762 = vcmp.eq.s32.totalorder %v757, %v754
            %v763 = vsel %vm762, %v758, %v759
            %764 = vst [vmem:[%s750] sm:$0x3] %v763
            %s765 = smov [#allocation20]
            %s766 = smov [#allocation21]
            %v767 = vld [vmem:[%s766] sm:$0x3]
            %768 = vrot.lane.b32.xlu0 %v767, 1
            %v769 = vpop.permute.xlu0 %768
            %v770 = vld [vmem:[%s765] sm:$0x3]
            %v771 = vld [vmem:[%s765] sm:$0x3]
            %772 = vrot.lane.b32.xlu0 %v771, 1
            %v773 = vpop.permute.xlu0 %772
            %v774 = vlaneseq
            %v775 = vand.u32 %v774, 127
            %vm776 = vcmp.eq.s32.totalorder %v775, 0
            %v777 = vsel %vm776, %v771, %v773
            %v778 = vlaneseq
            %v779 = vand.u32 %v778, 127
            %vm780 = vcmp.eq.s32.totalorder %v779, 1
            %v781 = vsel %vm780, %v769, %v777
            %v782 = vlaneseq
            %v783 = vand.u32 %v782, 127
            %vm784 = vcmp.ge.s32.totalorder %v783, 0
            %vm785 = vcmp.lt.s32.totalorder %v783, 2
            %vm786 = vmand %vm784, %vm785
            %v787 = vsel %vm786, %v781, 0.0
            %v788 = vld [vmem:[%s766] sm:$0x3]
            %789 = vrot.lane.b32.xlu0 %v788, 127
            %v790 = vpop.permute.xlu0 %789
            %v791 = vlaneseq
            %v792 = vand.u32 %v791, 127
            %vm793 = vcmp.eq.s32.totalorder %v792, 1
            %v794 = vsel %vm793, %v770, %v790
            %795 = vst [vmem:[%s765] sm:$0x3] %v787
            %796 = vst [vmem:[%s766] sm:$0x3] %v794
            %s797 = smov [#allocation22]
            %s798 = smov [#allocation23]
            %v799 = vld [vmem:[%s798] sm:$0x3]
            %800 = vrot.lane.b32.xlu0 %v799, 1
            %v801 = vpop.permute.xlu0 %800
            %v802 = vld [vmem:[%s797] sm:$0x3]
            %v803 = vld [vmem:[%s797] sm:$0x3]
            %804 = vrot.lane.b32.xlu0 %v803, 1
            %v805 = vpop.permute.xlu0 %804
            %v806 = vlaneseq
            %v807 = vand.u32 %v806, 127
            %vm808 = vcmp.eq.s32.totalorder %v807, 0
            %v809 = vsel %vm808, %v803, %v805
            %v810 = vlaneseq
            %v811 = vand.u32 %v810, 127
            %vm812 = vcmp.eq.s32.totalorder %v811, 1
            %v813 = vsel %vm812, %v801, %v809
            %v814 = vlaneseq
            %v815 = vand.u32 %v814, 127
            %vm816 = vcmp.ge.s32.totalorder %v815, 0
            %vm817 = vcmp.lt.s32.totalorder %v815, 2
            %vm818 = vmand %vm816, %vm817
            %v819 = vsel %vm818, %v813, 0.0
            %v820 = vld [vmem:[%s798] sm:$0x3]
            %821 = vrot.lane.b32.xlu0 %v820, 127
            %v822 = vpop.permute.xlu0 %821
            %v823 = vlaneseq
            %v824 = vand.u32 %v823, 127
            %vm825 = vcmp.eq.s32.totalorder %v824, 1
            %v826 = vsel %vm825, %v802, %v822
            %827 = vst [vmem:[%s797] sm:$0x3] %v819
            %828 = vst [vmem:[%s798] sm:$0x3] %v826
            %s829 = smov [#allocation20]
            %s830 = smov [#allocation22]
            %v831 = vld [vmem:[%s829] ss:$0 sm:$0xff]
            %s833 = scalar_lea.vmem %s829, 4294967295
            %v834 = vld [vmem:[%s833] sm:$0x2]
            %v835 = vlaneseq
            %v836 = vshrl.u32 %v835, 7
            %vm837 = vcmp.eq.s32.totalorder %v836, 0
            %v838 = vsel %vm837, %v831, %v834
            %s839 = scalar_lea.vmem %s829, 1
            %v840 = vld [vmem:[%s839] ss:$0 sm:$0xff]
            %841 = vst [vmem:[%s829] sm:$0x3] %v838
            %v842 = vld [vmem:[%s830] ss:$0 sm:$0xff]
            %s843 = scalar_lea.vmem %s829, 1
            %844 = vst [vmem:[%s843] sm:$0x1] %v842
            %s845 = scalar_lea.vmem %s830, 1
            %v846 = vld [vmem:[%s845] sm:$0x1]
            %v847 = vlaneseq
            %v848 = vshrl.u32 %v847, 7
            %vm849 = vcmp.eq.s32.totalorder %v848, 1
            %v850 = vsel %vm849, %v840, %v846
            %v851 = vld [vmem:[%s830] ss:$0 sm:$0xff]
            %852 = vst [vmem:[%s830] sm:$0x3] %v850
            %s853 = smov [#allocation21]
            %s854 = smov [#allocation23]
            %v855 = vld [vmem:[%s853] ss:$0 sm:$0xff]
            %s857 = scalar_lea.vmem %s853, 4294967295
            %v858 = vld [vmem:[%s857] sm:$0x2]
            %v859 = vlaneseq
            %v860 = vshrl.u32 %v859, 7
            %vm861 = vcmp.eq.s32.totalorder %v860, 0
            %v862 = vsel %vm861, %v855, %v858
            %s863 = scalar_lea.vmem %s853, 1
            %v864 = vld [vmem:[%s863] ss:$0 sm:$0xff]
            %865 = vst [vmem:[%s853] sm:$0x3] %v862
            %v866 = vld [vmem:[%s854] ss:$0 sm:$0xff]
            %s867 = scalar_lea.vmem %s853, 1
            %868 = vst [vmem:[%s867] sm:$0x1] %v866
            %s869 = scalar_lea.vmem %s854, 1
            %v870 = vld [vmem:[%s869] sm:$0x1]
            %v871 = vlaneseq
            %v872 = vshrl.u32 %v871, 7
            %vm873 = vcmp.eq.s32.totalorder %v872, 1
            %v874 = vsel %vm873, %v864, %v870
            %v875 = vld [vmem:[%s854] ss:$0 sm:$0xff]
            %876 = vst [vmem:[%s854] sm:$0x3] %v874
            %s877 = smov [#allocation31]
            %v878 = vld [vmem:[%s877] sm:$0xff]
            %s879 = smov [#allocation32]
            %v880 = vld [vmem:[%s879] sm:$0xff]
            %s881 = smov [#allocation12]
            %s882 = smov [#allocation14]
            %s883 = smov [#allocation16]
            %s884 = smov [#allocation18]
            %v885 = vld [vmem:[%s881] sm:$0x3]
            %v886 = vld [vmem:[%s882] sm:$0x3]
            %v887 = vld [vmem:[%s883] sm:$0x3]
            %v888 = vld [vmem:[%s884] sm:$0x3]
            %v889 = vmul.f32 %v878, %v885
            %v890 = vmul.f32 %v880, %v887
            %v891 = vsub.f32 %v889, %v890
            %v892 = vmul.f32 %v878, %v886
            %v893 = vmul.f32 %v880, %v888
            %v894 = vsub.f32 %v892, %v893
            %v895 = vmul.f32 %v880, %v885
            %v896 = vmul.f32 %v878, %v887
            %v897 = vadd.f32 %v895, %v896
            %v898 = vmul.f32 %v880, %v886
            %v899 = vmul.f32 %v878, %v888
            %v900 = vadd.f32 %v898, %v899
            %901 = vst [vmem:[%s881] sm:$0x3] %v891
            %902 = vst [vmem:[%s882] sm:$0x3] %v894
            %903 = vst [vmem:[%s883] sm:$0x3] %v897
            %904 = vst [vmem:[%s884] sm:$0x3] %v900
            %s905 = smov [#allocation12]
            %s906 = smov [#allocation16]
            %v907 = vld [vmem:[%s905] ss:$0 sm:$0xff]
            %s909 = scalar_lea.vmem %s905, 4294967295
            %v910 = vld [vmem:[%s909] sm:$0x2]
            %v911 = vlaneseq
            %v912 = vshrl.u32 %v911, 7
            %vm913 = vcmp.eq.s32.totalorder %v912, 0
            %v914 = vsel %vm913, %v907, %v910
            %s915 = scalar_lea.vmem %s905, 1
            %v916 = vld [vmem:[%s915] ss:$0 sm:$0xff]
            %917 = vst [vmem:[%s905] sm:$0x3] %v914
            %v918 = vld [vmem:[%s906] ss:$0 sm:$0xff]
            %s919 = scalar_lea.vmem %s905, 1
            %920 = vst [vmem:[%s919] sm:$0x1] %v918
            %s921 = scalar_lea.vmem %s906, 1
            %v922 = vld [vmem:[%s921] sm:$0x1]
            %v923 = vlaneseq
            %v924 = vshrl.u32 %v923, 7
            %vm925 = vcmp.eq.s32.totalorder %v924, 1
            %v926 = vsel %vm925, %v916, %v922
            %v927 = vld [vmem:[%s906] ss:$0 sm:$0xff]
            %928 = vst [vmem:[%s906] sm:$0x3] %v926
            %s929 = smov [#allocation14]
            %s930 = smov [#allocation18]
            %v931 = vld [vmem:[%s929] ss:$0 sm:$0xff]
            %s933 = scalar_lea.vmem %s929, 4294967295
            %v934 = vld [vmem:[%s933] sm:$0x2]
            %v935 = vlaneseq
            %v936 = vshrl.u32 %v935, 7
            %vm937 = vcmp.eq.s32.totalorder %v936, 0
            %v938 = vsel %vm937, %v931, %v934
            %s939 = scalar_lea.vmem %s929, 1
            %v940 = vld [vmem:[%s939] ss:$0 sm:$0xff]
            %941 = vst [vmem:[%s929] sm:$0x3] %v938
            %v942 = vld [vmem:[%s930] ss:$0 sm:$0xff]
            %s943 = scalar_lea.vmem %s929, 1
            %944 = vst [vmem:[%s943] sm:$0x1] %v942
            %s945 = scalar_lea.vmem %s930, 1
            %v946 = vld [vmem:[%s945] sm:$0x1]
            %v947 = vlaneseq
            %v948 = vshrl.u32 %v947, 7
            %vm949 = vcmp.eq.s32.totalorder %v948, 1
            %v950 = vsel %vm949, %v940, %v946
            %v951 = vld [vmem:[%s930] ss:$0 sm:$0xff]
            %952 = vst [vmem:[%s930] sm:$0x3] %v950
          $region152: #{custom-call.38} parent=144 // loop_footer
            %s473 = sadd.s32 1, %s469
          $region153: #{custom-call.38} parent=144 // loop_footer_branch
            %468 = sbr.rel target = $region149
          $region154: #{custom-call.38} parent=144 // loop_exit
            _
          %s953 = sadd.s32 %s371, 1
        $region145: #{custom-call.38} parent=139 // loop_footer
          _
        $region146: #{custom-call.38} parent=139 // loop_footer_branch
          %370 = sbr.rel target = $region142
        $region147: #{custom-call.38} parent=139 // loop_exit
          _
        %s956 = sand.u32 %s17, 7
        %s957 = scalar_lea.vmem [#allocation8], %s956
        %s958 = sand.u32 %s17, 7
        %s959 = scalar_lea.vmem [#allocation10], %s958
        %s960 = smov [#allocation20]
        %s961 = smov %s957
        %v962 = vlaneseq
        %v963 = vand.u32 %v962, 127
        %v964 = vmov %v963
        %v965 = vlaneseq
        %v966 = vshrl.u32 %v965, 7
        %v967 = vmov %v966
        %v968 = vld [vmem:[%s960] sm:$0x3]
        %vm971 = vcmp.eq.s32.totalorder %v967, %v964
        %v972 = vsel %vm971, %v968, 0.0
        %v973 = vrot.slane %v972, 4
        %v974 = vadd.f32 %v972, %v973
        %v975 = vrot.slane %v974, 2
        %v976 = vadd.f32 %v974, %v975
        %v977 = vrot.slane %v976, 1
        %v978 = vadd.f32 %v976, %v977
        %979 = vst [vmem:[%s961] sm:$0x1] %v978
        %s980 = smov [#allocation23]
        %s981 = smov %s959
        %v982 = vlaneseq
        %v983 = vand.u32 %v982, 127
        %v984 = vmov %v983
        %v985 = vlaneseq
        %v986 = vshrl.u32 %v985, 7
        %v987 = vmov %v986
        %v988 = vld [vmem:[%s980] sm:$0x3]
        %vm991 = vcmp.eq.s32.totalorder %v987, %v984
        %v992 = vsel %vm991, %v988, 0.0
        %v993 = vrot.slane %v992, 4
        %v994 = vadd.f32 %v992, %v993
        %v995 = vrot.slane %v994, 2
        %v996 = vadd.f32 %v994, %v995
        %v997 = vrot.slane %v996, 1
        %v998 = vadd.f32 %v996, %v997
        %999 = vst [vmem:[%s981] sm:$0x1] %v998
        %s1001 = ssub.s32 4, 1
        %v1002 = vld [vmem:[#allocation8] sm:%s1001]
        %s1004 = ssub.s32 4, 1
        %1005 = vst [vmem:[%s287] sm:%s1004] %v1002
        %s1007 = ssub.s32 4, 1
        %v1008 = vld [vmem:[#allocation10] sm:%s1007]
        %s1010 = ssub.s32 4, 1
        %1011 = vst [vmem:[%s293] sm:%s1010] %v1008
        %s1013 = ssub.s32 4, 1
        %v1014 = vld [vmem:[#allocation12] sm:%s1013]
        %s1016 = ssub.s32 4, 1
        %1017 = vst [vmem:[%s297] sm:%s1016] %v1014
        %s1019 = ssub.s32 4, 1
        %v1020 = vld [vmem:[#allocation14] sm:%s1019]
        %s1022 = ssub.s32 4, 1
        %1023 = vst [vmem:[%s301] sm:%s1022] %v1020
        %s1025 = ssub.s32 4, 1
        %v1026 = vld [vmem:[#allocation16] sm:%s1025]
        %s1028 = ssub.s32 4, 1
        %1029 = vst [vmem:[%s305] sm:%s1028] %v1026
        %s1031 = ssub.s32 4, 1
        %v1032 = vld [vmem:[#allocation18] sm:%s1031]
        %s1034 = ssub.s32 4, 1
        %1035 = vst [vmem:[%s309] sm:%s1034] %v1032
        %s1036 = sand.u32 %s27, 1
        %s1037 = sand.u32 %s27, 1
        %s1038 = smul.addr %s1037, 2
        %s1039 = scalar_lea.vmem [#allocation9], %s1038
        %s1040 = sand.u32 %s55, 1
        %s1041 = sand.u32 %s55, 1
        %s1042 = smul.addr %s1041, 2
        %s1043 = scalar_lea.vmem [#allocation11], %s1042
        %s1044 = sand.u32 %s17, 1
        %s1045 = sand.u32 %s17, 1
        %s1046 = smul.addr %s1045, 2
        %s1047 = scalar_lea.vmem [#allocation13], %s1046
        %s1048 = sand.u32 %s17, 1
        %s1049 = sand.u32 %s17, 1
        %s1050 = smul.addr %s1049, 2
        %s1051 = scalar_lea.vmem [#allocation15], %s1050
        %s1052 = sand.u32 %s17, 1
        %s1053 = sand.u32 %s17, 1
        %s1054 = smul.addr %s1053, 2
        %s1055 = scalar_lea.vmem [#allocation17], %s1054
        %s1056 = sand.u32 %s17, 1
        %s1057 = sand.u32 %s17, 1
        %s1058 = smul.addr %s1057, 2
        %s1059 = scalar_lea.vmem [#allocation19], %s1058
        // Predicated region
        $region155: #{custom-call.38} parent=139 // pred_check
          %p1060 = pneg %p37
        $region156: #{custom-call.38} parent=139 // pred_check_branch
          %1062 = sbr.rel (%p1060) target = $region158
        $region157: #{custom-call.38} parent=139 // pred_region
          %s1063 = sshrl.u32 %s17, 3
          %s1064 = smul.addr %s1063, 2
          %s1065 = scalar_lea.vmem %s4, %s1064
          // Predicated region
          $region159: #{custom-call.38} parent=157 // pred_check
            _
          $region160: #{custom-call.38} parent=157 // pred_check_branch
            %1067 = sbr.rel (0) target = $region162
          $region161: #{custom-call.38} parent=157 // pred_region
            // Predicated region
            $region163: #{custom-call.38} parent=161 // pred_check
              _
            $region164: #{custom-call.38} parent=161 // pred_check_branch
              %1069 = sbr.rel target = $region166
            $region165: #{custom-call.38} parent=161 // pred_region
              // Predicated region
              $region178: #{custom-call.38} parent=165 // pred_check
                _
              $region179: #{custom-call.38} parent=165 // pred_check_branch
                %1085 = sbr.rel (0) target = $region181
              $region180: #{custom-call.38} parent=165 // pred_region
                %s1087 = ssub.s32 4, 1
                loop: start=0, step=1, limit=1
                $region182: #{custom-call.38} parent=180 // loop_pre_header
                  _
                $region183: #{custom-call.38} parent=180 // loop_header
                  %s1089 = sphi 0, %s1093
                  %p1090 = scmp.ge.s32.totalorder %s1089, 1
                  %s1094 = sphi %s1039, %s1039
                  %s1095 = sphi %s1065, %s1065
                $region184: #{custom-call.38} parent=180 // loop_header_branch
                  %1092 = sbr.rel (%p1090) target = $region188
                $region185: #{custom-call.38} parent=180 // loop_body
                  %v1096 = vld [vmem:[%s1094] sm:%s1087]
                  %1097 = vst [vmem:[%s1095] sm:%s1087] %v1096
                $region186: #{custom-call.38} parent=180 // loop_footer
                  %s1093 = sadd.s32 1, %s1089
                $region187: #{custom-call.38} parent=180 // loop_footer_branch
                  %1088 = sbr.rel target = $region183
                $region188: #{custom-call.38} parent=180 // loop_exit
                  _
              $region181: #{custom-call.38} parent=165 // pred_fallthru
                _
            $region166: #{custom-call.38} parent=161 // pred_fallthru
              _
            // Predicated region
            $region167: #{custom-call.38} parent=161 // pred_check
              _
            $region168: #{custom-call.38} parent=161 // pred_check_branch
              %1071 = sbr.rel (0) target = $region170
            $region169: #{custom-call.38} parent=161 // pred_region
              %s1073 = ssub.s32 4, 1
              loop: start=0, step=1, limit=1
              $region171: #{custom-call.38} parent=169 // loop_pre_header
                _
              $region172: #{custom-call.38} parent=169 // loop_header
                %s1075 = sphi 0, %s1079
                %p1076 = scmp.ge.s32.totalorder %s1075, 1
                %s1080 = sphi %s1039, %s1039
                %s1081 = sphi %s1065, %s1065
              $region173: #{custom-call.38} parent=169 // loop_header_branch
                %1078 = sbr.rel (%p1076) target = $region177
              $region174: #{custom-call.38} parent=169 // loop_body
                %v1082 = vld [vmem:[%s1080] sm:%s1073]
                %1083 = vst [vmem:[%s1081] sm:%s1073] %v1082
              $region175: #{custom-call.38} parent=169 // loop_footer
                %s1079 = sadd.s32 1, %s1075
              $region176: #{custom-call.38} parent=169 // loop_footer_branch
                %1074 = sbr.rel target = $region172
              $region177: #{custom-call.38} parent=169 // loop_exit
                _
            $region170: #{custom-call.38} parent=161 // pred_fallthru
              _
          $region162: #{custom-call.38} parent=157 // pred_fallthru
            _
          %1098 = vnop
        $region158: #{custom-call.38} parent=139 // pred_fallthru
          _
        // Predicated region
        $region189: #{custom-call.38} parent=139 // pred_check
          %p1099 = pneg %p65
        $region190: #{custom-call.38} parent=139 // pred_check_branch
          %1101 = sbr.rel (%p1099) target = $region192
        $region191: #{custom-call.38} parent=139 // pred_region
          %s1102 = sshrl.u32 %s17, 3
          %s1103 = smul.addr %s1102, 2
          %s1104 = scalar_lea.vmem %s5, %s1103
          // Predicated region
          $region193: #{custom-call.38} parent=191 // pred_check
            _
          $region194: #{custom-call.38} parent=191 // pred_check_branch
            %1106 = sbr.rel (0) target = $region196
          $region195: #{custom-call.38} parent=191 // pred_region
            // Predicated region
            $region197: #{custom-call.38} parent=195 // pred_check
              _
            $region198: #{custom-call.38} parent=195 // pred_check_branch
              %1108 = sbr.rel target = $region200
            $region199: #{custom-call.38} parent=195 // pred_region
              // Predicated region
              $region212: #{custom-call.38} parent=199 // pred_check
                _
              $region213: #{custom-call.38} parent=199 // pred_check_branch
                %1124 = sbr.rel (0) target = $region215
              $region214: #{custom-call.38} parent=199 // pred_region
                %s1126 = ssub.s32 4, 1
                loop: start=0, step=1, limit=1
                $region216: #{custom-call.38} parent=214 // loop_pre_header
                  _
                $region217: #{custom-call.38} parent=214 // loop_header
                  %s1128 = sphi 0, %s1132
                  %p1129 = scmp.ge.s32.totalorder %s1128, 1
                  %s1133 = sphi %s1043, %s1043
                  %s1134 = sphi %s1104, %s1104
                $region218: #{custom-call.38} parent=214 // loop_header_branch
                  %1131 = sbr.rel (%p1129) target = $region222
                $region219: #{custom-call.38} parent=214 // loop_body
                  %v1135 = vld [vmem:[%s1133] sm:%s1126]
                  %1136 = vst [vmem:[%s1134] sm:%s1126] %v1135
                $region220: #{custom-call.38} parent=214 // loop_footer
                  %s1132 = sadd.s32 1, %s1128
                $region221: #{custom-call.38} parent=214 // loop_footer_branch
                  %1127 = sbr.rel target = $region217
                $region222: #{custom-call.38} parent=214 // loop_exit
                  _
              $region215: #{custom-call.38} parent=199 // pred_fallthru
                _
            $region200: #{custom-call.38} parent=195 // pred_fallthru
              _
            // Predicated region
            $region201: #{custom-call.38} parent=195 // pred_check
              _
            $region202: #{custom-call.38} parent=195 // pred_check_branch
              %1110 = sbr.rel (0) target = $region204
            $region203: #{custom-call.38} parent=195 // pred_region
              %s1112 = ssub.s32 4, 1
              loop: start=0, step=1, limit=1
              $region205: #{custom-call.38} parent=203 // loop_pre_header
                _
              $region206: #{custom-call.38} parent=203 // loop_header
                %s1114 = sphi 0, %s1118
                %p1115 = scmp.ge.s32.totalorder %s1114, 1
                %s1119 = sphi %s1043, %s1043
                %s1120 = sphi %s1104, %s1104
              $region207: #{custom-call.38} parent=203 // loop_header_branch
                %1117 = sbr.rel (%p1115) target = $region211
              $region208: #{custom-call.38} parent=203 // loop_body
                %v1121 = vld [vmem:[%s1119] sm:%s1112]
                %1122 = vst [vmem:[%s1120] sm:%s1112] %v1121
              $region209: #{custom-call.38} parent=203 // loop_footer
                %s1118 = sadd.s32 1, %s1114
              $region210: #{custom-call.38} parent=203 // loop_footer_branch
                %1113 = sbr.rel target = $region206
              $region211: #{custom-call.38} parent=203 // loop_exit
                _
            $region204: #{custom-call.38} parent=195 // pred_fallthru
              _
          $region196: #{custom-call.38} parent=191 // pred_fallthru
            _
          %1137 = vnop
        $region192: #{custom-call.38} parent=139 // pred_fallthru
          _
        %s1138 = smul.addr %s17, 2
        %s1139 = scalar_lea.vmem %s6, %s1138
        // Predicated region
        $region223: #{custom-call.38} parent=139 // pred_check
          _
        $region224: #{custom-call.38} parent=139 // pred_check_branch
          %1141 = sbr.rel (0) target = $region226
        $region225: #{custom-call.38} parent=139 // pred_region
          // Predicated region
          $region227: #{custom-call.38} parent=225 // pred_check
            _
          $region228: #{custom-call.38} parent=225 // pred_check_branch
            %1143 = sbr.rel target = $region230
          $region229: #{custom-call.38} parent=225 // pred_region
            // Predicated region
            $region242: #{custom-call.38} parent=229 // pred_check
              _
            $region243: #{custom-call.38} parent=229 // pred_check_branch
              %1159 = sbr.rel (0) target = $region245
            $region244: #{custom-call.38} parent=229 // pred_region
              %s1161 = ssub.s32 4, 1
              loop: start=0, step=1, limit=1
              $region246: #{custom-call.38} parent=244 // loop_pre_header
                _
              $region247: #{custom-call.38} parent=244 // loop_header
                %s1163 = sphi 0, %s1167
                %p1164 = scmp.ge.s32.totalorder %s1163, 1
                %s1168 = sphi %s1047, %s1047
                %s1169 = sphi %s1139, %s1139
              $region248: #{custom-call.38} parent=244 // loop_header_branch
                %1166 = sbr.rel (%p1164) target = $region252
              $region249: #{custom-call.38} parent=244 // loop_body
                %v1170 = vld [vmem:[%s1168] sm:%s1161]
                %1171 = vst [vmem:[%s1169] sm:%s1161] %v1170
              $region250: #{custom-call.38} parent=244 // loop_footer
                %s1167 = sadd.s32 1, %s1163
              $region251: #{custom-call.38} parent=244 // loop_footer_branch
                %1162 = sbr.rel target = $region247
              $region252: #{custom-call.38} parent=244 // loop_exit
                _
            $region245: #{custom-call.38} parent=229 // pred_fallthru
              _
          $region230: #{custom-call.38} parent=225 // pred_fallthru
            _
          // Predicated region
          $region231: #{custom-call.38} parent=225 // pred_check
            _
          $region232: #{custom-call.38} parent=225 // pred_check_branch
            %1145 = sbr.rel (0) target = $region234
          $region233: #{custom-call.38} parent=225 // pred_region
            %s1147 = ssub.s32 4, 1
            loop: start=0, step=1, limit=1
            $region235: #{custom-call.38} parent=233 // loop_pre_header
              _
            $region236: #{custom-call.38} parent=233 // loop_header
              %s1149 = sphi 0, %s1153
              %p1150 = scmp.ge.s32.totalorder %s1149, 1
              %s1154 = sphi %s1047, %s1047
              %s1155 = sphi %s1139, %s1139
            $region237: #{custom-call.38} parent=233 // loop_header_branch
              %1152 = sbr.rel (%p1150) target = $region241
            $region238: #{custom-call.38} parent=233 // loop_body
              %v1156 = vld [vmem:[%s1154] sm:%s1147]
              %1157 = vst [vmem:[%s1155] sm:%s1147] %v1156
            $region239: #{custom-call.38} parent=233 // loop_footer
              %s1153 = sadd.s32 1, %s1149
            $region240: #{custom-call.38} parent=233 // loop_footer_branch
              %1148 = sbr.rel target = $region236
            $region241: #{custom-call.38} parent=233 // loop_exit
              _
          $region234: #{custom-call.38} parent=225 // pred_fallthru
            _
        $region226: #{custom-call.38} parent=139 // pred_fallthru
          _
        %1172 = vnop
        %s1173 = smul.addr %s17, 2
        %s1174 = scalar_lea.vmem %s7, %s1173
        // Predicated region
        $region253: #{custom-call.38} parent=139 // pred_check
          _
        $region254: #{custom-call.38} parent=139 // pred_check_branch
          %1176 = sbr.rel (0) target = $region256
        $region255: #{custom-call.38} parent=139 // pred_region
          // Predicated region
          $region257: #{custom-call.38} parent=255 // pred_check
            _
          $region258: #{custom-call.38} parent=255 // pred_check_branch
            %1178 = sbr.rel target = $region260
          $region259: #{custom-call.38} parent=255 // pred_region
            // Predicated region
            $region272: #{custom-call.38} parent=259 // pred_check
              _
            $region273: #{custom-call.38} parent=259 // pred_check_branch
              %1194 = sbr.rel (0) target = $region275
            $region274: #{custom-call.38} parent=259 // pred_region
              %s1196 = ssub.s32 4, 1
              loop: start=0, step=1, limit=1
              $region276: #{custom-call.38} parent=274 // loop_pre_header
                _
              $region277: #{custom-call.38} parent=274 // loop_header
                %s1198 = sphi 0, %s1202
                %p1199 = scmp.ge.s32.totalorder %s1198, 1
                %s1203 = sphi %s1051, %s1051
                %s1204 = sphi %s1174, %s1174
              $region278: #{custom-call.38} parent=274 // loop_header_branch
                %1201 = sbr.rel (%p1199) target = $region282
              $region279: #{custom-call.38} parent=274 // loop_body
                %v1205 = vld [vmem:[%s1203] sm:%s1196]
                %1206 = vst [vmem:[%s1204] sm:%s1196] %v1205
              $region280: #{custom-call.38} parent=274 // loop_footer
                %s1202 = sadd.s32 1, %s1198
              $region281: #{custom-call.38} parent=274 // loop_footer_branch
                %1197 = sbr.rel target = $region277
              $region282: #{custom-call.38} parent=274 // loop_exit
                _
            $region275: #{custom-call.38} parent=259 // pred_fallthru
              _
          $region260: #{custom-call.38} parent=255 // pred_fallthru
            _
          // Predicated region
          $region261: #{custom-call.38} parent=255 // pred_check
            _
          $region262: #{custom-call.38} parent=255 // pred_check_branch
            %1180 = sbr.rel (0) target = $region264
          $region263: #{custom-call.38} parent=255 // pred_region
            %s1182 = ssub.s32 4, 1
            loop: start=0, step=1, limit=1
            $region265: #{custom-call.38} parent=263 // loop_pre_header
              _
            $region266: #{custom-call.38} parent=263 // loop_header
              %s1184 = sphi 0, %s1188
              %p1185 = scmp.ge.s32.totalorder %s1184, 1
              %s1189 = sphi %s1051, %s1051
              %s1190 = sphi %s1174, %s1174
            $region267: #{custom-call.38} parent=263 // loop_header_branch
              %1187 = sbr.rel (%p1185) target = $region271
            $region268: #{custom-call.38} parent=263 // loop_body
              %v1191 = vld [vmem:[%s1189] sm:%s1182]
              %1192 = vst [vmem:[%s1190] sm:%s1182] %v1191
            $region269: #{custom-call.38} parent=263 // loop_footer
              %s1188 = sadd.s32 1, %s1184
            $region270: #{custom-call.38} parent=263 // loop_footer_branch
              %1183 = sbr.rel target = $region266
            $region271: #{custom-call.38} parent=263 // loop_exit
              _
          $region264: #{custom-call.38} parent=255 // pred_fallthru
            _
        $region256: #{custom-call.38} parent=139 // pred_fallthru
          _
        %1207 = vnop
        %s1208 = smul.addr %s17, 2
        %s1209 = scalar_lea.vmem %s8, %s1208
        // Predicated region
        $region283: #{custom-call.38} parent=139 // pred_check
          _
        $region284: #{custom-call.38} parent=139 // pred_check_branch
          %1211 = sbr.rel (0) target = $region286
        $region285: #{custom-call.38} parent=139 // pred_region
          // Predicated region
          $region287: #{custom-call.38} parent=285 // pred_check
            _
          $region288: #{custom-call.38} parent=285 // pred_check_branch
            %1213 = sbr.rel target = $region290
          $region289: #{custom-call.38} parent=285 // pred_region
            // Predicated region
            $region302: #{custom-call.38} parent=289 // pred_check
              _
            $region303: #{custom-call.38} parent=289 // pred_check_branch
              %1229 = sbr.rel (0) target = $region305
            $region304: #{custom-call.38} parent=289 // pred_region
              %s1231 = ssub.s32 4, 1
              loop: start=0, step=1, limit=1
              $region306: #{custom-call.38} parent=304 // loop_pre_header
                _
              $region307: #{custom-call.38} parent=304 // loop_header
                %s1233 = sphi 0, %s1237
                %p1234 = scmp.ge.s32.totalorder %s1233, 1
                %s1238 = sphi %s1055, %s1055
                %s1239 = sphi %s1209, %s1209
              $region308: #{custom-call.38} parent=304 // loop_header_branch
                %1236 = sbr.rel (%p1234) target = $region312
              $region309: #{custom-call.38} parent=304 // loop_body
                %v1240 = vld [vmem:[%s1238] sm:%s1231]
                %1241 = vst [vmem:[%s1239] sm:%s1231] %v1240
              $region310: #{custom-call.38} parent=304 // loop_footer
                %s1237 = sadd.s32 1, %s1233
              $region311: #{custom-call.38} parent=304 // loop_footer_branch
                %1232 = sbr.rel target = $region307
              $region312: #{custom-call.38} parent=304 // loop_exit
                _
            $region305: #{custom-call.38} parent=289 // pred_fallthru
              _
          $region290: #{custom-call.38} parent=285 // pred_fallthru
            _
          // Predicated region
          $region291: #{custom-call.38} parent=285 // pred_check
            _
          $region292: #{custom-call.38} parent=285 // pred_check_branch
            %1215 = sbr.rel (0) target = $region294
          $region293: #{custom-call.38} parent=285 // pred_region
            %s1217 = ssub.s32 4, 1
            loop: start=0, step=1, limit=1
            $region295: #{custom-call.38} parent=293 // loop_pre_header
              _
            $region296: #{custom-call.38} parent=293 // loop_header
              %s1219 = sphi 0, %s1223
              %p1220 = scmp.ge.s32.totalorder %s1219, 1
              %s1224 = sphi %s1055, %s1055
              %s1225 = sphi %s1209, %s1209
            $region297: #{custom-call.38} parent=293 // loop_header_branch
              %1222 = sbr.rel (%p1220) target = $region301
            $region298: #{custom-call.38} parent=293 // loop_body
              %v1226 = vld [vmem:[%s1224] sm:%s1217]
              %1227 = vst [vmem:[%s1225] sm:%s1217] %v1226
            $region299: #{custom-call.38} parent=293 // loop_footer
              %s1223 = sadd.s32 1, %s1219
            $region300: #{custom-call.38} parent=293 // loop_footer_branch
              %1218 = sbr.rel target = $region296
            $region301: #{custom-call.38} parent=293 // loop_exit
              _
          $region294: #{custom-call.38} parent=285 // pred_fallthru
            _
        $region286: #{custom-call.38} parent=139 // pred_fallthru
          _
        %1242 = vnop
        %s1243 = smul.addr %s17, 2
        %s1244 = scalar_lea.vmem %s9, %s1243
        // Predicated region
        $region313: #{custom-call.38} parent=139 // pred_check
          _
        $region314: #{custom-call.38} parent=139 // pred_check_branch
          %1246 = sbr.rel (0) target = $region316
        $region315: #{custom-call.38} parent=139 // pred_region
          // Predicated region
          $region317: #{custom-call.38} parent=315 // pred_check
            _
          $region318: #{custom-call.38} parent=315 // pred_check_branch
            %1248 = sbr.rel target = $region320
          $region319: #{custom-call.38} parent=315 // pred_region
            // Predicated region
            $region332: #{custom-call.38} parent=319 // pred_check
              _
            $region333: #{custom-call.38} parent=319 // pred_check_branch
              %1264 = sbr.rel (0) target = $region335
            $region334: #{custom-call.38} parent=319 // pred_region
              %s1266 = ssub.s32 4, 1
              loop: start=0, step=1, limit=1
              $region336: #{custom-call.38} parent=334 // loop_pre_header
                _
              $region337: #{custom-call.38} parent=334 // loop_header
                %s1268 = sphi 0, %s1272
                %p1269 = scmp.ge.s32.totalorder %s1268, 1
                %s1273 = sphi %s1059, %s1059
                %s1274 = sphi %s1244, %s1244
              $region338: #{custom-call.38} parent=334 // loop_header_branch
                %1271 = sbr.rel (%p1269) target = $region342
              $region339: #{custom-call.38} parent=334 // loop_body
                %v1275 = vld [vmem:[%s1273] sm:%s1266]
                %1276 = vst [vmem:[%s1274] sm:%s1266] %v1275
              $region340: #{custom-call.38} parent=334 // loop_footer
                %s1272 = sadd.s32 1, %s1268
              $region341: #{custom-call.38} parent=334 // loop_footer_branch
                %1267 = sbr.rel target = $region337
              $region342: #{custom-call.38} parent=334 // loop_exit
                _
            $region335: #{custom-call.38} parent=319 // pred_fallthru
              _
          $region320: #{custom-call.38} parent=315 // pred_fallthru
            _
          // Predicated region
          $region321: #{custom-call.38} parent=315 // pred_check
            _
          $region322: #{custom-call.38} parent=315 // pred_check_branch
            %1250 = sbr.rel (0) target = $region324
          $region323: #{custom-call.38} parent=315 // pred_region
            %s1252 = ssub.s32 4, 1
            loop: start=0, step=1, limit=1
            $region325: #{custom-call.38} parent=323 // loop_pre_header
              _
            $region326: #{custom-call.38} parent=323 // loop_header
              %s1254 = sphi 0, %s1258
              %p1255 = scmp.ge.s32.totalorder %s1254, 1
              %s1259 = sphi %s1059, %s1059
              %s1260 = sphi %s1244, %s1244
            $region327: #{custom-call.38} parent=323 // loop_header_branch
              %1257 = sbr.rel (%p1255) target = $region331
            $region328: #{custom-call.38} parent=323 // loop_body
              %v1261 = vld [vmem:[%s1259] sm:%s1252]
              %1262 = vst [vmem:[%s1260] sm:%s1252] %v1261
            $region329: #{custom-call.38} parent=323 // loop_footer
              %s1258 = sadd.s32 1, %s1254
            $region330: #{custom-call.38} parent=323 // loop_footer_branch
              %1253 = sbr.rel target = $region326
            $region331: #{custom-call.38} parent=323 // loop_exit
              _
          $region324: #{custom-call.38} parent=315 // pred_fallthru
            _
        $region316: #{custom-call.38} parent=139 // pred_fallthru
          _
        %1277 = vnop
      $region140: #{custom-call.38} parent=5 // pred_fallthru
        _
      %p1278 = scmp.le.s32.totalorder 2, %s12
      // Predicated region
      $region343: #{custom-call.38} parent=5 // pred_check
        %p1279 = pneg %p1278
      $region344: #{custom-call.38} parent=5 // pred_check_branch
        %1281 = sbr.rel (%p1279) target = $region346
      $region345: #{custom-call.38} parent=5 // pred_region
        %s1282 = ssub.s32 %s12, 2
        // Predicated region
        $region347: #{custom-call.38} parent=345 // pred_check
          %p1283 = pneg %p43
        $region348: #{custom-call.38} parent=345 // pred_check_branch
          %1285 = sbr.rel (%p1283) target = $region350
        $region349: #{custom-call.38} parent=345 // pred_region
          %s1286 = sand.u32 %s28, 1
          %s1287 = sand.u32 %s28, 1
          %s1288 = smul.addr %s1287, 2
          %s1289 = scalar_lea.vmem [#allocation9], %s1288
        $region350: #{custom-call.38} parent=345 // pred_fallthru
          _
        // Predicated region
        $region351: #{custom-call.38} parent=345 // pred_check
          %p1290 = pneg %p71
        $region352: #{custom-call.38} parent=345 // pred_check_branch
          %1292 = sbr.rel (%p1290) target = $region354
        $region353: #{custom-call.38} parent=345 // pred_region
          %s1293 = sand.u32 %s56, 1
          %s1294 = sand.u32 %s56, 1
          %s1295 = smul.addr %s1294, 2
          %s1296 = scalar_lea.vmem [#allocation11], %s1295
        $region354: #{custom-call.38} parent=345 // pred_fallthru
          _
        %s1297 = sand.u32 %s18, 1
        %s1298 = sand.u32 %s18, 1
        %s1299 = smul.addr %s1298, 2
        %s1300 = scalar_lea.vmem [#allocation13], %s1299
        %s1301 = sand.u32 %s18, 1
        %s1302 = sand.u32 %s18, 1
        %s1303 = smul.addr %s1302, 2
        %s1304 = scalar_lea.vmem [#allocation15], %s1303
        %s1305 = sand.u32 %s18, 1
        %s1306 = sand.u32 %s18, 1
        %s1307 = smul.addr %s1306, 2
        %s1308 = scalar_lea.vmem [#allocation17], %s1307
        %s1309 = sand.u32 %s18, 1
        %s1310 = sand.u32 %s18, 1
        %s1311 = smul.addr %s1310, 2
        %s1312 = scalar_lea.vmem [#allocation19], %s1311
      $region346: #{custom-call.38} parent=5 // pred_fallthru
        _
    $region6: #{custom-call.38} parent=1 // loop_footer
      %s16 = sadd.s32 1, %s12
    $region7: #{custom-call.38} parent=1 // loop_footer_branch
      %11 = sbr.rel target = $region3
    $region8: #{custom-call.38} parent=1 // loop_exit
      _

// kernel: reverse
$region0: #{reverse}
  %s0 = inlined_call_operand.vmem [shape: f32[2,3], index: 0, kind: input, shape index: {}]
  %s1 = inlined_call_operand.vmem [shape: f32[2,3], index: 1, kind: output, shape index: {}]
  %v2 = vlaneseq
  %v3 = vsub.s32 2, %v2
  %4 = vset.pattern.permute.xlu0 %v3
  $region1: #{reverse} parent=0
    #allocation0 [shape = 'u8[4096]{0}', space=vmem, size = 0x1000, scoped, tag = 'operand span for operand 0']
    #allocation1 [shape = 'u8[1024]{0}', space=vmem, size = 0x400, scoped, tag = 'packed  for operand 0']
    #allocation2 [shape = 'u8[4096]{0}', space=vmem, size = 0x1000, scoped, tag = 'operand span for operand 1']
    #allocation3 [shape = 'u8[1024]{0}', space=vmem, size = 0x400, scoped, tag = 'packed  for operand 1']
    // Predicated region
    $region2: #{reverse} parent=1 // pred_check
      _
    $region3: #{reverse} parent=1 // pred_check_branch
      %6 = sbr.rel (0) target = $region5
    $region4: #{reverse} parent=1 // pred_region
      // Predicated region
      $region6: #{reverse} parent=4 // pred_check
        _
      $region7: #{reverse} parent=4 // pred_check_branch
        %8 = sbr.rel target = $region9
      $region8: #{reverse} parent=4 // pred_region
        // Predicated region
        $region21: #{reverse} parent=8 // pred_check
          _
        $region22: #{reverse} parent=8 // pred_check_branch
          %24 = sbr.rel (0) target = $region24
        $region23: #{reverse} parent=8 // pred_region
          %s26 = ssub.s32 4, 1
          loop: start=0, step=1, limit=1
          $region25: #{reverse} parent=23 // loop_pre_header
            _
          $region26: #{reverse} parent=23 // loop_header
            %s28 = sphi 0, %s32
            %p29 = scmp.ge.s32.totalorder %s28, 1
            %s33 = sphi %s0, %s0
            %s34 = sphi [#allocation1], [#allocation1]
          $region27: #{reverse} parent=23 // loop_header_branch
            %31 = sbr.rel (%p29) target = $region31
          $region28: #{reverse} parent=23 // loop_body
            %v35 = vld [vmem:[%s33] sm:%s26]
            %36 = vst [vmem:[%s34] sm:%s26] %v35
          $region29: #{reverse} parent=23 // loop_footer
            %s32 = sadd.s32 1, %s28
          $region30: #{reverse} parent=23 // loop_footer_branch
            %27 = sbr.rel target = $region26
          $region31: #{reverse} parent=23 // loop_exit
            _
        $region24: #{reverse} parent=8 // pred_fallthru
          _
      $region9: #{reverse} parent=4 // pred_fallthru
        _
      // Predicated region
      $region10: #{reverse} parent=4 // pred_check
        _
      $region11: #{reverse} parent=4 // pred_check_branch
        %10 = sbr.rel (0) target = $region13
      $region12: #{reverse} parent=4 // pred_region
        %s12 = ssub.s32 4, 1
        loop: start=0, step=1, limit=1
        $region14: #{reverse} parent=12 // loop_pre_header
          _
        $region15: #{reverse} parent=12 // loop_header
          %s14 = sphi 0, %s18
          %p15 = scmp.ge.s32.totalorder %s14, 1
          %s19 = sphi %s0, %s0
          %s20 = sphi [#allocation1], [#allocation1]
        $region16: #{reverse} parent=12 // loop_header_branch
          %17 = sbr.rel (%p15) target = $region20
        $region17: #{reverse} parent=12 // loop_body
          %v21 = vld [vmem:[%s19] sm:%s12]
          %22 = vst [vmem:[%s20] sm:%s12] %v21
        $region18: #{reverse} parent=12 // loop_footer
          %s18 = sadd.s32 1, %s14
        $region19: #{reverse} parent=12 // loop_footer_branch
          %13 = sbr.rel target = $region15
        $region20: #{reverse} parent=12 // loop_exit
          _
      $region13: #{reverse} parent=4 // pred_fallthru
        _
    $region5: #{reverse} parent=1 // pred_fallthru
      _
    %37 = vnop
    %s39 = ssub.s32 4, 1
    %v40 = vld [vmem:[#allocation1] sm:%s39]
    %41 = vst [vmem:[#allocation0] sm:%s39] %v40
    %v42 = vld [vmem:[#allocation0] sm:$0xff]
    %43 = vperm.xlu0 %4, %v42
    %v44 = vpop.permute.xlu0 %43
    %45 = vst [vmem:[#allocation2] sm:$0xff] %v44
    %s47 = ssub.s32 4, 1
    %v48 = vld [vmem:[#allocation2] sm:%s47]
    %s50 = ssub.s32 4, 1
    %51 = vst [vmem:[#allocation3] sm:%s50] %v48
    // Predicated region
    $region32: #{reverse} parent=1 // pred_check
      _
    $region33: #{reverse} parent=1 // pred_check_branch
      %53 = sbr.rel (0) target = $region35
    $region34: #{reverse} parent=1 // pred_region
      // Predicated region
      $region36: #{reverse} parent=34 // pred_check
        _
      $region37: #{reverse} parent=34 // pred_check_branch
        %55 = sbr.rel target = $region39
      $region38: #{reverse} parent=34 // pred_region
        // Predicated region
        $region51: #{reverse} parent=38 // pred_check
          _
        $region52: #{reverse} parent=38 // pred_check_branch
          %71 = sbr.rel (0) target = $region54
        $region53: #{reverse} parent=38 // pred_region
          %s73 = ssub.s32 4, 1
          loop: start=0, step=1, limit=1
          $region55: #{reverse} parent=53 // loop_pre_header
            _
          $region56: #{reverse} parent=53 // loop_header
            %s75 = sphi 0, %s79
            %p76 = scmp.ge.s32.totalorder %s75, 1
            %s80 = sphi [#allocation3], [#allocation3]
            %s81 = sphi %s1, %s1
          $region57: #{reverse} parent=53 // loop_header_branch
            %78 = sbr.rel (%p76) target = $region61
          $region58: #{reverse} parent=53 // loop_body
            %v82 = vld [vmem:[%s80] sm:%s73]
            %83 = vst [vmem:[%s81] sm:%s73] %v82
          $region59: #{reverse} parent=53 // loop_footer
            %s79 = sadd.s32 1, %s75
          $region60: #{reverse} parent=53 // loop_footer_branch
            %74 = sbr.rel target = $region56
          $region61: #{reverse} parent=53 // loop_exit
            _
        $region54: #{reverse} parent=38 // pred_fallthru
          _
      $region39: #{reverse} parent=34 // pred_fallthru
        _
      // Predicated region
      $region40: #{reverse} parent=34 // pred_check
        _
      $region41: #{reverse} parent=34 // pred_check_branch
        %57 = sbr.rel (0) target = $region43
      $region42: #{reverse} parent=34 // pred_region
        %s59 = ssub.s32 4, 1
        loop: start=0, step=1, limit=1
        $region44: #{reverse} parent=42 // loop_pre_header
          _
        $region45: #{reverse} parent=42 // loop_header
          %s61 = sphi 0, %s65
          %p62 = scmp.ge.s32.totalorder %s61, 1
          %s66 = sphi [#allocation3], [#allocation3]
          %s67 = sphi %s1, %s1
        $region46: #{reverse} parent=42 // loop_header_branch
          %64 = sbr.rel (%p62) target = $region50
        $region47: #{reverse} parent=42 // loop_body
          %v68 = vld [vmem:[%s66] sm:%s59]
          %69 = vst [vmem:[%s67] sm:%s59] %v68
        $region48: #{reverse} parent=42 // loop_footer
          %s65 = sadd.s32 1, %s61
        $region49: #{reverse} parent=42 // loop_footer_branch
          %60 = sbr.rel target = $region45
        $region50: #{reverse} parent=42 // loop_exit
          _
      $region43: #{reverse} parent=34 // pred_fallthru
        _
    $region35: #{reverse} parent=1 // pred_fallthru
      _
    %84 = vnop

// kernel: custom-call.19
$region0: #{custom-call.19}
  %s0 = inlined_call_operand.vmem [shape: f32[2,3,3], index: 0, kind: input, shape index: {}]
  %s1 = inlined_call_operand.vmem [shape: f32[2,3,3], index: 1, kind: output, shape index: {0}]
  %s2 = inlined_call_operand.vmem [shape: f32[2,3], index: 2, kind: output, shape index: {1}]
  %3 = xla_tuple %s1, %s2
  $region1: #{custom-call.19} parent=0
    #allocation0 [shape = 'u8[4096]{0}', space=vmem, size = 0x1000, scoped, tag = 'operand span for operand 0']
    #allocation1 [shape = 'u8[4096]{0}', space=vmem, size = 0x1000, scoped, tag = 'packed  for operand 0']
    #allocation2 [shape = 'u8[4096]{0}', space=vmem, size = 0x1000, scoped, tag = 'operand span for operand 1']
    #allocation3 [shape = 'u8[4096]{0}', space=vmem, size = 0x1000, scoped, tag = 'packed  for operand 1']
    #allocation4 [shape = 'u8[4096]{0}', space=vmem, size = 0x1000, scoped, tag = 'operand span for operand 2']
    #allocation5 [shape = 'u8[2048]{0}', space=vmem, size = 0x800, scoped, tag = 'packed  for operand 2']
    loop: start=0, step=1, limit=4
    $region2: #{custom-call.19} parent=1 // loop_pre_header
      _
    $region3: #{custom-call.19} parent=1 // loop_header
      %s5 = sphi 0, %s9
      %p6 = scmp.ge.s32.totalorder %s5, 4
      %s12 = sphi 0, %s31
      %s13 = sphi 0, %s27
      %s14 = sphi 0, %s23
      %s15 = sphi 0, %s12
      %s16 = sphi 0, %s13
      %s17 = sphi 0, %s14
      %s18 = sphi 0, %s15
      %s19 = sphi 0, %s16
      %s20 = sphi 0, %s17
      %s46 = sphi 0, %s48
      %s49 = sphi 0, %s46
      %s50 = sphi 0, %s49
      %s66 = sphi 0, %s50
    $region4: #{custom-call.19} parent=1 // loop_header_branch
      %8 = sbr.rel (%p6) target = $region8
    $region5: #{custom-call.19} parent=1 // loop_body
      %s10 = ssub.s32 %s5, 1
      %s11 = ssub.s32 %s5, 2
      %s21 = sadd.s32 1, %s14
      %p22 = scmp.ge.s32.totalorder %s21, 1
      %s23 = scalar_select %p22, 0, %s21
      %s24 = sadd.s32 1, %s13
      %s25 = scalar_select %p22, %s24, %s13
      %p26 = scmp.ge.s32.totalorder %s25, 1
      %s27 = scalar_select %p26, 0, %s25
      %s28 = sadd.s32 1, %s12
      %s29 = scalar_select %p26, %s28, %s12
      %p30 = scmp.ge.s32.totalorder %s29, 2
      %s31 = scalar_select %p30, 0, %s29
      %p32 = scmp.lt.s32.totalorder %s12, 0
      %s33 = ssub.s32 0, %s12
      %s34 = scalar_select %p32, %s33, %s12
      %s35 = sshrl.u32 %s34, 3
      %s36 = ssub.s32 0, %s35
      %s37 = scalar_select %p32, %s36, %s35
      %p38 = scmp.lt.s32.totalorder %s31, 0
      %s39 = ssub.s32 0, %s31
      %s40 = scalar_select %p38, %s39, %s31
      %s41 = sshrl.u32 %s40, 3
      %s42 = ssub.s32 0, %s41
      %s43 = scalar_select %p38, %s42, %s41
      %s44 = ssub.s32 %s37, %s43
      %p45 = scmp.eq.s32.totalorder %s44, 0
      %s47 = sadd.s32 %s46, 1
      %s48 = scalar_select %p45, %s46, %s47
      %p51 = pneg %p45
      %p52 = scmp.eq.s32.totalorder %s5, 1
      %p53 = por %p51, %p52
      %p54 = scmp.ne.s32.totalorder %s46, %s49
      %p55 = scmp.eq.s32.totalorder %s5, 0
      %p56 = por %p54, %p55
      %p57 = scmp.ne.s32.totalorder %s46, %s49
      %p58 = scmp.eq.s32.totalorder %s10, 1
      %p59 = por %p57, %p58
      %p60 = scmp.ne.s32.totalorder %s49, %s50
      %p61 = scmp.eq.s32.totalorder %s10, 0
      %p62 = por %p60, %p61
      %p63 = scmp.ne.s32.totalorder %s49, %s50
      %p64 = scmp.eq.s32.totalorder %s11, 1
      %p65 = por %p63, %p64
      %p67 = scmp.ne.s32.totalorder %s50, %s66
      %p68 = scmp.eq.s32.totalorder %s11, 0
      %p69 = por %p67, %p68
      %p70 = scmp.le.s32.totalorder 1, %s5
      %p71 = scmp.lt.s32.totalorder %s5, 3
      %p72 = pnand %p70, %p71
      %p73 = pneg %p72
      // Predicated region
      $region9: #{custom-call.19} parent=5 // pred_check
        _
      $region10: #{custom-call.19} parent=5 // pred_check_branch
        %75 = sbr.rel (%p72) target = $region12
      $region11: #{custom-call.19} parent=5 // pred_region
        %s76 = ssub.s32 %s5, 1
      $region12: #{custom-call.19} parent=5 // pred_fallthru
        _
      %p77 = scmp.lt.s32.totalorder %s5, 2
      // Predicated region
      $region13: #{custom-call.19} parent=5 // pred_check
        %p78 = pneg %p77
      $region14: #{custom-call.19} parent=5 // pred_check_branch
        %80 = sbr.rel (%p78) target = $region16
      $region15: #{custom-call.19} parent=5 // pred_region
        %s81 = sand.u32 %s5, 1
        %s82 = sand.u32 %s5, 1
        %s83 = smul.addr %s82, 4
        %s84 = scalar_lea.vmem [#allocation1], %s83
        %s85 = sadd.s32 %s14, %s13
        %s86 = sadd.s32 %s85, %s12
        %s87 = smul.addr %s86, 4
        %s88 = scalar_lea.vmem %s0, %s87
        // Predicated region
        $region17: #{custom-call.19} parent=15 // pred_check
          _
        $region18: #{custom-call.19} parent=15 // pred_check_branch
          %90 = sbr.rel (0) target = $region20
        $region19: #{custom-call.19} parent=15 // pred_region
          // Predicated region
          $region21: #{custom-call.19} parent=19 // pred_check
            _
          $region22: #{custom-call.19} parent=19 // pred_check_branch
            %92 = sbr.rel target = $region24
          $region23: #{custom-call.19} parent=19 // pred_region
            // Predicated region
            $region36: #{custom-call.19} parent=23 // pred_check
              _
            $region37: #{custom-call.19} parent=23 // pred_check_branch
              %108 = sbr.rel (0) target = $region39
            $region38: #{custom-call.19} parent=23 // pred_region
              %s110 = ssub.s32 16, 1
              loop: start=0, step=1, limit=1
              $region40: #{custom-call.19} parent=38 // loop_pre_header
                _
              $region41: #{custom-call.19} parent=38 // loop_header
                %s112 = sphi 0, %s116
                %p113 = scmp.ge.s32.totalorder %s112, 1
                %s117 = sphi %s88, %s88
                %s118 = sphi %s84, %s84
              $region42: #{custom-call.19} parent=38 // loop_header_branch
                %115 = sbr.rel (%p113) target = $region46
              $region43: #{custom-call.19} parent=38 // loop_body
                %v119 = vld [vmem:[%s117] sm:%s110]
                %120 = vst [vmem:[%s118] sm:%s110] %v119
              $region44: #{custom-call.19} parent=38 // loop_footer
                %s116 = sadd.s32 1, %s112
              $region45: #{custom-call.19} parent=38 // loop_footer_branch
                %111 = sbr.rel target = $region41
              $region46: #{custom-call.19} parent=38 // loop_exit
                _
            $region39: #{custom-call.19} parent=23 // pred_fallthru
              _
          $region24: #{custom-call.19} parent=19 // pred_fallthru
            _
          // Predicated region
          $region25: #{custom-call.19} parent=19 // pred_check
            _
          $region26: #{custom-call.19} parent=19 // pred_check_branch
            %94 = sbr.rel (0) target = $region28
          $region27: #{custom-call.19} parent=19 // pred_region
            %s96 = ssub.s32 16, 1
            loop: start=0, step=1, limit=1
            $region29: #{custom-call.19} parent=27 // loop_pre_header
              _
            $region30: #{custom-call.19} parent=27 // loop_header
              %s98 = sphi 0, %s102
              %p99 = scmp.ge.s32.totalorder %s98, 1
              %s103 = sphi %s88, %s88
              %s104 = sphi %s84, %s84
            $region31: #{custom-call.19} parent=27 // loop_header_branch
              %101 = sbr.rel (%p99) target = $region35
            $region32: #{custom-call.19} parent=27 // loop_body
              %v105 = vld [vmem:[%s103] sm:%s96]
              %106 = vst [vmem:[%s104] sm:%s96] %v105
            $region33: #{custom-call.19} parent=27 // loop_footer
              %s102 = sadd.s32 1, %s98
            $region34: #{custom-call.19} parent=27 // loop_footer_branch
              %97 = sbr.rel target = $region30
            $region35: #{custom-call.19} parent=27 // loop_exit
              _
          $region28: #{custom-call.19} parent=19 // pred_fallthru
            _
        $region20: #{custom-call.19} parent=15 // pred_fallthru
          _
        %121 = vnop
      $region16: #{custom-call.19} parent=5 // pred_fallthru
        _
      %p122 = scmp.le.s32.totalorder 1, %s5
      %p123 = scmp.lt.s32.totalorder %s5, 3
      %p124 = pnand %p122, %p123
      %p125 = pneg %p124
      // Predicated region
      $region47: #{custom-call.19} parent=5 // pred_check
        _
      $region48: #{custom-call.19} parent=5 // pred_check_branch
        %127 = sbr.rel (%p124) target = $region50
      $region49: #{custom-call.19} parent=5 // pred_region
        #allocation6 [shape = 'f32[3,128]{1,0}', space=vmem, size = 0x1000, scoped, tag = 'scratch for Householder reflectors']
        %s128 = ssub.s32 %s5, 1
        %s129 = sand.u32 %s10, 1
        %s130 = sand.u32 %s10, 1
        %s131 = smul.addr %s130, 4
        %s132 = scalar_lea.vmem [#allocation1], %s131
        %s133 = sand.u32 %s10, 1
        %s134 = sand.u32 %s10, 1
        %s135 = smul.addr %s134, 4
        %s136 = scalar_lea.vmem [#allocation1], %s135
        %s137 = sand.u32 %s10, 1
        %s138 = sand.u32 %s10, 1
        %s139 = smul.addr %s138, 4
        %s140 = scalar_lea.vmem [#allocation3], %s139
        %p141 = pneg %p62
        %p142 = pneg %p59
        %s143 = sand.u32 %s49, 1
        %s144 = sand.u32 %s49, 1
        %s145 = smul.addr %s144, 2
        %s146 = scalar_lea.vmem [#allocation5], %s145
        %s148 = ssub.s32 16, 1
        %v149 = vld [vmem:[%s136] sm:%s148]
        %150 = vst [vmem:[#allocation0] sm:%s148] %v149
        %p151 = scmp.lt.s32.totalorder %s15, 0
        %s152 = ssub.s32 0, %s15
        %s153 = scalar_select %p151, %s152, %s15
        %s154 = sshrl.u32 %s153, 3
        %s155 = ssub.s32 0, %s154
        %s156 = scalar_select %p151, %s155, %s154
        %s157 = sand.u32 %s15, 7
        %s158 = scalar_lea.vmem [#allocation4], %s157
        %v159 = vld [vmem:[#allocation0] sm:$0xff]
        %160 = vst [vmem:[#allocation2] sm:$0xff] %v159
        %161 = vst [vmem:[%s158] sm:$0x1] 0.0
        loop: start=0, step=1, limit=3
        $region51: #{custom-call.19} parent=49 // loop_pre_header
          _
        $region52: #{custom-call.19} parent=49 // loop_header
          %s163 = sphi 0, %s167
          %p164 = scmp.ge.s32.totalorder %s163, 3
        $region53: #{custom-call.19} parent=49 // loop_header_branch
          %166 = sbr.rel (%p164) target = $region57
        $region54: #{custom-call.19} parent=49 // loop_body
          %v168 = vld [vmem:[#allocation2] sm:$0xff]
          %v169 = vlaneseq
          %v170 = vshrl.u32 %v169, 7
          %v172 = vstv %s163
          %vm173 = vcmp.gt.s32.totalorder %v170, %v172
          %vm174 = vcmp.lt.s32.totalorder %v170, 3
          %vm175 = vmand %vm173, %vm174
          %v176 = vsel %vm175, %v168, 0.0
          %v177 = vmul.f32 %v176, %v176
          %v178 = vrot.slane %v177, 4
          %v179 = vadd.f32 %v177, %v178
          %v180 = vrot.slane %v179, 2
          %v181 = vadd.f32 %v179, %v180
          %v182 = vrot.slane %v181, 1
          %v183 = vadd.f32 %v181, %v182
          %v184 = vrsqrt.pop %v183
          %v185 = vmul.f32 %v184, %v183
          %v186 = vmul.f32 %v185, %v184
          %v187 = vmul.f32 0.5, %v186
          %v188 = vsub.f32 1.5, %v187
          %v189 = vmul.f32 %v184, %v188
          %v190 = vmul.f32 %v183, %v189
          %vm191 = vcmp.eq.f32.partialorder %v183, inf
          %v192 = vsel %vm191, %v183, %v190
          %vm193 = vcmp.eq.f32.partialorder %v183, 0.0
          %v194 = vand.u32 %v183, 2147483648
          %v195 = vsel %vm193, %v194, %v192
          %vm196 = vcmp.eq.f32.partialorder %v183, 0.0
          %s197 = sshrl.u32 %s163, 3
          %s198 = sand.u32 %s163, 7
          %s199 = smul.addr %s197, 8
          %s200 = sadd.s32 %s198, %s199
          %s201 = scalar_lea.vmem [#allocation2], %s200
          %v202 = vld [vmem:[%s201] ss:$0 sm:$0xff]
          %v203 = vand.u32 2147483647, %v202
          %v204 = vmax.f32 %v203, 0.0
          %v205 = vand.u32 2147483647, %v195
          %v206 = vmax.f32 %v204, %v205
          %v207 = vrcp.pop %v206
          %v208 = vmul.f32 %v206, %v207
          %v209 = vsub.f32 1.0, %v208
          %v210 = vmul.f32 %v207, %v209
          %v211 = vadd.f32 %v207, %v210
          %vm212 = vweird.f32 %v206
          %vm213 = vweird.f32 %v207
          %vm214 = vmor %vm212, %vm213
          %v215 = vsel %vm214, %v207, %v211
          %v216 = vand.u32 2147483647, %v206
          %vm217 = vcmp.eq.f32.partialorder %v216, 8.507059e+37
          %v218 = vand.u32 %v206, 2147483648
          %v219 = vor.u32 1.1754944e-38, %v218
          %v220 = vsel %vm217, %v219, %v215
          %v221 = vmul.f32 %v203, %v220
          %v222 = vmul.f32 %v221, %v221
          %v223 = vrcp.pop %v206
          %v224 = vmul.f32 %v206, %v223
          %v225 = vsub.f32 1.0, %v224
          %v226 = vmul.f32 %v223, %v225
          %v227 = vadd.f32 %v223, %v226
          %vm228 = vweird.f32 %v206
          %vm229 = vweird.f32 %v223
          %vm230 = vmor %vm228, %vm229
          %v231 = vsel %vm230, %v223, %v227
          %v232 = vand.u32 2147483647, %v206
          %vm233 = vcmp.eq.f32.partialorder %v232, 8.507059e+37
          %v234 = vand.u32 %v206, 2147483648
          %v235 = vor.u32 1.1754944e-38, %v234
          %v236 = vsel %vm233, %v235, %v231
          %v237 = vmul.f32 0.0, %v236
          %v238 = vmul.f32 %v237, %v237
          %v239 = vadd.f32 %v222, %v238
          %v240 = vrcp.pop %v206
          %v241 = vmul.f32 %v206, %v240
          %v242 = vsub.f32 1.0, %v241
          %v243 = vmul.f32 %v240, %v242
          %v244 = vadd.f32 %v240, %v243
          %vm245 = vweird.f32 %v206
          %vm246 = vweird.f32 %v240
          %vm247 = vmor %vm245, %vm246
          %v248 = vsel %vm247, %v240, %v244
          %v249 = vand.u32 2147483647, %v206
          %vm250 = vcmp.eq.f32.partialorder %v249, 8.507059e+37
          %v251 = vand.u32 %v206, 2147483648
          %v252 = vor.u32 1.1754944e-38, %v251
          %v253 = vsel %vm250, %v252, %v248
          %v254 = vmul.f32 %v205, %v253
          %v255 = vmul.f32 %v254, %v254
          %v256 = vadd.f32 %v239, %v255
          %vm257 = vcmp.eq.f32.partialorder %v206, 0.0
          %v258 = vrsqrt.pop %v256
          %v259 = vmul.f32 %v258, %v256
          %v260 = vmul.f32 %v259, %v258
          %v261 = vmul.f32 0.5, %v260
          %v262 = vsub.f32 1.5, %v261
          %v263 = vmul.f32 %v258, %v262
          %v264 = vmul.f32 %v256, %v263
          %vm265 = vcmp.eq.f32.partialorder %v256, inf
          %v266 = vsel %vm265, %v256, %v264
          %vm267 = vcmp.eq.f32.partialorder %v256, 0.0
          %v268 = vand.u32 %v256, 2147483648
          %v269 = vsel %vm267, %v268, %v266
          %v270 = vmul.f32 %v206, %v269
          %v271 = vsel %vm257, 0.0, %v270
          %vm272 = vcmp.lt.f32.partialorder %v202, 0.0
          %v273 = vxor.u32 %v271, 2147483648
          %v274 = vsel %vm272, %v271, %v273
          %v275 = vsub.f32 %v274, %v202
          %v276 = vrcp.pop %v274
          %v277 = vmul.f32 %v274, %v276
          %v278 = vsub.f32 1.0, %v277
          %v279 = vmul.f32 %v276, %v278
          %v280 = vadd.f32 %v276, %v279
          %vm281 = vweird.f32 %v274
          %vm282 = vweird.f32 %v276
          %vm283 = vmor %vm281, %vm282
          %v284 = vsel %vm283, %v276, %v280
          %v285 = vand.u32 2147483647, %v274
          %vm286 = vcmp.eq.f32.partialorder %v285, 8.507059e+37
          %v287 = vand.u32 %v274, 2147483648
          %v288 = vor.u32 1.1754944e-38, %v287
          %v289 = vsel %vm286, %v288, %v284
          %v290 = vmul.f32 %v275, %v289
          %v291 = vsel %vm196, %v202, %v274
          %v292 = vsel %vm196, 0.0, %v290
          %v293 = vsub.f32 %v202, %v291
          %s294 = smov [#allocation2]
          %v295 = vlaneseq
          %v296 = vshrl.u32 %v295, 7
          %v297 = vmov %v296
          %v298 = vld [vmem:[%s294] sm:$0xff]
          %v300 = vstv %s163
          %vm301 = vcmp.gt.s32.totalorder %v297, %v300
          %vm302 = vcmp.lt.s32.totalorder %v297, 3
          %vm303 = vmand %vm301, %vm302
          %v304 = vsel %vm303, %v298, 0.0
          %v305 = vrcp.pop %v293
          %v306 = vmul.f32 %v293, %v305
          %v307 = vsub.f32 1.0, %v306
          %v308 = vmul.f32 %v305, %v307
          %v309 = vadd.f32 %v305, %v308
          %vm310 = vweird.f32 %v293
          %vm311 = vweird.f32 %v305
          %vm312 = vmor %vm310, %vm311
          %v313 = vsel %vm312, %v305, %v309
          %v314 = vand.u32 2147483647, %v293
          %vm315 = vcmp.eq.f32.partialorder %v314, 8.507059e+37
          %v316 = vand.u32 %v293, 2147483648
          %v317 = vor.u32 1.1754944e-38, %v316
          %v318 = vsel %vm315, %v317, %v313
          %v319 = vmul.f32 %v304, %v318
          %v320 = vsel %vm196, 0.0, %v319
          %v321 = vstv %s163
          %v322 = vlaneseq
          %v323 = vand.u32 %v322, 127
          %vm324 = vcmp.eq.s32.totalorder %v323, %v321
          %v325 = vsel %vm324, %v320, 0.0
          %326 = vadd.xlane.f32.xlu0 %v325
          %v327 = vpop.xlane.xlu0 %326
          %328 = vst [vmem:[#allocation6] sm:$0xff] %v327
          %s329 = scalar_lea.vmem [#allocation6], %s163
          %330 = vst [vmem:[%s329] sm:$0x1] 1.0
          %v331 = vstv %s163
          %v332 = vlaneseq
          %v333 = vand.u32 %v332, 127
          %vm334 = vcmp.eq.s32.totalorder %v333, %v331
          %v335 = vsel %vm334, %v292, 0.0
          %336 = vadd.xlane.f32.xlu0 %v335
          %v337 = vpop.xlane.xlu0 %336
          %v338 = vstv %s163
          %v339 = vlaneseq
          %v340 = vand.u32 %v339, 127
          %vm341 = vcmp.eq.s32.totalorder %v340, %v338
          %v342 = vld [vmem:[%s158] ss:$0 sm:$0xff]
          %v343 = vsel %vm341, %v337, %v342
          %344 = vst [vmem:[%s158] sm:$0x1] %v343
          %s345 = smov [#allocation2]
          %s346 = smov [#allocation6]
          %v347 = vlaneseq
          %v348 = vshrl.u32 %v347, 7
          %v349 = vmov %v348
          %v351 = vld [vmem:[%s346] sm:$0xff]
          %v352 = vld [vmem:[%s345] sm:$0xff]
          %v353 = vmul.f32 %v351, %v352
          %vm354 = vcmp.lt.s32.totalorder %v349, 3
          %v355 = vsel %vm354, %v353, 0.0
          %v356 = vrot.slane %v355, 4
          %v357 = vadd.f32 %v355, %v356
          %v358 = vrot.slane %v357, 2
          %v359 = vadd.f32 %v357, %v358
          %v360 = vrot.slane %v359, 1
          %v361 = vadd.f32 %v359, %v360
          %s362 = smov %s345
          %s363 = smov %s346
          %v364 = vlaneseq
          %v365 = vshrl.u32 %v364, 7
          %v366 = vmov %v365
          %v367 = vmul.f32 %v361, %v337
          %v369 = vlaneseq
          %v370 = vand.u32 %v369, 127
          %v371 = vld [vmem:[%s363] sm:$0xff]
          %v372 = vmul.f32 %v371, %v367
          %v373 = vld [vmem:[%s362] sm:$0xff]
          %v374 = vstv %s163
          %vm375 = vcmp.gt.s32.totalorder %v370, %v374
          %v376 = vsub.f32 %v373, %v372
          %v377 = vsel %vm375, %v376, %v373
          %v378 = vstv %s163
          %v379 = vlaneseq
          %v380 = vand.u32 %v379, 127
          %vm381 = vcmp.eq.s32.totalorder %v380, %v378
          %v382 = vstv %s163
          %vm383 = vcmp.ge.s32.totalorder %v366, %v382
          %vm384 = vmand %vm381, %vm383
          %v385 = vsel %vm384, %v371, %v377
          %386 = vst [vmem:[%s362] sm:$0xff] %v385
          %s387 = scalar_lea.vmem %s362, %s163
          %v388 = vld [vmem:[%s387] ss:$0 sm:$0xff]
          %v389 = vstv %s163
          %v390 = vlaneseq
          %v391 = vand.u32 %v390, 127
          %vm392 = vcmp.eq.s32.totalorder %v391, %v389
          %v393 = vsel %vm392, %v291, %v388
          %394 = vst [vmem:[%s387] sm:$0x1] %v393
        $region55: #{custom-call.19} parent=49 // loop_footer
          %s167 = sadd.s32 1, %s163
        $region56: #{custom-call.19} parent=49 // loop_footer_branch
          %162 = sbr.rel target = $region52
        $region57: #{custom-call.19} parent=49 // loop_exit
          _
        %s396 = ssub.s32 16, 1
        %v397 = vld [vmem:[#allocation2] sm:%s396]
        %s399 = ssub.s32 16, 1
        %400 = vst [vmem:[%s140] sm:%s399] %v397
        %s402 = ssub.s32 4, 1
        %v403 = vld [vmem:[#allocation4] sm:%s402]
        %s405 = ssub.s32 4, 1
        %406 = vst [vmem:[%s146] sm:%s405] %v403
        %s407 = sand.u32 %s10, 1
        %s408 = sand.u32 %s10, 1
        %s409 = smul.addr %s408, 4
        %s410 = scalar_lea.vmem [#allocation3], %s409
        %s411 = sand.u32 %s49, 1
        %s412 = sand.u32 %s49, 1
        %s413 = smul.addr %s412, 2
        %s414 = scalar_lea.vmem [#allocation5], %s413
        %s415 = sadd.s32 %s17, %s16
        %s416 = sadd.s32 %s415, %s15
        %s417 = smul.addr %s416, 4
        %s418 = scalar_lea.vmem %s1, %s417
        // Predicated region
        $region58: #{custom-call.19} parent=49 // pred_check
          _
        $region59: #{custom-call.19} parent=49 // pred_check_branch
          %420 = sbr.rel (0) target = $region61
        $region60: #{custom-call.19} parent=49 // pred_region
          // Predicated region
          $region62: #{custom-call.19} parent=60 // pred_check
            _
          $region63: #{custom-call.19} parent=60 // pred_check_branch
            %422 = sbr.rel target = $region65
          $region64: #{custom-call.19} parent=60 // pred_region
            // Predicated region
            $region77: #{custom-call.19} parent=64 // pred_check
              _
            $region78: #{custom-call.19} parent=64 // pred_check_branch
              %438 = sbr.rel (0) target = $region80
            $region79: #{custom-call.19} parent=64 // pred_region
              %s440 = ssub.s32 16, 1
              loop: start=0, step=1, limit=1
              $region81: #{custom-call.19} parent=79 // loop_pre_header
                _
              $region82: #{custom-call.19} parent=79 // loop_header
                %s442 = sphi 0, %s446
                %p443 = scmp.ge.s32.totalorder %s442, 1
                %s447 = sphi %s410, %s410
                %s448 = sphi %s418, %s418
              $region83: #{custom-call.19} parent=79 // loop_header_branch
                %445 = sbr.rel (%p443) target = $region87
              $region84: #{custom-call.19} parent=79 // loop_body
                %v449 = vld [vmem:[%s447] sm:%s440]
                %450 = vst [vmem:[%s448] sm:%s440] %v449
              $region85: #{custom-call.19} parent=79 // loop_footer
                %s446 = sadd.s32 1, %s442
              $region86: #{custom-call.19} parent=79 // loop_footer_branch
                %441 = sbr.rel target = $region82
              $region87: #{custom-call.19} parent=79 // loop_exit
                _
            $region80: #{custom-call.19} parent=64 // pred_fallthru
              _
          $region65: #{custom-call.19} parent=60 // pred_fallthru
            _
          // Predicated region
          $region66: #{custom-call.19} parent=60 // pred_check
            _
          $region67: #{custom-call.19} parent=60 // pred_check_branch
            %424 = sbr.rel (0) target = $region69
          $region68: #{custom-call.19} parent=60 // pred_region
            %s426 = ssub.s32 16, 1
            loop: start=0, step=1, limit=1
            $region70: #{custom-call.19} parent=68 // loop_pre_header
              _
            $region71: #{custom-call.19} parent=68 // loop_header
              %s428 = sphi 0, %s432
              %p429 = scmp.ge.s32.totalorder %s428, 1
              %s433 = sphi %s410, %s410
              %s434 = sphi %s418, %s418
            $region72: #{custom-call.19} parent=68 // loop_header_branch
              %431 = sbr.rel (%p429) target = $region76
            $region73: #{custom-call.19} parent=68 // loop_body
              %v435 = vld [vmem:[%s433] sm:%s426]
              %436 = vst [vmem:[%s434] sm:%s426] %v435
            $region74: #{custom-call.19} parent=68 // loop_footer
              %s432 = sadd.s32 1, %s428
            $region75: #{custom-call.19} parent=68 // loop_footer_branch
              %427 = sbr.rel target = $region71
            $region76: #{custom-call.19} parent=68 // loop_exit
              _
          $region69: #{custom-call.19} parent=60 // pred_fallthru
            _
        $region61: #{custom-call.19} parent=49 // pred_fallthru
          _
        %451 = vnop
        // Predicated region
        $region88: #{custom-call.19} parent=49 // pred_check
          %p452 = pneg %p59
        $region89: #{custom-call.19} parent=49 // pred_check_branch
          %454 = sbr.rel (%p452) target = $region91
        $region90: #{custom-call.19} parent=49 // pred_region
          %p455 = scmp.lt.s32.totalorder %s15, 0
          %s456 = ssub.s32 0, %s15
          %s457 = scalar_select %p455, %s456, %s15
          %s458 = sshrl.u32 %s457, 3
          %s459 = ssub.s32 0, %s458
          %s460 = scalar_select %p455, %s459, %s458
          %s461 = smul.addr %s460, 2
          %s462 = scalar_lea.vmem %s2, %s461
          // Predicated region
          $region92: #{custom-call.19} parent=90 // pred_check
            _
          $region93: #{custom-call.19} parent=90 // pred_check_branch
            %464 = sbr.rel (0) target = $region95
          $region94: #{custom-call.19} parent=90 // pred_region
            // Predicated region
            $region96: #{custom-call.19} parent=94 // pred_check
              _
            $region97: #{custom-call.19} parent=94 // pred_check_branch
              %466 = sbr.rel target = $region99
            $region98: #{custom-call.19} parent=94 // pred_region
              // Predicated region
              $region111: #{custom-call.19} parent=98 // pred_check
                _
              $region112: #{custom-call.19} parent=98 // pred_check_branch
                %482 = sbr.rel (0) target = $region114
              $region113: #{custom-call.19} parent=98 // pred_region
                %s484 = ssub.s32 4, 1
                loop: start=0, step=1, limit=1
                $region115: #{custom-call.19} parent=113 // loop_pre_header
                  _
                $region116: #{custom-call.19} parent=113 // loop_header
                  %s486 = sphi 0, %s490
                  %p487 = scmp.ge.s32.totalorder %s486, 1
                  %s491 = sphi %s414, %s414
                  %s492 = sphi %s462, %s462
                $region117: #{custom-call.19} parent=113 // loop_header_branch
                  %489 = sbr.rel (%p487) target = $region121
                $region118: #{custom-call.19} parent=113 // loop_body
                  %v493 = vld [vmem:[%s491] sm:%s484]
                  %494 = vst [vmem:[%s492] sm:%s484] %v493
                $region119: #{custom-call.19} parent=113 // loop_footer
                  %s490 = sadd.s32 1, %s486
                $region120: #{custom-call.19} parent=113 // loop_footer_branch
                  %485 = sbr.rel target = $region116
                $region121: #{custom-call.19} parent=113 // loop_exit
                  _
              $region114: #{custom-call.19} parent=98 // pred_fallthru
                _
            $region99: #{custom-call.19} parent=94 // pred_fallthru
              _
            // Predicated region
            $region100: #{custom-call.19} parent=94 // pred_check
              _
            $region101: #{custom-call.19} parent=94 // pred_check_branch
              %468 = sbr.rel (0) target = $region103
            $region102: #{custom-call.19} parent=94 // pred_region
              %s470 = ssub.s32 4, 1
              loop: start=0, step=1, limit=1
              $region104: #{custom-call.19} parent=102 // loop_pre_header
                _
              $region105: #{custom-call.19} parent=102 // loop_header
                %s472 = sphi 0, %s476
                %p473 = scmp.ge.s32.totalorder %s472, 1
                %s477 = sphi %s414, %s414
                %s478 = sphi %s462, %s462
              $region106: #{custom-call.19} parent=102 // loop_header_branch
                %475 = sbr.rel (%p473) target = $region110
              $region107: #{custom-call.19} parent=102 // loop_body
                %v479 = vld [vmem:[%s477] sm:%s470]
                %480 = vst [vmem:[%s478] sm:%s470] %v479
              $region108: #{custom-call.19} parent=102 // loop_footer
                %s476 = sadd.s32 1, %s472
              $region109: #{custom-call.19} parent=102 // loop_footer_branch
                %471 = sbr.rel target = $region105
              $region110: #{custom-call.19} parent=102 // loop_exit
                _
            $region103: #{custom-call.19} parent=94 // pred_fallthru
              _
          $region95: #{custom-call.19} parent=90 // pred_fallthru
            _
          %495 = vnop
        $region91: #{custom-call.19} parent=49 // pred_fallthru
          _
      $region50: #{custom-call.19} parent=5 // pred_fallthru
        _
      %p496 = scmp.le.s32.totalorder 2, %s5
      // Predicated region
      $region122: #{custom-call.19} parent=5 // pred_check
        %p497 = pneg %p496
      $region123: #{custom-call.19} parent=5 // pred_check_branch
        %499 = sbr.rel (%p497) target = $region125
      $region124: #{custom-call.19} parent=5 // pred_region
        %s500 = ssub.s32 %s5, 2
        %s501 = sand.u32 %s11, 1
        %s502 = sand.u32 %s11, 1
        %s503 = smul.addr %s502, 4
        %s504 = scalar_lea.vmem [#allocation3], %s503
        // Predicated region
        $region126: #{custom-call.19} parent=124 // pred_check
          %p505 = pneg %p65
        $region127: #{custom-call.19} parent=124 // pred_check_branch
          %507 = sbr.rel (%p505) target = $region129
        $region128: #{custom-call.19} parent=124 // pred_region
          %s508 = sand.u32 %s50, 1
          %s509 = sand.u32 %s50, 1
          %s510 = smul.addr %s509, 2
          %s511 = scalar_lea.vmem [#allocation5], %s510
        $region129: #{custom-call.19} parent=124 // pred_fallthru
          _
      $region125: #{custom-call.19} parent=5 // pred_fallthru
        _
    $region6: #{custom-call.19} parent=1 // loop_footer
      %s9 = sadd.s32 1, %s5
    $region7: #{custom-call.19} parent=1 // loop_footer_branch
      %4 = sbr.rel target = $region3
    $region8: #{custom-call.19} parent=1 // loop_exit
      _

// kernel: aligned_l2_forward.3
$region0: #{aligned_l2_forward.3}
  #allocation0 [shape = 'u32[]', space=smem, size = 0x4, offset = 0x4, fixed_abs, tag = 'smem constant byte address 0x4 - core index']
  #allocation1 [shape = 'u32[72,128]{1,0:T(1,128)}', space=vmem, size = 0x9000, scoped, tag = 'internal scratch']
  #allocation2 [shape = 'f32[3,40,128]{2,1,0:T(8,128)}', space=vmem, size = 0xf000, scoped, tag = 'scratch operand']
  #allocation3 [shape = 'f32[40,128]{1,0:T(8,128)}', space=vmem, size = 0x5000, scoped, tag = 'scratch operand']
  %s0 = inlined_call_operand.vmem [shape: f32[2,9], index: 0, kind: input, shape index: {}]
  %s1 = inlined_call_operand.vmem [shape: bf16[2,3,80,128], index: 1, kind: input, shape index: {}]
  %s2 = inlined_call_operand.vmem [shape: bf16[2,3,80,128], index: 2, kind: input, shape index: {}]
  %s3 = inlined_call_operand.vmem [shape: bf16[2,1,80,128], index: 3, kind: input, shape index: {}]
  %s4 = inlined_call_operand.vmem [shape: f32[2,2,3,128], index: 4, kind: output, shape index: {0}]
  %s5 = inlined_call_operand.vmem [shape: f32[2,2,1,128], index: 5, kind: output, shape index: {1}]
  %6 = xla_tuple %s4, %s5
  %s7 = sld [smem:[#allocation0]]
  $region151: #{aligned_l2_forward.3} parent=0
    _
  %s9 = ssub.s32 1, %s7
  %s10 = scalar_select 0, %s9, %s7
  $region1: #{aligned_l2_forward.3} parent=0
    #allocation4 [shape = 'u8[1024]{0}', space=smem, size = 0x400, scoped, tag = 'input window, operand 0, single buffered']
    #allocation5 [shape = 's32[2]{0}', space=sflag, size = 0x8, scoped, tag = 'scoped memory for aligned_l2_forward.3']
    #allocation6 [shape = 'u8[61440]{0}', space=vmem, size = 0xf000, scoped, tag = 'input window, operand 1']
    #allocation7 [shape = 'u8[61440]{0}', space=vmem, size = 0xf000, scoped, tag = 'input window, operand 2']
    %11 = vsyncpa [#allocation5], 0
    loop: start=0, step=1, limit=6
    $region2: #{aligned_l2_forward.3} parent=1 // loop_pre_header
      _
    $region3: #{aligned_l2_forward.3} parent=1 // loop_header
      %s13 = sphi 0, %s17
      %p14 = scmp.ge.s32.totalorder %s13, 6
      %s20 = sphi 0, %s39
      %s21 = sphi 0, %s35
      %s22 = sphi 0, %s31
      %s23 = sphi 0, %s20
      %s24 = sphi 0, %s21
      %s25 = sphi 0, %s22
      %s26 = sphi 0, %s23
      %s27 = sphi 0, %s24
      %s28 = sphi 0, %s25
      %s40 = sphi 0, %s40
      %s42 = sphi 0, %s40
      %s43 = sphi 0, %s42
      %s57 = sphi 0, %s43
      %s67 = sphi 0, %s69
      %s70 = sphi 0, %s67
      %s71 = sphi 0, %s70
      %s87 = sphi 0, %s71
      %s97 = sphi 0, %s99
      %s100 = sphi 0, %s97
      %s101 = sphi 0, %s100
      %s117 = sphi 0, %s101
      %s127 = sphi 0, %s129
      %s130 = sphi 0, %s127
      %s131 = sphi 0, %s130
      %s147 = sphi 0, %s131
      %s155 = sphi 0, %s157
      %s158 = sphi 0, %s155
      %s159 = sphi 0, %s158
      %s175 = sphi 0, %s159
      %s183 = sphi 0, %s185
      %s186 = sphi 0, %s183
      %s187 = sphi 0, %s186
      %s203 = sphi 0, %s187
    $region4: #{aligned_l2_forward.3} parent=1 // loop_header_branch
      %16 = sbr.rel (%p14) target = $region8
    $region5: #{aligned_l2_forward.3} parent=1 // loop_body
      %s18 = ssub.s32 %s13, 1
      %s19 = ssub.s32 %s13, 2
      %s29 = sadd.s32 1, %s22
      %p30 = scmp.ge.s32.totalorder %s29, 1
      %s31 = scalar_select %p30, 0, %s29
      %s32 = sadd.s32 1, %s21
      %s33 = scalar_select %p30, %s32, %s21
      %p34 = scmp.ge.s32.totalorder %s33, 2
      %s35 = scalar_select %p34, 0, %s33
      %s36 = sadd.s32 1, %s20
      %s37 = scalar_select %p34, %s36, %s20
      %p38 = scmp.ge.s32.totalorder %s37, 2
      %s39 = scalar_select %p38, 0, %s37
      %s41 = sadd.s32 %s40, 1
      %p44 = scmp.eq.s32.totalorder %s13, 3
      %p45 = scmp.ne.s32.totalorder %s40, %s42
      %p46 = scmp.eq.s32.totalorder %s13, 0
      %p47 = por %p45, %p46
      %p48 = scmp.ne.s32.totalorder %s40, %s42
      %p49 = scmp.eq.s32.totalorder %s18, 3
      %p50 = por %p48, %p49
      %p51 = scmp.ne.s32.totalorder %s42, %s43
      %p52 = scmp.eq.s32.totalorder %s18, 0
      %p53 = por %p51, %p52
      %p54 = scmp.ne.s32.totalorder %s42, %s43
      %p55 = scmp.eq.s32.totalorder %s19, 3
      %p56 = por %p54, %p55
      %p58 = scmp.ne.s32.totalorder %s43, %s57
      %p59 = scmp.eq.s32.totalorder %s19, 0
      %p60 = por %p58, %p59
      %s61 = sadd.s32 %s20, %s22
      %s62 = sadd.s32 %s39, %s31
      %s63 = ssub.s32 %s21, %s35
      %s64 = ssub.s32 %s61, %s62
      %s65 = sor.u32 %s63, %s64
      %p66 = scmp.eq.s32.totalorder %s65, 0
      %s68 = sadd.s32 %s67, 1
      %s69 = scalar_select %p66, %s67, %s68
      %p72 = pneg %p66
      %p73 = scmp.eq.s32.totalorder %s13, 3
      %p74 = por %p72, %p73
      %p75 = scmp.ne.s32.totalorder %s67, %s70
      %p76 = scmp.eq.s32.totalorder %s13, 0
      %p77 = por %p75, %p76
      %p78 = scmp.ne.s32.totalorder %s67, %s70
      %p79 = scmp.eq.s32.totalorder %s18, 3
      %p80 = por %p78, %p79
      %p81 = scmp.ne.s32.totalorder %s70, %s71
      %p82 = scmp.eq.s32.totalorder %s18, 0
      %p83 = por %p81, %p82
      %p84 = scmp.ne.s32.totalorder %s70, %s71
      %p85 = scmp.eq.s32.totalorder %s19, 3
      %p86 = por %p84, %p85
      %p88 = scmp.ne.s32.totalorder %s71, %s87
      %p89 = scmp.eq.s32.totalorder %s19, 0
      %p90 = por %p88, %p89
      %s91 = sadd.s32 %s20, %s22
      %s92 = sadd.s32 %s39, %s31
      %s93 = ssub.s32 %s21, %s35
      %s94 = ssub.s32 %s91, %s92
      %s95 = sor.u32 %s93, %s94
      %p96 = scmp.eq.s32.totalorder %s95, 0
      %s98 = sadd.s32 %s97, 1
      %s99 = scalar_select %p96, %s97, %s98
      %p102 = pneg %p96
      %p103 = scmp.eq.s32.totalorder %s13, 3
      %p104 = por %p102, %p103
      %p105 = scmp.ne.s32.totalorder %s97, %s100
      %p106 = scmp.eq.s32.totalorder %s13, 0
      %p107 = por %p105, %p106
      %p108 = scmp.ne.s32.totalorder %s97, %s100
      %p109 = scmp.eq.s32.totalorder %s18, 3
      %p110 = por %p108, %p109
      %p111 = scmp.ne.s32.totalorder %s100, %s101
      %p112 = scmp.eq.s32.totalorder %s18, 0
      %p113 = por %p111, %p112
      %p114 = scmp.ne.s32.totalorder %s100, %s101
      %p115 = scmp.eq.s32.totalorder %s19, 3
      %p116 = por %p114, %p115
      %p118 = scmp.ne.s32.totalorder %s101, %s117
      %p119 = scmp.eq.s32.totalorder %s19, 0
      %p120 = por %p118, %p119
      %s121 = sadd.s32 %s20, %s22
      %s122 = sadd.s32 %s39, %s31
      %s123 = ssub.s32 %s21, %s35
      %s124 = ssub.s32 %s121, %s122
      %s125 = sor.u32 %s123, %s124
      %p126 = scmp.eq.s32.totalorder %s125, 0
      %s128 = sadd.s32 %s127, 1
      %s129 = scalar_select %p126, %s127, %s128
      %p132 = pneg %p126
      %p133 = scmp.eq.s32.totalorder %s13, 3
      %p134 = por %p132, %p133
      %p135 = scmp.ne.s32.totalorder %s127, %s130
      %p136 = scmp.eq.s32.totalorder %s13, 0
      %p137 = por %p135, %p136
      %p138 = scmp.ne.s32.totalorder %s127, %s130
      %p139 = scmp.eq.s32.totalorder %s18, 3
      %p140 = por %p138, %p139
      %p141 = scmp.ne.s32.totalorder %s130, %s131
      %p142 = scmp.eq.s32.totalorder %s18, 0
      %p143 = por %p141, %p142
      %p144 = scmp.ne.s32.totalorder %s130, %s131
      %p145 = scmp.eq.s32.totalorder %s19, 3
      %p146 = por %p144, %p145
      %p148 = scmp.ne.s32.totalorder %s131, %s147
      %p149 = scmp.eq.s32.totalorder %s19, 0
      %p150 = por %p148, %p149
      %s151 = ssub.s32 %s20, %s39
      %s152 = ssub.s32 %s21, %s35
      %s153 = sor.u32 %s151, %s152
      %p154 = scmp.eq.s32.totalorder %s153, 0
      %s156 = sadd.s32 %s155, 1
      %s157 = scalar_select %p154, %s155, %s156
      %p160 = pneg %p154
      %p161 = scmp.eq.s32.totalorder %s13, 3
      %p162 = por %p160, %p161
      %p163 = scmp.ne.s32.totalorder %s155, %s158
      %p164 = scmp.eq.s32.totalorder %s13, 0
      %p165 = por %p163, %p164
      %p166 = scmp.ne.s32.totalorder %s155, %s158
      %p167 = scmp.eq.s32.totalorder %s18, 3
      %p168 = por %p166, %p167
      %p169 = scmp.ne.s32.totalorder %s158, %s159
      %p170 = scmp.eq.s32.totalorder %s18, 0
      %p171 = por %p169, %p170
      %p172 = scmp.ne.s32.totalorder %s158, %s159
      %p173 = scmp.eq.s32.totalorder %s19, 3
      %p174 = por %p172, %p173
      %p176 = scmp.ne.s32.totalorder %s159, %s175
      %p177 = scmp.eq.s32.totalorder %s19, 0
      %p178 = por %p176, %p177
      %s179 = ssub.s32 %s20, %s39
      %s180 = ssub.s32 %s21, %s35
      %s181 = sor.u32 %s179, %s180
      %p182 = scmp.eq.s32.totalorder %s181, 0
      %s184 = sadd.s32 %s183, 1
      %s185 = scalar_select %p182, %s183, %s184
      %p188 = pneg %p182
      %p189 = scmp.eq.s32.totalorder %s13, 3
      %p190 = por %p188, %p189
      %p191 = scmp.ne.s32.totalorder %s183, %s186
      %p192 = scmp.eq.s32.totalorder %s13, 0
      %p193 = por %p191, %p192
      %p194 = scmp.ne.s32.totalorder %s183, %s186
      %p195 = scmp.eq.s32.totalorder %s18, 3
      %p196 = por %p194, %p195
      %p197 = scmp.ne.s32.totalorder %s186, %s187
      %p198 = scmp.eq.s32.totalorder %s18, 0
      %p199 = por %p197, %p198
      %p200 = scmp.ne.s32.totalorder %s186, %s187
      %p201 = scmp.eq.s32.totalorder %s19, 3
      %p202 = por %p200, %p201
      %p204 = scmp.ne.s32.totalorder %s187, %s203
      %p205 = scmp.eq.s32.totalorder %s19, 0
      %p206 = por %p204, %p205
      %p207 = scmp.le.s32.totalorder 1, %s13
      %p208 = scmp.lt.s32.totalorder %s13, 5
      %p209 = pnand %p207, %p208
      %p210 = pneg %p209
      // Predicated region
      $region9: #{aligned_l2_forward.3} parent=5 // pred_check
        _
      $region10: #{aligned_l2_forward.3} parent=5 // pred_check_branch
        %212 = sbr.rel (%p209) target = $region12
      $region11: #{aligned_l2_forward.3} parent=5 // pred_region
        %s213 = ssub.s32 %s13, 1
        // Predicated region
        $region13: #{aligned_l2_forward.3} parent=11 // pred_check
          %p214 = pneg %p53
        $region14: #{aligned_l2_forward.3} parent=11 // pred_check_branch
          %216 = sbr.rel (%p214) target = $region16
        $region15: #{aligned_l2_forward.3} parent=11 // pred_region
          %218 = vsyncadd [#allocation5], 0
          %s220 = sshll.u32 %s0, 4
          %s221 = int_to_ptr.vmem [resolvable:$true] %s220
          %223 = dma.vmem_to_smem %s221, 32, [#allocation4], [#allocation5]
        $region16: #{aligned_l2_forward.3} parent=11 // pred_fallthru
          _
      $region12: #{aligned_l2_forward.3} parent=5 // pred_fallthru
        _
      %p224 = scmp.lt.s32.totalorder %s13, 4
      // Predicated region
      $region17: #{aligned_l2_forward.3} parent=5 // pred_check
        %p225 = pneg %p224
      $region18: #{aligned_l2_forward.3} parent=5 // pred_check_branch
        %227 = sbr.rel (%p225) target = $region20
      $region19: #{aligned_l2_forward.3} parent=5 // pred_region
        // Predicated region
        $region21: #{aligned_l2_forward.3} parent=19 // pred_check
          %p228 = pneg %p77
        $region22: #{aligned_l2_forward.3} parent=19 // pred_check_branch
          %230 = sbr.rel (%p228) target = $region24
        $region23: #{aligned_l2_forward.3} parent=19 // pred_region
          %s231 = sand.u32 %s67, 1
          %s232 = sand.u32 %s67, 1
          %s233 = smul.addr %s232, 60
          %s234 = scalar_lea.vmem [#allocation6], %s233
          %s235 = sadd.s32 %s20, %s22
          %s236 = smul.u32 5, %s235
          %s237 = smul.addr %s21, 30
          %s238 = sadd.s32 %s236, %s237
          %s239 = smul.addr %s238, 4
          %s240 = scalar_lea.vmem %s1, %s239
          // Predicated region
          $region25: #{aligned_l2_forward.3} parent=23 // pred_check
            _
          $region26: #{aligned_l2_forward.3} parent=23 // pred_check_branch
            %242 = sbr.rel (0) target = $region28
          $region27: #{aligned_l2_forward.3} parent=23 // pred_region
            // Predicated region
            $region29: #{aligned_l2_forward.3} parent=27 // pred_check
              _
            $region30: #{aligned_l2_forward.3} parent=27 // pred_check_branch
              %244 = sbr.rel target = $region32
            $region31: #{aligned_l2_forward.3} parent=27 // pred_region
              // Predicated region
              $region44: #{aligned_l2_forward.3} parent=31 // pred_check
                _
              $region45: #{aligned_l2_forward.3} parent=31 // pred_check_branch
                %288 = sbr.rel (0) target = $region47
              $region46: #{aligned_l2_forward.3} parent=31 // pred_region
                loop: start=0, step=1, limit=1
                $region48: #{aligned_l2_forward.3} parent=46 // loop_pre_header
                  _
                $region49: #{aligned_l2_forward.3} parent=46 // loop_header
                  %s290 = sphi 0, %s294
                  %p291 = scmp.ge.s32.totalorder %s290, 1
                  %s295 = sphi %s240, %s240
                  %s296 = sphi %s234, %s234
                $region50: #{aligned_l2_forward.3} parent=46 // loop_header_branch
                  %293 = sbr.rel (%p291) target = $region54
                $region51: #{aligned_l2_forward.3} parent=46 // loop_body
                  _
                $region52: #{aligned_l2_forward.3} parent=46 // loop_footer
                  %s294 = sadd.s32 1, %s290
                $region53: #{aligned_l2_forward.3} parent=46 // loop_footer_branch
                  %289 = sbr.rel target = $region49
                $region54: #{aligned_l2_forward.3} parent=46 // loop_exit
                  _
                %s298 = ssub.s32 16, 1
                loop: start=0, step=1, limit=1
                $region55: #{aligned_l2_forward.3} parent=46 // loop_pre_header
                  _
                $region56: #{aligned_l2_forward.3} parent=46 // loop_header
                  %s300 = sphi 0, %s304
                  %p301 = scmp.ge.s32.totalorder %s300, 1
                  %s305 = sphi %s240, %s240
                  %s306 = sphi %s234, %s234
                $region57: #{aligned_l2_forward.3} parent=46 // loop_header_branch
                  %303 = sbr.rel (%p301) target = $region61
                $region58: #{aligned_l2_forward.3} parent=46 // loop_body
                  %v307 = vld [vmem:[%s305] sm:%s298]
                  %308 = vst [vmem:[%s306] sm:%s298] %v307
                  %v309 = vld [vmem:[%s305 + $0x4] sm:%s298]
                  %310 = vst [vmem:[%s306 + $0x4] sm:%s298] %v309
                  %v311 = vld [vmem:[%s305 + $0x8] sm:%s298]
                  %312 = vst [vmem:[%s306 + $0x8] sm:%s298] %v311
                  %v313 = vld [vmem:[%s305 + $0xc] sm:%s298]
                  %314 = vst [vmem:[%s306 + $0xc] sm:%s298] %v313
                  %v315 = vld [vmem:[%s305 + $0x10] sm:%s298]
                  %316 = vst [vmem:[%s306 + $0x10] sm:%s298] %v315
                  %v317 = vld [vmem:[%s305 + $0x28] sm:%s298]
                  %318 = vst [vmem:[%s306 + $0x14] sm:%s298] %v317
                  %v319 = vld [vmem:[%s305 + $0x2c] sm:%s298]
                  %320 = vst [vmem:[%s306 + $0x18] sm:%s298] %v319
                  %v321 = vld [vmem:[%s305 + $0x30] sm:%s298]
                  %322 = vst [vmem:[%s306 + $0x1c] sm:%s298] %v321
                  %v323 = vld [vmem:[%s305 + $0x34] sm:%s298]
                  %324 = vst [vmem:[%s306 + $0x20] sm:%s298] %v323
                  %v325 = vld [vmem:[%s305 + $0x38] sm:%s298]
                  %326 = vst [vmem:[%s306 + $0x24] sm:%s298] %v325
                  %v327 = vld [vmem:[%s305 + $0x50] sm:%s298]
                  %328 = vst [vmem:[%s306 + $0x28] sm:%s298] %v327
                  %v329 = vld [vmem:[%s305 + $0x54] sm:%s298]
                  %330 = vst [vmem:[%s306 + $0x2c] sm:%s298] %v329
                  %v331 = vld [vmem:[%s305 + $0x58] sm:%s298]
                  %332 = vst [vmem:[%s306 + $0x30] sm:%s298] %v331
                  %v333 = vld [vmem:[%s305 + $0x5c] sm:%s298]
                  %334 = vst [vmem:[%s306 + $0x34] sm:%s298] %v333
                  %v335 = vld [vmem:[%s305 + $0x60] sm:%s298]
                  %336 = vst [vmem:[%s306 + $0x38] sm:%s298] %v335
                $region59: #{aligned_l2_forward.3} parent=46 // loop_footer
                  %s304 = sadd.s32 1, %s300
                $region60: #{aligned_l2_forward.3} parent=46 // loop_footer_branch
                  %299 = sbr.rel target = $region56
                $region61: #{aligned_l2_forward.3} parent=46 // loop_exit
                  _
              $region47: #{aligned_l2_forward.3} parent=31 // pred_fallthru
                _
            $region32: #{aligned_l2_forward.3} parent=27 // pred_fallthru
              _
            // Predicated region
            $region33: #{aligned_l2_forward.3} parent=27 // pred_check
              _
            $region34: #{aligned_l2_forward.3} parent=27 // pred_check_branch
              %246 = sbr.rel (0) target = $region36
            $region35: #{aligned_l2_forward.3} parent=27 // pred_region
              %s248 = ssub.s32 16, 1
              loop: start=0, step=1, limit=1
              $region37: #{aligned_l2_forward.3} parent=35 // loop_pre_header
                _
              $region38: #{aligned_l2_forward.3} parent=35 // loop_header
                %s250 = sphi 0, %s254
                %p251 = scmp.ge.s32.totalorder %s250, 1
                %s255 = sphi %s240, %s240
                %s256 = sphi %s234, %s234
              $region39: #{aligned_l2_forward.3} parent=35 // loop_header_branch
                %253 = sbr.rel (%p251) target = $region43
              $region40: #{aligned_l2_forward.3} parent=35 // loop_body
                %v257 = vld [vmem:[%s255] sm:%s248]
                %258 = vst [vmem:[%s256] sm:%s248] %v257
                %v259 = vld [vmem:[%s255 + $0x4] sm:%s248]
                %260 = vst [vmem:[%s256 + $0x4] sm:%s248] %v259
                %v261 = vld [vmem:[%s255 + $0x8] sm:%s248]
                %262 = vst [vmem:[%s256 + $0x8] sm:%s248] %v261
                %v263 = vld [vmem:[%s255 + $0xc] sm:%s248]
                %264 = vst [vmem:[%s256 + $0xc] sm:%s248] %v263
                %v265 = vld [vmem:[%s255 + $0x10] sm:%s248]
                %266 = vst [vmem:[%s256 + $0x10] sm:%s248] %v265
                %v267 = vld [vmem:[%s255 + $0x28] sm:%s248]
                %268 = vst [vmem:[%s256 + $0x14] sm:%s248] %v267
                %v269 = vld [vmem:[%s255 + $0x2c] sm:%s248]
                %270 = vst [vmem:[%s256 + $0x18] sm:%s248] %v269
                %v271 = vld [vmem:[%s255 + $0x30] sm:%s248]
                %272 = vst [vmem:[%s256 + $0x1c] sm:%s248] %v271
                %v273 = vld [vmem:[%s255 + $0x34] sm:%s248]
                %274 = vst [vmem:[%s256 + $0x20] sm:%s248] %v273
                %v275 = vld [vmem:[%s255 + $0x38] sm:%s248]
                %276 = vst [vmem:[%s256 + $0x24] sm:%s248] %v275
                %v277 = vld [vmem:[%s255 + $0x50] sm:%s248]
                %278 = vst [vmem:[%s256 + $0x28] sm:%s248] %v277
                %v279 = vld [vmem:[%s255 + $0x54] sm:%s248]
                %280 = vst [vmem:[%s256 + $0x2c] sm:%s248] %v279
                %v281 = vld [vmem:[%s255 + $0x58] sm:%s248]
                %282 = vst [vmem:[%s256 + $0x30] sm:%s248] %v281
                %v283 = vld [vmem:[%s255 + $0x5c] sm:%s248]
                %284 = vst [vmem:[%s256 + $0x34] sm:%s248] %v283
                %v285 = vld [vmem:[%s255 + $0x60] sm:%s248]
                %286 = vst [vmem:[%s256 + $0x38] sm:%s248] %v285
              $region41: #{aligned_l2_forward.3} parent=35 // loop_footer
                %s254 = sadd.s32 1, %s250
              $region42: #{aligned_l2_forward.3} parent=35 // loop_footer_branch
                %249 = sbr.rel target = $region38
              $region43: #{aligned_l2_forward.3} parent=35 // loop_exit
                _
            $region36: #{aligned_l2_forward.3} parent=27 // pred_fallthru
              _
          $region28: #{aligned_l2_forward.3} parent=23 // pred_fallthru
            _
          %337 = vnop
        $region24: #{aligned_l2_forward.3} parent=19 // pred_fallthru
          _
        // Predicated region
        $region62: #{aligned_l2_forward.3} parent=19 // pred_check
          %p338 = pneg %p107
        $region63: #{aligned_l2_forward.3} parent=19 // pred_check_branch
          %340 = sbr.rel (%p338) target = $region65
        $region64: #{aligned_l2_forward.3} parent=19 // pred_region
          %s341 = sand.u32 %s97, 1
          %s342 = sand.u32 %s97, 1
          %s343 = smul.addr %s342, 60
          %s344 = scalar_lea.vmem [#allocation7], %s343
          %s345 = sadd.s32 %s20, %s22
          %s346 = smul.u32 5, %s345
          %s347 = smul.addr %s21, 30
          %s348 = sadd.s32 %s346, %s347
          %s349 = smul.addr %s348, 4
          %s350 = scalar_lea.vmem %s2, %s349
          // Predicated region
          $region66: #{aligned_l2_forward.3} parent=64 // pred_check
            _
          $region67: #{aligned_l2_forward.3} parent=64 // pred_check_branch
            %352 = sbr.rel (0) target = $region69
          $region68: #{aligned_l2_forward.3} parent=64 // pred_region
            // Predicated region
            $region70: #{aligned_l2_forward.3} parent=68 // pred_check
              _
            $region71: #{aligned_l2_forward.3} parent=68 // pred_check_branch
              %354 = sbr.rel target = $region73
            $region72: #{aligned_l2_forward.3} parent=68 // pred_region
              // Predicated region
              $region85: #{aligned_l2_forward.3} parent=72 // pred_check
                _
              $region86: #{aligned_l2_forward.3} parent=72 // pred_check_branch
                %398 = sbr.rel (0) target = $region88
              $region87: #{aligned_l2_forward.3} parent=72 // pred_region
                loop: start=0, step=1, limit=1
                $region89: #{aligned_l2_forward.3} parent=87 // loop_pre_header
                  _
                $region90: #{aligned_l2_forward.3} parent=87 // loop_header
                  %s400 = sphi 0, %s404
                  %p401 = scmp.ge.s32.totalorder %s400, 1
                  %s405 = sphi %s350, %s350
                  %s406 = sphi %s344, %s344
                $region91: #{aligned_l2_forward.3} parent=87 // loop_header_branch
                  %403 = sbr.rel (%p401) target = $region95
                $region92: #{aligned_l2_forward.3} parent=87 // loop_body
                  _
                $region93: #{aligned_l2_forward.3} parent=87 // loop_footer
                  %s404 = sadd.s32 1, %s400
                $region94: #{aligned_l2_forward.3} parent=87 // loop_footer_branch
                  %399 = sbr.rel target = $region90
                $region95: #{aligned_l2_forward.3} parent=87 // loop_exit
                  _
                %s408 = ssub.s32 16, 1
                loop: start=0, step=1, limit=1
                $region96: #{aligned_l2_forward.3} parent=87 // loop_pre_header
                  _
                $region97: #{aligned_l2_forward.3} parent=87 // loop_header
                  %s410 = sphi 0, %s414
                  %p411 = scmp.ge.s32.totalorder %s410, 1
                  %s415 = sphi %s350, %s350
                  %s416 = sphi %s344, %s344
                $region98: #{aligned_l2_forward.3} parent=87 // loop_header_branch
                  %413 = sbr.rel (%p411) target = $region102
                $region99: #{aligned_l2_forward.3} parent=87 // loop_body
                  %v417 = vld [vmem:[%s415] sm:%s408]
                  %418 = vst [vmem:[%s416] sm:%s408] %v417
                  %v419 = vld [vmem:[%s415 + $0x4] sm:%s408]
                  %420 = vst [vmem:[%s416 + $0x4] sm:%s408] %v419
                  %v421 = vld [vmem:[%s415 + $0x8] sm:%s408]
                  %422 = vst [vmem:[%s416 + $0x8] sm:%s408] %v421
                  %v423 = vld [vmem:[%s415 + $0xc] sm:%s408]
                  %424 = vst [vmem:[%s416 + $0xc] sm:%s408] %v423
                  %v425 = vld [vmem:[%s415 + $0x10] sm:%s408]
                  %426 = vst [vmem:[%s416 + $0x10] sm:%s408] %v425
                  %v427 = vld [vmem:[%s415 + $0x28] sm:%s408]
                  %428 = vst [vmem:[%s416 + $0x14] sm:%s408] %v427
                  %v429 = vld [vmem:[%s415 + $0x2c] sm:%s408]
                  %430 = vst [vmem:[%s416 + $0x18] sm:%s408] %v429
                  %v431 = vld [vmem:[%s415 + $0x30] sm:%s408]
                  %432 = vst [vmem:[%s416 + $0x1c] sm:%s408] %v431
                  %v433 = vld [vmem:[%s415 + $0x34] sm:%s408]
                  %434 = vst [vmem:[%s416 + $0x20] sm:%s408] %v433
                  %v435 = vld [vmem:[%s415 + $0x38] sm:%s408]
                  %436 = vst [vmem:[%s416 + $0x24] sm:%s408] %v435
                  %v437 = vld [vmem:[%s415 + $0x50] sm:%s408]
                  %438 = vst [vmem:[%s416 + $0x28] sm:%s408] %v437
                  %v439 = vld [vmem:[%s415 + $0x54] sm:%s408]
                  %440 = vst [vmem:[%s416 + $0x2c] sm:%s408] %v439
                  %v441 = vld [vmem:[%s415 + $0x58] sm:%s408]
                  %442 = vst [vmem:[%s416 + $0x30] sm:%s408] %v441
                  %v443 = vld [vmem:[%s415 + $0x5c] sm:%s408]
                  %444 = vst [vmem:[%s416 + $0x34] sm:%s408] %v443
                  %v445 = vld [vmem:[%s415 + $0x60] sm:%s408]
                  %446 = vst [vmem:[%s416 + $0x38] sm:%s408] %v445
                $region100: #{aligned_l2_forward.3} parent=87 // loop_footer
                  %s414 = sadd.s32 1, %s410
                $region101: #{aligned_l2_forward.3} parent=87 // loop_footer_branch
                  %409 = sbr.rel target = $region97
                $region102: #{aligned_l2_forward.3} parent=87 // loop_exit
                  _
              $region88: #{aligned_l2_forward.3} parent=72 // pred_fallthru
                _
            $region73: #{aligned_l2_forward.3} parent=68 // pred_fallthru
              _
            // Predicated region
            $region74: #{aligned_l2_forward.3} parent=68 // pred_check
              _
            $region75: #{aligned_l2_forward.3} parent=68 // pred_check_branch
              %356 = sbr.rel (0) target = $region77
            $region76: #{aligned_l2_forward.3} parent=68 // pred_region
              %s358 = ssub.s32 16, 1
              loop: start=0, step=1, limit=1
              $region78: #{aligned_l2_forward.3} parent=76 // loop_pre_header
                _
              $region79: #{aligned_l2_forward.3} parent=76 // loop_header
                %s360 = sphi 0, %s364
                %p361 = scmp.ge.s32.totalorder %s360, 1
                %s365 = sphi %s350, %s350
                %s366 = sphi %s344, %s344
              $region80: #{aligned_l2_forward.3} parent=76 // loop_header_branch
                %363 = sbr.rel (%p361) target = $region84
              $region81: #{aligned_l2_forward.3} parent=76 // loop_body
                %v367 = vld [vmem:[%s365] sm:%s358]
                %368 = vst [vmem:[%s366] sm:%s358] %v367
                %v369 = vld [vmem:[%s365 + $0x4] sm:%s358]
                %370 = vst [vmem:[%s366 + $0x4] sm:%s358] %v369
                %v371 = vld [vmem:[%s365 + $0x8] sm:%s358]
                %372 = vst [vmem:[%s366 + $0x8] sm:%s358] %v371
                %v373 = vld [vmem:[%s365 + $0xc] sm:%s358]
                %374 = vst [vmem:[%s366 + $0xc] sm:%s358] %v373
                %v375 = vld [vmem:[%s365 + $0x10] sm:%s358]
                %376 = vst [vmem:[%s366 + $0x10] sm:%s358] %v375
                %v377 = vld [vmem:[%s365 + $0x28] sm:%s358]
                %378 = vst [vmem:[%s366 + $0x14] sm:%s358] %v377
                %v379 = vld [vmem:[%s365 + $0x2c] sm:%s358]
                %380 = vst [vmem:[%s366 + $0x18] sm:%s358] %v379
                %v381 = vld [vmem:[%s365 + $0x30] sm:%s358]
                %382 = vst [vmem:[%s366 + $0x1c] sm:%s358] %v381
                %v383 = vld [vmem:[%s365 + $0x34] sm:%s358]
                %384 = vst [vmem:[%s366 + $0x20] sm:%s358] %v383
                %v385 = vld [vmem:[%s365 + $0x38] sm:%s358]
                %386 = vst [vmem:[%s366 + $0x24] sm:%s358] %v385
                %v387 = vld [vmem:[%s365 + $0x50] sm:%s358]
                %388 = vst [vmem:[%s366 + $0x28] sm:%s358] %v387
                %v389 = vld [vmem:[%s365 + $0x54] sm:%s358]
                %390 = vst [vmem:[%s366 + $0x2c] sm:%s358] %v389
                %v391 = vld [vmem:[%s365 + $0x58] sm:%s358]
                %392 = vst [vmem:[%s366 + $0x30] sm:%s358] %v391
                %v393 = vld [vmem:[%s365 + $0x5c] sm:%s358]
                %394 = vst [vmem:[%s366 + $0x34] sm:%s358] %v393
                %v395 = vld [vmem:[%s365 + $0x60] sm:%s358]
                %396 = vst [vmem:[%s366 + $0x38] sm:%s358] %v395
              $region82: #{aligned_l2_forward.3} parent=76 // loop_footer
                %s364 = sadd.s32 1, %s360
              $region83: #{aligned_l2_forward.3} parent=76 // loop_footer_branch
                %359 = sbr.rel target = $region79
              $region84: #{aligned_l2_forward.3} parent=76 // loop_exit
                _
            $region77: #{aligned_l2_forward.3} parent=68 // pred_fallthru
              _
          $region69: #{aligned_l2_forward.3} parent=64 // pred_fallthru
            _
          %447 = vnop
        $region65: #{aligned_l2_forward.3} parent=19 // pred_fallthru
          _
        // Predicated region
        $region103: #{aligned_l2_forward.3} parent=19 // pred_check
          %p448 = pneg %p137
        $region104: #{aligned_l2_forward.3} parent=19 // pred_check_branch
          %450 = sbr.rel (%p448) target = $region106
        $region105: #{aligned_l2_forward.3} parent=19 // pred_region
          %s451 = sadd.s32 %s20, %s22
          %s452 = smul.u32 5, %s451
          %p453 = scmp.lt.s32.totalorder %s21, 1
          %s454 = scalar_select %p453, %s21, 1
          %p455 = scmp.lt.s32.totalorder %s452, 9
          %s456 = scalar_select %p455, %s452, 9
          %s457 = smul.addr %s454, 10
          %s458 = sadd.s32 %s456, %s457
          %s459 = smul.addr %s458, 4
          %s460 = scalar_lea.vmem %s3, %s459
          %s461 = sadd.s32 %s20, %s22
          %s462 = smul.u32 5, %s461
        $region106: #{aligned_l2_forward.3} parent=19 // pred_fallthru
          _
      $region20: #{aligned_l2_forward.3} parent=5 // pred_fallthru
        _
      %p463 = scmp.le.s32.totalorder 1, %s13
      %p464 = scmp.lt.s32.totalorder %s13, 5
      %p465 = pnand %p463, %p464
      %p466 = pneg %p465
      // Predicated region
      $region107: #{aligned_l2_forward.3} parent=5 // pred_check
        _
      $region108: #{aligned_l2_forward.3} parent=5 // pred_check_branch
        %468 = sbr.rel (%p465) target = $region110
      $region109: #{aligned_l2_forward.3} parent=5 // pred_region
        %s469 = ssub.s32 %s13, 1
        // Predicated region
        $region111: #{aligned_l2_forward.3} parent=109 // pred_check
          %p470 = pneg %p53
        $region112: #{aligned_l2_forward.3} parent=109 // pred_check_branch
          %472 = sbr.rel (%p470) target = $region114
        $region113: #{aligned_l2_forward.3} parent=109 // pred_region
          %474 = dma.done [#allocation5], 32
        $region114: #{aligned_l2_forward.3} parent=109 // pred_fallthru
          _
        %s475 = sand.u32 %s70, 1
        %s476 = sand.u32 %s70, 1
        %s477 = smul.addr %s476, 60
        %s478 = scalar_lea.vmem [#allocation6], %s477
        // Predicated region
        $region115: #{aligned_l2_forward.3} parent=109 // pred_check
          %p479 = pneg %p83
        $region116: #{aligned_l2_forward.3} parent=109 // pred_check_branch
          %481 = sbr.rel (%p479) target = $region118
        $region117: #{aligned_l2_forward.3} parent=109 // pred_region
          _
        $region118: #{aligned_l2_forward.3} parent=109 // pred_fallthru
          _
        %s482 = sand.u32 %s100, 1
        %s483 = sand.u32 %s100, 1
        %s484 = smul.addr %s483, 60
        %s485 = scalar_lea.vmem [#allocation7], %s484
        // Predicated region
        $region119: #{aligned_l2_forward.3} parent=109 // pred_check
          %p486 = pneg %p113
        $region120: #{aligned_l2_forward.3} parent=109 // pred_check_branch
          %488 = sbr.rel (%p486) target = $region122
        $region121: #{aligned_l2_forward.3} parent=109 // pred_region
          _
        $region122: #{aligned_l2_forward.3} parent=109 // pred_fallthru
          _
        %489 = sfence
        %p490 = pneg %p53
        %p491 = pneg %p50
        %s492 = sand.u32 %s70, 1
        %s493 = sand.u32 %s70, 1
        %s494 = smul.addr %s493, 60
        %s495 = scalar_lea.vmem [#allocation6], %s494
        %p496 = pneg %p83
        %p497 = pneg %p80
        %s498 = sand.u32 %s100, 1
        %s499 = sand.u32 %s100, 1
        %s500 = smul.addr %s499, 60
        %s501 = scalar_lea.vmem [#allocation7], %s500
        %p502 = pneg %p113
        %p503 = pneg %p110
        %s504 = sadd.s32 %s23, %s25
        %s505 = smul.u32 5, %s504
        %p506 = scmp.lt.s32.totalorder %s24, 1
        %s507 = scalar_select %p506, %s24, 1
        %p508 = scmp.lt.s32.totalorder %s505, 9
        %s509 = scalar_select %p508, %s505, 9
        %s510 = smul.addr %s507, 10
        %s511 = sadd.s32 %s509, %s510
        %s512 = smul.addr %s511, 4
        %s513 = scalar_lea.vmem %s3, %s512
        %p514 = pneg %p143
        %p515 = pneg %p140
        %p516 = pneg %p171
        %p517 = pneg %p168
        %p518 = scmp.lt.s32.totalorder %s23, 1
        %s519 = scalar_select %p518, %s23, 1
        %p520 = scmp.lt.s32.totalorder %s24, 1
        %s521 = scalar_select %p520, %s24, 1
        %s522 = smul.addr %s519, 2
        %s523 = sadd.s32 %s521, %s522
        %s524 = smul.addr %s523, 4
        %s525 = scalar_lea.vmem %s4, %s524
        %p526 = pneg %p199
        %p527 = pneg %p196
        %p528 = scmp.lt.s32.totalorder %s23, 1
        %s529 = scalar_select %p528, %s23, 1
        %p530 = scmp.lt.s32.totalorder %s24, 1
        %s531 = scalar_select %p530, %s24, 1
        %s532 = smul.addr %s529, 2
        %s533 = sadd.s32 %s531, %s532
        %s534 = scalar_lea.vmem %s5, %s533
        %s535 = sadd.s32 %s23, %s25
        %s536 = smul.u32 5, %s535
        %s537 = sadd.s32 %s23, %s25
        %s538 = smul.u32 5, %s537
        %s539 = sadd.s32 %s23, %s25
        %s540 = smul.u32 5, %s539
        %p541 = scmp.lt.s32.totalorder %s24, 1
        %s542 = scalar_select %p541, %s24, 1
        %p543 = scmp.lt.s32.totalorder %s540, 9
        %s544 = scalar_select %p543, %s540, 9
        %s545 = smul.addr %s542, 10
        %s546 = sadd.s32 %s544, %s545
        %s547 = smul.addr %s546, 4
        %s548 = scalar_lea.vmem %s3, %s547
        %s549 = sadd.s32 %s23, %s25
        %s550 = smul.u32 5, %s549
        %p551 = scmp.lt.s32.totalorder %s23, 1
        %s552 = scalar_select %p551, %s23, 1
        %p553 = scmp.lt.s32.totalorder %s24, 1
        %s554 = scalar_select %p553, %s24, 1
        %s555 = smul.addr %s552, 2
        %s556 = sadd.s32 %s554, %s555
        %s557 = smul.addr %s556, 4
        %s558 = scalar_lea.vmem %s4, %s557
        %p559 = scmp.lt.s32.totalorder %s23, 1
        %s560 = scalar_select %p559, %s23, 1
        %p561 = scmp.lt.s32.totalorder %s24, 1
        %s562 = scalar_select %p561, %s24, 1
        %s563 = smul.addr %s560, 2
        %s564 = sadd.s32 %s562, %s563
        %s565 = scalar_lea.vmem %s5, %s564
        %p566 = scmp.eq.s32.totalorder %s25, 0
        // Predicated region
        $region123: #{aligned_l2_forward.3} parent=109 // pred_check
          %p567 = pneg %p566
        $region124: #{aligned_l2_forward.3} parent=109 // pred_check_branch
          %569 = sbr.rel (%p567) target = $region126
        $region125: #{aligned_l2_forward.3} parent=109 // pred_region
          %570 = vst [vmem:[#allocation2] sm:$0xff] 0.0
          %571 = vst [vmem:[#allocation2 + $0x8] sm:$0xff] 0.0
          %572 = vst [vmem:[#allocation2 + $0x10] sm:$0xff] 0.0
          %573 = vst [vmem:[#allocation2 + $0x18] sm:$0xff] 0.0
          %574 = vst [vmem:[#allocation2 + $0x20] sm:$0xff] 0.0
          %575 = vst [vmem:[#allocation2 + $0x28] sm:$0xff] 0.0
          %576 = vst [vmem:[#allocation2 + $0x30] sm:$0xff] 0.0
          %577 = vst [vmem:[#allocation2 + $0x38] sm:$0xff] 0.0
          %578 = vst [vmem:[#allocation2 + $0x40] sm:$0xff] 0.0
          %579 = vst [vmem:[#allocation2 + $0x48] sm:$0xff] 0.0
          %580 = vst [vmem:[#allocation2 + $0x50] sm:$0xff] 0.0
          %581 = vst [vmem:[#allocation2 + $0x58] sm:$0xff] 0.0
          %582 = vst [vmem:[#allocation2 + $0x60] sm:$0xff] 0.0
          %583 = vst [vmem:[#allocation2 + $0x68] sm:$0xff] 0.0
          %584 = vst [vmem:[#allocation2 + $0x70] sm:$0xff] 0.0
          %585 = vst [vmem:[#allocation3] sm:$0xff] 0.0
          %586 = vst [vmem:[#allocation3 + $0x8] sm:$0xff] 0.0
          %587 = vst [vmem:[#allocation3 + $0x10] sm:$0xff] 0.0
          %588 = vst [vmem:[#allocation3 + $0x18] sm:$0xff] 0.0
          %589 = vst [vmem:[#allocation3 + $0x20] sm:$0xff] 0.0
        $region126: #{aligned_l2_forward.3} parent=109 // pred_fallthru
          _
        %v590 = vld [vmem:[%s478] sm:$0xf]
        %v591 = vld [vmem:[%s478 + $0x4] sm:$0xf]
        %v592 = vld [vmem:[%s478 + $0x8] sm:$0xf]
        %v593 = vld [vmem:[%s478 + $0xc] sm:$0xf]
        %v594 = vld [vmem:[%s478 + $0x10] sm:$0xf]
        %v595 = vunpack.c.l.bf16 %v590
        %v596 = vunpack.c.l.bf16 %v591
        %v597 = vunpack.c.l.bf16 %v592
        %v598 = vunpack.c.l.bf16 %v593
        %v599 = vunpack.c.l.bf16 %v594
        %s600 = scalar_lea.vmem %s478, 20 [#allocation6]
        %v601 = vld [vmem:[%s600] sm:$0xf]
        %v602 = vld [vmem:[%s600 + $0x4] sm:$0xf]
        %v603 = vld [vmem:[%s600 + $0x8] sm:$0xf]
        %v604 = vld [vmem:[%s600 + $0xc] sm:$0xf]
        %v605 = vld [vmem:[%s600 + $0x10] sm:$0xf]
        %v606 = vunpack.c.l.bf16 %v601
        %v607 = vunpack.c.l.bf16 %v602
        %v608 = vunpack.c.l.bf16 %v603
        %v609 = vunpack.c.l.bf16 %v604
        %v610 = vunpack.c.l.bf16 %v605
        %s611 = scalar_lea.vmem %s478, 40 [#allocation6]
        %v612 = vld [vmem:[%s611] sm:$0xf]
        %v613 = vld [vmem:[%s611 + $0x4] sm:$0xf]
        %v614 = vld [vmem:[%s611 + $0x8] sm:$0xf]
        %v615 = vld [vmem:[%s611 + $0xc] sm:$0xf]
        %v616 = vld [vmem:[%s611 + $0x10] sm:$0xf]
        %v617 = vunpack.c.l.bf16 %v612
        %v618 = vunpack.c.l.bf16 %v613
        %v619 = vunpack.c.l.bf16 %v614
        %v620 = vunpack.c.l.bf16 %v615
        %v621 = vunpack.c.l.bf16 %v616
        %v622 = vld [vmem:[%s548] sm:$0xf]
        %v623 = vld [vmem:[%s548 + $0x4] sm:$0xf]
        %v624 = vld [vmem:[%s548 + $0x8] sm:$0xf]
        %v625 = vld [vmem:[%s548 + $0xc] sm:$0xf]
        %v626 = vld [vmem:[%s548 + $0x10] sm:$0xf]
        %v627 = vunpack.c.l.bf16 %v622
        %v628 = vunpack.c.l.bf16 %v623
        %v629 = vunpack.c.l.bf16 %v624
        %v630 = vunpack.c.l.bf16 %v625
        %v631 = vunpack.c.l.bf16 %v626
        %s632 = smul.u32 %s24, 128
        %s633 = sld [smem:[#allocation4 + %s632]]
        %v634 = vstv %s633
        %v635 = vmul.f32 %v634, %v595
        %v636 = vmul.f32 %v634, %v596
        %v637 = vmul.f32 %v634, %v597
        %v638 = vmul.f32 %v634, %v598
        %v639 = vmul.f32 %v634, %v599
        %s640 = sadd.s32 %s632, 1
        %s641 = sld [smem:[#allocation4 + %s640]]
        %v642 = vstv %s641
        %v643 = vmul.f32 %v642, %v606
        %v644 = vmul.f32 %v642, %v607
        %v645 = vmul.f32 %v642, %v608
        %v646 = vmul.f32 %v642, %v609
        %v647 = vmul.f32 %v642, %v610
        %v648 = vadd.f32 %v635, %v643
        %v649 = vadd.f32 %v636, %v644
        %v650 = vadd.f32 %v637, %v645
        %v651 = vadd.f32 %v638, %v646
        %v652 = vadd.f32 %v639, %v647
        %s653 = sadd.s32 %s632, 2
        %s654 = sld [smem:[#allocation4 + %s653]]
        %v655 = vstv %s654
        %v656 = vmul.f32 %v655, %v617
        %v657 = vmul.f32 %v655, %v618
        %v658 = vmul.f32 %v655, %v619
        %v659 = vmul.f32 %v655, %v620
        %v660 = vmul.f32 %v655, %v621
        %v661 = vadd.f32 %v648, %v656
        %v662 = vadd.f32 %v649, %v657
        %v663 = vadd.f32 %v650, %v658
        %v664 = vadd.f32 %v651, %v659
        %v665 = vadd.f32 %v652, %v660
        %v666 = vld [vmem:[%s485] sm:$0xf]
        %v667 = vld [vmem:[%s485 + $0x4] sm:$0xf]
        %v668 = vld [vmem:[%s485 + $0x8] sm:$0xf]
        %v669 = vld [vmem:[%s485 + $0xc] sm:$0xf]
        %v670 = vld [vmem:[%s485 + $0x10] sm:$0xf]
        %v671 = vunpack.c.l.bf16 %v666
        %v672 = vunpack.c.l.bf16 %v667
        %v673 = vunpack.c.l.bf16 %v668
        %v674 = vunpack.c.l.bf16 %v669
        %v675 = vunpack.c.l.bf16 %v670
        %v676 = vsub.f32 %v661, %v671
        %v677 = vsub.f32 %v662, %v672
        %v678 = vsub.f32 %v663, %v673
        %v679 = vsub.f32 %v664, %v674
        %v680 = vsub.f32 %v665, %v675
        %v681 = vld [vmem:[#allocation2] sm:$0xff]
        %v682 = vld [vmem:[#allocation2 + $0x8] sm:$0xff]
        %v683 = vld [vmem:[#allocation2 + $0x10] sm:$0xff]
        %v684 = vld [vmem:[#allocation2 + $0x18] sm:$0xff]
        %v685 = vld [vmem:[#allocation2 + $0x20] sm:$0xff]
        %v686 = vmul.f32 %v676, %v676
        %v687 = vmul.f32 %v677, %v677
        %v688 = vmul.f32 %v678, %v678
        %v689 = vmul.f32 %v679, %v679
        %v690 = vmul.f32 %v680, %v680
        %v691 = vmul.f32 %v686, %v627
        %v692 = vmul.f32 %v687, %v628
        %v693 = vmul.f32 %v688, %v629
        %v694 = vmul.f32 %v689, %v630
        %v695 = vmul.f32 %v690, %v631
        %v696 = vadd.f32 %v681, %v691
        %v697 = vadd.f32 %v682, %v692
        %v698 = vadd.f32 %v683, %v693
        %v699 = vadd.f32 %v684, %v694
        %v700 = vadd.f32 %v685, %v695
        %701 = vst [vmem:[#allocation2] sm:$0xff] %v696
        %702 = vst [vmem:[#allocation2 + $0x8] sm:$0xff] %v697
        %703 = vst [vmem:[#allocation2 + $0x10] sm:$0xff] %v698
        %704 = vst [vmem:[#allocation2 + $0x18] sm:$0xff] %v699
        %705 = vst [vmem:[#allocation2 + $0x20] sm:$0xff] %v700
        %s706 = sadd.s32 %s632, 3
        %s707 = sld [smem:[#allocation4 + %s706]]
        %v708 = vstv %s707
        %v709 = vmul.f32 %v708, %v595
        %v710 = vmul.f32 %v708, %v596
        %v711 = vmul.f32 %v708, %v597
        %v712 = vmul.f32 %v708, %v598
        %v713 = vmul.f32 %v708, %v599
        %s714 = sadd.s32 %s632, 4
        %s715 = sld [smem:[#allocation4 + %s714]]
        %v716 = vstv %s715
        %v717 = vmul.f32 %v716, %v606
        %v718 = vmul.f32 %v716, %v607
        %v719 = vmul.f32 %v716, %v608
        %v720 = vmul.f32 %v716, %v609
        %v721 = vmul.f32 %v716, %v610
        %v722 = vadd.f32 %v709, %v717
        %v723 = vadd.f32 %v710, %v718
        %v724 = vadd.f32 %v711, %v719
        %v725 = vadd.f32 %v712, %v720
        %v726 = vadd.f32 %v713, %v721
        %s727 = sadd.s32 %s632, 5
        %s728 = sld [smem:[#allocation4 + %s727]]
        %v729 = vstv %s728
        %v730 = vmul.f32 %v729, %v617
        %v731 = vmul.f32 %v729, %v618
        %v732 = vmul.f32 %v729, %v619
        %v733 = vmul.f32 %v729, %v620
        %v734 = vmul.f32 %v729, %v621
        %v735 = vadd.f32 %v722, %v730
        %v736 = vadd.f32 %v723, %v731
        %v737 = vadd.f32 %v724, %v732
        %v738 = vadd.f32 %v725, %v733
        %v739 = vadd.f32 %v726, %v734
        %s740 = scalar_lea.vmem %s485, 20 [#allocation7]
        %v741 = vld [vmem:[%s740] sm:$0xf]
        %v742 = vld [vmem:[%s740 + $0x4] sm:$0xf]
        %v743 = vld [vmem:[%s740 + $0x8] sm:$0xf]
        %v744 = vld [vmem:[%s740 + $0xc] sm:$0xf]
        %v745 = vld [vmem:[%s740 + $0x10] sm:$0xf]
        %v746 = vunpack.c.l.bf16 %v741
        %v747 = vunpack.c.l.bf16 %v742
        %v748 = vunpack.c.l.bf16 %v743
        %v749 = vunpack.c.l.bf16 %v744
        %v750 = vunpack.c.l.bf16 %v745
        %v751 = vsub.f32 %v735, %v746
        %v752 = vsub.f32 %v736, %v747
        %v753 = vsub.f32 %v737, %v748
        %v754 = vsub.f32 %v738, %v749
        %v755 = vsub.f32 %v739, %v750
        %s756 = scalar_lea.vmem [#allocation2], 40
        %v757 = vld [vmem:[%s756] sm:$0xff]
        %v758 = vld [vmem:[%s756 + $0x8] sm:$0xff]
        %v759 = vld [vmem:[%s756 + $0x10] sm:$0xff]
        %v760 = vld [vmem:[%s756 + $0x18] sm:$0xff]
        %v761 = vld [vmem:[%s756 + $0x20] sm:$0xff]
        %v762 = vmul.f32 %v751, %v751
        %v763 = vmul.f32 %v752, %v752
        %v764 = vmul.f32 %v753, %v753
        %v765 = vmul.f32 %v754, %v754
        %v766 = vmul.f32 %v755, %v755
        %v767 = vmul.f32 %v762, %v627
        %v768 = vmul.f32 %v763, %v628
        %v769 = vmul.f32 %v764, %v629
        %v770 = vmul.f32 %v765, %v630
        %v771 = vmul.f32 %v766, %v631
        %v772 = vadd.f32 %v757, %v767
        %v773 = vadd.f32 %v758, %v768
        %v774 = vadd.f32 %v759, %v769
        %v775 = vadd.f32 %v760, %v770
        %v776 = vadd.f32 %v761, %v771
        %777 = vst [vmem:[%s756] sm:$0xff] %v772
        %778 = vst [vmem:[%s756 + $0x8] sm:$0xff] %v773
        %779 = vst [vmem:[%s756 + $0x10] sm:$0xff] %v774
        %780 = vst [vmem:[%s756 + $0x18] sm:$0xff] %v775
        %781 = vst [vmem:[%s756 + $0x20] sm:$0xff] %v776
        %s782 = sadd.s32 %s632, 6
        %s783 = sld [smem:[#allocation4 + %s782]]
        %v784 = vstv %s783
        %v785 = vmul.f32 %v784, %v595
        %v786 = vmul.f32 %v784, %v596
        %v787 = vmul.f32 %v784, %v597
        %v788 = vmul.f32 %v784, %v598
        %v789 = vmul.f32 %v784, %v599
        %s790 = sadd.s32 %s632, 7
        %s791 = sld [smem:[#allocation4 + %s790]]
        %v792 = vstv %s791
        %v793 = vmul.f32 %v792, %v606
        %v794 = vmul.f32 %v792, %v607
        %v795 = vmul.f32 %v792, %v608
        %v796 = vmul.f32 %v792, %v609
        %v797 = vmul.f32 %v792, %v610
        %v798 = vadd.f32 %v785, %v793
        %v799 = vadd.f32 %v786, %v794
        %v800 = vadd.f32 %v787, %v795
        %v801 = vadd.f32 %v788, %v796
        %v802 = vadd.f32 %v789, %v797
        %s803 = sadd.s32 %s632, 8
        %s804 = sld [smem:[#allocation4 + %s803]]
        %v805 = vstv %s804
        %v806 = vmul.f32 %v805, %v617
        %v807 = vmul.f32 %v805, %v618
        %v808 = vmul.f32 %v805, %v619
        %v809 = vmul.f32 %v805, %v620
        %v810 = vmul.f32 %v805, %v621
        %v811 = vadd.f32 %v798, %v806
        %v812 = vadd.f32 %v799, %v807
        %v813 = vadd.f32 %v800, %v808
        %v814 = vadd.f32 %v801, %v809
        %v815 = vadd.f32 %v802, %v810
        %s816 = scalar_lea.vmem %s485, 40 [#allocation7]
        %v817 = vld [vmem:[%s816] sm:$0xf]
        %v818 = vld [vmem:[%s816 + $0x4] sm:$0xf]
        %v819 = vld [vmem:[%s816 + $0x8] sm:$0xf]
        %v820 = vld [vmem:[%s816 + $0xc] sm:$0xf]
        %v821 = vld [vmem:[%s816 + $0x10] sm:$0xf]
        %v822 = vunpack.c.l.bf16 %v817
        %v823 = vunpack.c.l.bf16 %v818
        %v824 = vunpack.c.l.bf16 %v819
        %v825 = vunpack.c.l.bf16 %v820
        %v826 = vunpack.c.l.bf16 %v821
        %v827 = vsub.f32 %v811, %v822
        %v828 = vsub.f32 %v812, %v823
        %v829 = vsub.f32 %v813, %v824
        %v830 = vsub.f32 %v814, %v825
        %v831 = vsub.f32 %v815, %v826
        %s832 = scalar_lea.vmem [#allocation2], 80
        %v833 = vld [vmem:[%s832] sm:$0xff]
        %v834 = vld [vmem:[%s832 + $0x8] sm:$0xff]
        %v835 = vld [vmem:[%s832 + $0x10] sm:$0xff]
        %v836 = vld [vmem:[%s832 + $0x18] sm:$0xff]
        %v837 = vld [vmem:[%s832 + $0x20] sm:$0xff]
        %v838 = vmul.f32 %v827, %v827
        %v839 = vmul.f32 %v828, %v828
        %v840 = vmul.f32 %v829, %v829
        %v841 = vmul.f32 %v830, %v830
        %v842 = vmul.f32 %v831, %v831
        %v843 = vmul.f32 %v838, %v627
        %v844 = vmul.f32 %v839, %v628
        %v845 = vmul.f32 %v840, %v629
        %v846 = vmul.f32 %v841, %v630
        %v847 = vmul.f32 %v842, %v631
        %v848 = vadd.f32 %v833, %v843
        %v849 = vadd.f32 %v834, %v844
        %v850 = vadd.f32 %v835, %v845
        %v851 = vadd.f32 %v836, %v846
        %v852 = vadd.f32 %v837, %v847
        %853 = vst [vmem:[%s832] sm:$0xff] %v848
        %854 = vst [vmem:[%s832 + $0x8] sm:$0xff] %v849
        %855 = vst [vmem:[%s832 + $0x10] sm:$0xff] %v850
        %856 = vst [vmem:[%s832 + $0x18] sm:$0xff] %v851
        %857 = vst [vmem:[%s832 + $0x20] sm:$0xff] %v852
        %v858 = vld [vmem:[#allocation3] sm:$0xff]
        %v859 = vld [vmem:[#allocation3 + $0x8] sm:$0xff]
        %v860 = vld [vmem:[#allocation3 + $0x10] sm:$0xff]
        %v861 = vld [vmem:[#allocation3 + $0x18] sm:$0xff]
        %v862 = vld [vmem:[#allocation3 + $0x20] sm:$0xff]
        %v863 = vadd.f32 %v858, %v627
        %v864 = vadd.f32 %v859, %v628
        %v865 = vadd.f32 %v860, %v629
        %v866 = vadd.f32 %v861, %v630
        %v867 = vadd.f32 %v862, %v631
        %868 = vst [vmem:[#allocation3] sm:$0xff] %v863
        %869 = vst [vmem:[#allocation3 + $0x8] sm:$0xff] %v864
        %870 = vst [vmem:[#allocation3 + $0x10] sm:$0xff] %v865
        %871 = vst [vmem:[#allocation3 + $0x18] sm:$0xff] %v866
        %872 = vst [vmem:[#allocation3 + $0x20] sm:$0xff] %v867
        // Predicated region
        $region127: #{aligned_l2_forward.3} parent=109 // pred_check
          %p873 = pneg %p566
        $region128: #{aligned_l2_forward.3} parent=109 // pred_check_branch
          %875 = sbr.rel (%p873) target = $region130
        $region129: #{aligned_l2_forward.3} parent=109 // pred_region
          %v876 = vld [vmem:[#allocation2] sm:$0xff]
          %v877 = vld [vmem:[#allocation2 + $0x8] sm:$0xff]
          %v878 = vld [vmem:[#allocation2 + $0x10] sm:$0xff]
          %v879 = vld [vmem:[#allocation2 + $0x18] sm:$0xff]
          %v880 = vld [vmem:[#allocation2 + $0x20] sm:$0xff]
          %v881 = vld [vmem:[#allocation2 + $0x28] sm:$0xff]
          %v882 = vld [vmem:[#allocation2 + $0x30] sm:$0xff]
          %v883 = vld [vmem:[#allocation2 + $0x38] sm:$0xff]
          %v884 = vld [vmem:[#allocation2 + $0x40] sm:$0xff]
          %v885 = vld [vmem:[#allocation2 + $0x48] sm:$0xff]
          %v886 = vld [vmem:[#allocation2 + $0x50] sm:$0xff]
          %v887 = vld [vmem:[#allocation2 + $0x58] sm:$0xff]
          %v888 = vld [vmem:[#allocation2 + $0x60] sm:$0xff]
          %v889 = vld [vmem:[#allocation2 + $0x68] sm:$0xff]
          %v890 = vld [vmem:[#allocation2 + $0x70] sm:$0xff]
          %v891 = vadd.f32 %v876, %v877
          %v892 = vadd.f32 %v891, %v878
          %v893 = vadd.f32 %v892, %v879
          %v894 = vadd.f32 %v893, %v880
          %v895 = vrot.slane %v894, 4
          %v896 = vadd.f32 %v894, %v895
          %v897 = vrot.slane %v896, 2
          %v898 = vadd.f32 %v896, %v897
          %v899 = vrot.slane %v898, 1
          %v900 = vadd.f32 %v898, %v899
          %v901 = vadd.f32 %v881, %v882
          %v902 = vadd.f32 %v901, %v883
          %v903 = vadd.f32 %v902, %v884
          %v904 = vadd.f32 %v903, %v885
          %v905 = vrot.slane %v904, 4
          %v906 = vadd.f32 %v904, %v905
          %v907 = vrot.slane %v906, 2
          %v908 = vadd.f32 %v906, %v907
          %v909 = vrot.slane %v908, 1
          %v910 = vadd.f32 %v908, %v909
          %v911 = vadd.f32 %v886, %v887
          %v912 = vadd.f32 %v911, %v888
          %v913 = vadd.f32 %v912, %v889
          %v914 = vadd.f32 %v913, %v890
          %v915 = vrot.slane %v914, 4
          %v916 = vadd.f32 %v914, %v915
          %v917 = vrot.slane %v916, 2
          %v918 = vadd.f32 %v916, %v917
          %v919 = vrot.slane %v918, 1
          %v920 = vadd.f32 %v918, %v919
          %vm924 = vcmask 1041409
          %v925 = vsel %vm924, %v910, %v900
          %vm926 = vcmask 1042434
          %v927 = vsel %vm926, %v920, %v925
          %929 = vst [vmem:[%s558] sm:$0x7] %v927
          %v930 = vld [vmem:[#allocation3] sm:$0xff]
          %v931 = vld [vmem:[#allocation3 + $0x8] sm:$0xff]
          %v932 = vld [vmem:[#allocation3 + $0x10] sm:$0xff]
          %v933 = vld [vmem:[#allocation3 + $0x18] sm:$0xff]
          %v934 = vld [vmem:[#allocation3 + $0x20] sm:$0xff]
          %v935 = vadd.f32 %v930, %v931
          %v936 = vadd.f32 %v935, %v932
          %v937 = vadd.f32 %v936, %v933
          %v938 = vadd.f32 %v937, %v934
          %v939 = vrot.slane %v938, 4
          %v940 = vadd.f32 %v938, %v939
          %v941 = vrot.slane %v940, 2
          %v942 = vadd.f32 %v940, %v941
          %v943 = vrot.slane %v942, 1
          %v944 = vadd.f32 %v942, %v943
          %945 = vst [vmem:[%s565] sm:$0x1] %v944
        $region130: #{aligned_l2_forward.3} parent=109 // pred_fallthru
          _
        %p946 = scmp.lt.s32.totalorder %s23, 1
        %s947 = scalar_select %p946, %s23, 1
        %p948 = scmp.lt.s32.totalorder %s24, 1
        %s949 = scalar_select %p948, %s24, 1
        %s950 = smul.addr %s947, 2
        %s951 = sadd.s32 %s949, %s950
        %s952 = smul.addr %s951, 4
        %s953 = scalar_lea.vmem %s4, %s952
        %p954 = scmp.lt.s32.totalorder %s23, 1
        %s955 = scalar_select %p954, %s23, 1
        %p956 = scmp.lt.s32.totalorder %s24, 1
        %s957 = scalar_select %p956, %s24, 1
        %s958 = smul.addr %s955, 2
        %s959 = sadd.s32 %s957, %s958
        %s960 = scalar_lea.vmem %s5, %s959
        // Predicated region
        $region131: #{aligned_l2_forward.3} parent=109 // pred_check
          %p961 = pneg %p168
        $region132: #{aligned_l2_forward.3} parent=109 // pred_check_branch
          %963 = sbr.rel (%p961) target = $region134
        $region133: #{aligned_l2_forward.3} parent=109 // pred_region
          _
        $region134: #{aligned_l2_forward.3} parent=109 // pred_fallthru
          _
        // Predicated region
        $region135: #{aligned_l2_forward.3} parent=109 // pred_check
          %p964 = pneg %p196
        $region136: #{aligned_l2_forward.3} parent=109 // pred_check_branch
          %966 = sbr.rel (%p964) target = $region138
        $region137: #{aligned_l2_forward.3} parent=109 // pred_region
          _
        $region138: #{aligned_l2_forward.3} parent=109 // pred_fallthru
          _
      $region110: #{aligned_l2_forward.3} parent=5 // pred_fallthru
        _
      %p967 = scmp.le.s32.totalorder 2, %s13
      // Predicated region
      $region139: #{aligned_l2_forward.3} parent=5 // pred_check
        %p968 = pneg %p967
      $region140: #{aligned_l2_forward.3} parent=5 // pred_check_branch
        %970 = sbr.rel (%p968) target = $region142
      $region141: #{aligned_l2_forward.3} parent=5 // pred_region
        %s971 = ssub.s32 %s13, 2
        // Predicated region
        $region143: #{aligned_l2_forward.3} parent=141 // pred_check
          %p972 = pneg %p174
        $region144: #{aligned_l2_forward.3} parent=141 // pred_check_branch
          %974 = sbr.rel (%p972) target = $region146
        $region145: #{aligned_l2_forward.3} parent=141 // pred_region
          %p975 = scmp.lt.s32.totalorder %s26, 1
          %s976 = scalar_select %p975, %s26, 1
          %p977 = scmp.lt.s32.totalorder %s27, 1
          %s978 = scalar_select %p977, %s27, 1
          %s979 = smul.addr %s976, 2
          %s980 = sadd.s32 %s978, %s979
          %s981 = smul.addr %s980, 4
          %s982 = scalar_lea.vmem %s4, %s981
        $region146: #{aligned_l2_forward.3} parent=141 // pred_fallthru
          _
        // Predicated region
        $region147: #{aligned_l2_forward.3} parent=141 // pred_check
          %p983 = pneg %p202
        $region148: #{aligned_l2_forward.3} parent=141 // pred_check_branch
          %985 = sbr.rel (%p983) target = $region150
        $region149: #{aligned_l2_forward.3} parent=141 // pred_region
          %p986 = scmp.lt.s32.totalorder %s26, 1
          %s987 = scalar_select %p986, %s26, 1
          %p988 = scmp.lt.s32.totalorder %s27, 1
          %s989 = scalar_select %p988, %s27, 1
          %s990 = smul.addr %s987, 2
          %s991 = sadd.s32 %s989, %s990
          %s992 = scalar_lea.vmem %s5, %s991
        $region150: #{aligned_l2_forward.3} parent=141 // pred_fallthru
          _
      $region142: #{aligned_l2_forward.3} parent=5 // pred_fallthru
        _
    $region6: #{aligned_l2_forward.3} parent=1 // loop_footer
      %s17 = sadd.s32 1, %s13
    $region7: #{aligned_l2_forward.3} parent=1 // loop_footer_branch
      %12 = sbr.rel target = $region3
    $region8: #{aligned_l2_forward.3} parent=1 // loop_exit
      _
    %993 = vsyncpa [#allocation5], 1
    %s994 = scalar_lea.sflag [#allocation5], 1
    %995 = vsyncpa %s994, 1

</llo_original>
